<compile_context>
chip_gen: v7x
topology: tpu7x:2x2x1
jax: 0.10.0
libtpu: 0.0.40
codegen_flags: <defaults>
</compile_context>

<pallas_src>
import functools
import math

import jax
import jax.numpy as jnp
from jax.experimental import pallas as pl
from jax.experimental.pallas import tpu as pltpu

HIDDEN = 128
NUM_HEADS = 4
NUM_PATTERNS = 50
INPUT_SIZE = 16
BATCH = 2
SEQ = 8
LANE = 128                        # padded lane width of fused fc2+confidence head
LATE_COLS = 13 * HIDDEN + LANE    # packed late-weight slab: wih2|whh2|wqkv|wo|wfc1|whead


# -----------------------------------------------------------------------------
# Fused forward kernel: LSTM x2 -> MHA -> residual -> mean pool -> fc1 -> heads
# -----------------------------------------------------------------------------
def fused_forward_kernel(
    x_ref,                        # (S*B, Din) f32, rows ordered (t, b)
    wih1_ref, whh1_ref, b1_ref,   # (Din,4H) bf16, (H,4H) bf16, (1,4H) f32; gates [i|f|o|g]
    late_hbm_ref,                 # (H, LATE_COLS) bf16, memory_space=pl.ANY (manual DMA)
    b2_ref,                       # (1, 4H) f32
    bqkv_ref,                     # (1, 3H) f32
    bo_ref,                       # (1, H)  f32
    bfc1_ref,                     # (1, H)  f32
    bhead_ref,                    # (1, LANE) f32  (fc2 ++ confidence, zero-padded)
    seg_ref, segT_ref,            # (H, NH) bf16 (scale folded), (NH, H) bf16
    perm_ref, pool_ref,           # (B*S, S*B) bf16, (B, B*S) bf16
    out_ref,                      # (B, LANE) f32
    late_buf, hs1_buf, hs2_buf, dma_sem,     # scratch
    *, batch, seq, hidden, num_patterns):
  B, S, H = batch, seq, hidden
  f32, bf16 = jnp.float32, jnp.bfloat16

  # Start the DMA of all "late" weights now and hide it behind the layer-1 LSTM
  # (a grid-less pallas_call has no automatic pipelining).
  late_cp = pltpu.make_async_copy(late_hbm_ref, late_buf, dma_sem)
  late_cp.start()

  def lstm_layer(gx, whh, hs_buf):
    """gx: (S*B, 4H) hoisted input gates (+bias), rows (t, b); gate cols [i|f|o|g].
    Writes each step's hidden state (bf16) into hs_buf, rows ordered (t, b)."""
    h = jnp.zeros((B, H), f32)
    c = jnp.zeros((B, H), f32)
    for t in range(S):                           # static unroll; S is small
      gates = gx[t * B:(t + 1) * B, :] + jnp.dot(
          h.astype(bf16), whh, preferred_element_type=f32)             # (B, 4H)
      sig = jax.nn.sigmoid(gates[:, :3 * H])     # one EUP pass covers i, f, o
      i, f, o = sig[:, :H], sig[:, H:2 * H], sig[:, 2 * H:3 * H]
      g = jnp.tanh(gates[:, 3 * H:])
      c = f * c + i * g
      h = o * jnp.tanh(c)
      hs_buf[t * B:(t + 1) * B, :] = h.astype(bf16)

  # ---- LSTM layer 1 (input GEMM hoisted out of the recurrence) ----
  gx1 = jnp.dot(x_ref[...].astype(bf16), wih1_ref[...],
                preferred_element_type=f32) + b1_ref[...]               # (S*B, 4H)
  lstm_layer(gx1, whh1_ref[...], hs1_buf)

  # Everything below needs the late-weight slab.
  late_cp.wait()

  # ---- LSTM layer 2 ----
  # TODO(synk): nn.LSTM inter-layer dropout (p=0.2) is train-only; eval forward == identity.
  gx2 = jnp.dot(hs1_buf[...], late_buf[:, 0:4 * H],
                preferred_element_type=f32) + b2_ref[...]               # (S*B, 4H)
  lstm_layer(gx2, late_buf[:, 4 * H:8 * H], hs2_buf)

  # ---- (t, b) -> (b, s) row reorder via one constant permutation matmul ----
  x_cat = jnp.dot(perm_ref[...], hs2_buf[...],
                  preferred_element_type=f32)                           # (B*S, H)

  # ---- multi-head self-attention: (B,S,H) interpreted as (L=B, N=S, E=H) ----
  qkv = jnp.dot(x_cat.astype(bf16), late_buf[:, 8 * H:11 * H],
                preferred_element_type=f32) + bqkv_ref[...]             # (B*S, 3H)
  q = [qkv[b * S:(b + 1) * S, 0 * H:1 * H] for b in range(B)]
  k = [qkv[b * S:(b + 1) * S, 1 * H:2 * H] for b in range(B)]
  v = [qkv[b * S:(b + 1) * S, 2 * H:3 * H] for b in range(B)]

  # scores[n, head] for every (l, m) pair via one segment-sum matmul
  # (1/sqrt(head_dim) is folded into seg).
  prods = jnp.concatenate([q[l] * k[m] for l in range(B) for m in range(B)],
                          axis=0)                                       # (B*B*S, H)
  scores = jnp.dot(prods.astype(bf16), seg_ref[...],
                   preferred_element_type=f32)                          # (B*B*S, NH)
  s = [[scores[(l * B + m) * S:(l * B + m + 1) * S, :] for m in range(B)]
       for l in range(B)]

  # softmax over m (length B) per (n, head)
  probs = []                                                            # (l, m) order
  if B == 2:
    for l in range(B):
      p0 = jax.nn.sigmoid(s[l][0] - s[l][1])   # exact 2-way softmax as one sigmoid
      probs.extend([p0, 1.0 - p0])
  else:
    for l in range(B):
      mx = s[l][0]
      for m in range(1, B):
        mx = jnp.maximum(mx, s[l][m])
      e = [jnp.exp(s[l][m] - mx) for m in range(B)]
      den = e[0]
      for m in range(1, B):
        den = den + e[m]
      inv = pl.reciprocal(den, approx=True)
      probs.extend([em * inv for em in e])

  # broadcast each per-head prob over its lanes with one (.., NH)@(NH, H) matmul
  pcat = jnp.concatenate(probs, axis=0)                                 # (B*B*S, NH)
  wlane = jnp.dot(pcat.astype(bf16), segT_ref[...],
                  preferred_element_type=f32)                           # (B*B*S, H)

  att = []
  for l in range(B):
    acc = wlane[(l * B + 0) * S:(l * B + 1) * S, :] * v[0]
    for m in range(1, B):
      acc = acc + wlane[(l * B + m) * S:(l * B + m + 1) * S, :] * v[m]
    att.append(acc)                                                     # (S, H)
  att_cat = jnp.concatenate(att, axis=0)                                # (B*S, H), (b, s)

  attended = jnp.dot(att_cat.astype(bf16), late_buf[:, 11 * H:12 * H],
                     preferred_element_type=f32) + bo_ref[...]
  combined = x_cat + attended                                           # (B*S, H)

  # mean pool over the sequence via one constant (B, B*S) pooling matmul
  pooled = jnp.dot(pool_ref[...], combined.astype(bf16),
                   preferred_element_type=f32)                          # (B, H)

  h1 = jnp.maximum(
      jnp.dot(pooled.astype(bf16), late_buf[:, 12 * H:13 * H],
              preferred_element_type=f32) + bfc1_ref[...], 0.0)
  raw = jnp.dot(h1.astype(bf16), late_buf[:, 13 * H:13 * H + LANE],
                preferred_element_type=f32) + bhead_ref[...]            # (B, LANE)
  # column `num_patterns` is the confidence logit -> sigmoid there only.
  sig = jax.nn.sigmoid(raw)
  lane = jax.lax.broadcasted_iota(jnp.int32, raw.shape, 1)
  out_ref[...] = jnp.where(lane == num_patterns, sig, raw)              # dense 128-lane store


# -----------------------------------------------------------------------------
# One-time weight preparation (run ONCE, outside the per-call jit).
# -----------------------------------------------------------------------------
def prepare_params(params):
  H, P, NH = HIDDEN, NUM_PATTERNS, NUM_HEADS
  hd = H // NH
  bf16, f32 = jnp.bfloat16, jnp.float32
  l1, l2 = params["lstm"]

  def gate_cols(m):            # (..., 4H) columns [i|f|g|o] -> [i|f|o|g]
    return jnp.concatenate([m[..., :2 * H], m[..., 3 * H:4 * H],
                            m[..., 2 * H:3 * H]], axis=-1)

  wih1 = gate_cols(l1["w_ih"].T).astype(bf16)
  whh1 = gate_cols(l1["w_hh"].T).astype(bf16)
  b1 = gate_cols((l1["b_ih"] + l1["b_hh"])[None, :]).astype(f32)
  wih2 = gate_cols(l2["w_ih"].T).astype(bf16)
  whh2 = gate_cols(l2["w_hh"].T).astype(bf16)
  b2 = gate_cols((l2["b_ih"] + l2["b_hh"])[None, :]).astype(f32)

  wqkv = params["attn_in_w"].T.astype(bf16)
  bqkv = params["attn_in_b"][None, :].astype(f32)
  wo = params["attn_out_w"].T.astype(bf16)
  bo = params["attn_out_b"][None, :].astype(f32)
  wfc1 = params["fc1_w"].T.astype(bf16)
  bfc1 = params["fc1_b"][None, :].astype(f32)

  # fused fc2 + confidence head, padded to a full 128-lane slab
  whead = jnp.zeros((H, LANE), f32)
  whead = whead.at[:, :P].set(params["fc2_w"].T)
  whead = whead.at[:, P:P + 1].set(params["conf_w"].T).astype(bf16)
  bhead = jnp.zeros((LANE,), f32)
  bhead = bhead.at[:P].set(params["fc2_b"]).at[P:P + 1].set(params["conf_b"])[None, :]

  # packed "late" weight slab: everything not needed until after LSTM layer 1
  late = jnp.concatenate([wih2, whh2, wqkv, wo, wfc1, whead], axis=1)   # (H, LATE_COLS)
  assert late.shape == (H, LATE_COLS)

  # head-segment matrices (1/sqrt(head_dim) folded into the lane->head one)
  seg = (jnp.arange(H)[:, None] // hd == jnp.arange(NH)[None, :]).astype(f32)
  seg_s = (seg / math.sqrt(hd)).astype(bf16)
  segT = seg.T.astype(bf16)

  # (t, b) -> (b, s) row permutation and mean-pool matrices (exact in bf16)
  rows = jnp.arange(BATCH * SEQ)
  b_idx, s_idx = rows // SEQ, rows % SEQ
  perm = jnp.zeros((BATCH * SEQ, SEQ * BATCH), f32)
  perm = perm.at[rows, s_idx * BATCH + b_idx].set(1.0).astype(bf16)
  pool = jnp.zeros((BATCH, BATCH * SEQ), f32)
  pool = pool.at[b_idx, rows].set(1.0 / SEQ).astype(bf16)

  return (wih1, whh1, b1, late, b2, bqkv, bo, bfc1, bhead, seg_s, segT, perm, pool)


# -----------------------------------------------------------------------------
# Per-call wrapper: single pallas_call, no per-call weight munging.
# -----------------------------------------------------------------------------
@jax.jit
def forward(x, prep):
  B, S, Din = x.shape
  H, P = HIDDEN, NUM_PATTERNS
  (wih1, whh1, b1, late, b2, bqkv, bo, bfc1, bhead, seg_s, segT, perm, pool) = prep

  # input reordered to (t, b) rows so each timestep's hoisted gates are contiguous
  x_tb = jnp.transpose(x, (1, 0, 2)).reshape(S * B, Din)

  args = (x_tb, wih1, whh1, b1, late, b2, bqkv, bo, bfc1, bhead,
          seg_s, segT, perm, pool)
  vmem = pl.BlockSpec(memory_space=pltpu.MemorySpace.VMEM)
  any_space = pl.BlockSpec(memory_space=pl.ANY)      # late slab: manual DMA in-kernel
  in_specs = [vmem, vmem, vmem, vmem, any_space] + [vmem] * 9

  kernel = functools.partial(fused_forward_kernel, batch=B, seq=S, hidden=H,
                             num_patterns=P)
  # TODO(synk): for production batch sizes on v7x add a batch grid with
  # dimension_semantics=("parallel",) to use both TensorCores; at B=2 a grid
  # would only add per-step overhead.
  out = pl.pallas_call(
      kernel,
      out_shape=jax.ShapeDtypeStruct((B, LANE), jnp.float32),
      in_specs=in_specs,
      out_specs=vmem,
      scratch_shapes=[
          pltpu.VMEM((H, LATE_COLS), jnp.bfloat16),   # late-weight landing buffer
          pltpu.VMEM((S * B, H), jnp.bfloat16),       # layer-1 hidden states, (t, b)
          pltpu.VMEM((S * B, H), jnp.bfloat16),       # layer-2 hidden states, (t, b)
          pltpu.SemaphoreType.DMA,
      ],
      cost_estimate=pl.CostEstimate(flops=10_500_000, transcendentals=21_000,
                                    bytes_accessed=700_000),
  )(*args)
  logits = out[:, :P]
  conf = out[:, P:P + 1]        # sigmoid already applied in-kernel
  return logits, conf


# -----------------------------------------------------------------------------
# Pure-JAX reference (same math, f32) for a self-check.
# -----------------------------------------------------------------------------
def lstm_layer_ref(x, w_ih, w_hh, b_ih, b_hh):
  B, S, _ = x.shape
  H = w_hh.shape[1]
  h = jnp.zeros((B, H), jnp.float32)
  c = jnp.zeros((B, H), jnp.float32)
  outs = []
  for t in range(S):
    g = x[:, t, :] @ w_ih.T + h @ w_hh.T + b_ih + b_hh
    i = jax.nn.sigmoid(g[:, :H])
    f = jax.nn.sigmoid(g[:, H:2 * H])
    gg = jnp.tanh(g[:, 2 * H:3 * H])
    o = jax.nn.sigmoid(g[:, 3 * H:])
    c = f * c + i * gg
    h = o * jnp.tanh(c)
    outs.append(h)
  return jnp.stack(outs, axis=1)


def forward_ref(x, params):
  h = x
  for layer in params["lstm"]:
    h = lstm_layer_ref(h, layer["w_ih"], layer["w_hh"], layer["b_ih"], layer["b_hh"])
  L, N, E = h.shape
  hd = E // NUM_HEADS
  qkv = h @ params["attn_in_w"].T + params["attn_in_b"]
  q, k, v = jnp.split(qkv, 3, axis=-1)
  split = lambda t: jnp.transpose(t.reshape(L, N, NUM_HEADS, hd), (1, 2, 0, 3))
  qh, kh, vh = split(q), split(k), split(v)
  scores = jnp.einsum('nhld,nhmd->nhlm', qh, kh) / math.sqrt(hd)
  attnw = jax.nn.softmax(scores, axis=-1)
  oh = jnp.einsum('nhlm,nhmd->nhld', attnw, vh)
  att = jnp.transpose(oh, (2, 0, 1, 3)).reshape(L, N, E)
  att = att @ params["attn_out_w"].T + params["attn_out_b"]
  pooled = jnp.mean(h + att, axis=1)
  x1 = jax.nn.relu(pooled @ params["fc1_w"].T + params["fc1_b"])
  logits = x1 @ params["fc2_w"].T + params["fc2_b"]
  conf = jax.nn.sigmoid(x1 @ params["conf_w"].T + params["conf_b"])
  return logits, conf


def init_params(key, input_size, hidden, num_patterns):
  k = 1.0 / math.sqrt(hidden)
  keys = iter(jax.random.split(key, 32))

  def u(shape):
    return jax.random.uniform(next(keys), shape, jnp.float32, -k, k)

  lstm = []
  din = input_size
  for _ in range(2):
    lstm.append(dict(w_ih=u((4 * hidden, din)), w_hh=u((4 * hidden, hidden)),
                     b_ih=u((4 * hidden,)), b_hh=u((4 * hidden,))))
    din = hidden
  return dict(
      lstm=lstm,
      attn_in_w=u((3 * hidden, hidden)), attn_in_b=u((3 * hidden,)),
      attn_out_w=u((hidden, hidden)), attn_out_b=u((hidden,)),
      fc1_w=u((hidden, hidden)), fc1_b=u((hidden,)),
      fc2_w=u((num_patterns, hidden)), fc2_b=u((num_patterns,)),
      conf_w=u((1, hidden)), conf_b=u((1,)),
  )


if __name__ == "__main__":
  root = jax.random.PRNGKey(0)
  k_param, k_x = jax.random.split(root)
  params = init_params(k_param, INPUT_SIZE, HIDDEN, NUM_PATTERNS)
  x = jax.random.normal(k_x, (BATCH, SEQ, INPUT_SIZE), jnp.float32)

  prep = prepare_params(params)          # one-time layout / bf16 cast / packing
  logits, conf = forward(x, prep)
  jax.block_until_ready((logits, conf))

  ref_logits, ref_conf = forward_ref(x, params)
  assert logits.shape == (BATCH, NUM_PATTERNS) and conf.shape == (BATCH, 1)
  # bf16 matmul operands (f32 accumulation) -> slightly looser tolerance than pure f32
  assert jnp.allclose(logits, ref_logits, atol=2e-2, rtol=2e-2)
  assert jnp.allclose(conf, ref_conf, atol=2e-2, rtol=2e-2)

  print("KERNEL_OK")
</pallas_src>

<mosaic_0001>
module attributes {stable_mosaic.version = 11 : i64} {
  func.func @fused_forward_kernel(%arg0: memref<16x16xf32, #tpu.memory_space<vmem>>, %arg1: memref<16x512xbf16, #tpu.memory_space<vmem>>, %arg2: memref<128x512xbf16, #tpu.memory_space<vmem>>, %arg3: memref<1x512xf32, #tpu.memory_space<vmem>>, %arg4: memref<128x1792xbf16, #tpu.memory_space<any>>, %arg5: memref<1x512xf32, #tpu.memory_space<vmem>>, %arg6: memref<1x384xf32, #tpu.memory_space<vmem>>, %arg7: memref<1x128xf32, #tpu.memory_space<vmem>>, %arg8: memref<1x128xf32, #tpu.memory_space<vmem>>, %arg9: memref<1x128xf32, #tpu.memory_space<vmem>>, %arg10: memref<128x4xbf16, #tpu.memory_space<vmem>>, %arg11: memref<4x128xbf16, #tpu.memory_space<vmem>>, %arg12: memref<16x16xbf16, #tpu.memory_space<vmem>>, %arg13: memref<2x16xbf16, #tpu.memory_space<vmem>>, %arg14: memref<2x128xf32, #tpu.memory_space<vmem>>, %arg15: memref<128x1792xbf16, #tpu.memory_space<vmem>>, %arg16: memref<16x128xbf16, #tpu.memory_space<vmem>>, %arg17: memref<16x128xbf16, #tpu.memory_space<vmem>>, %arg18: memref<!tpu.dma_semaphore, #tpu.memory_space<semaphore_mem>>) attributes {dimension_semantics = [], scalar_prefetch = 0 : i64, scratch_operands = 4 : i64, tpu.core_type = #tpu.core_type<tc>} {
    tpu.enqueue_dma source(%arg4 : memref<128x1792xbf16, #tpu.memory_space<any>>) target(%arg15 : memref<128x1792xbf16, #tpu.memory_space<vmem>>) target_semaphore(%arg18 : memref<!tpu.dma_semaphore, #tpu.memory_space<semaphore_mem>>)
    %c0 = arith.constant 0 : index
    %c0_0 = arith.constant 0 : index
    %0 = vector.load %arg0[%c0, %c0_0] : memref<16x16xf32, #tpu.memory_space<vmem>>, vector<16x16xf32>
    %1 = arith.truncf %0 : vector<16x16xf32> to vector<16x16xbf16>
    %c0_1 = arith.constant 0 : index
    %c0_2 = arith.constant 0 : index
    %2 = vector.load %arg1[%c0_1, %c0_2] : memref<16x512xbf16, #tpu.memory_space<vmem>>, vector<16x512xbf16>
    %cst = arith.constant dense<0.000000e+00> : vector<16x512xf32>
    %3 = tpu.matmul %1, %2, %cst {dimension_numbers = #tpu.dot_dimension_numbers<[1], [0], [0], [1], [0, 0, 1, 1], [], []>} : vector<16x16xbf16>, vector<16x512xbf16>, vector<16x512xf32> -> vector<16x512xf32>
    %c0_3 = arith.constant 0 : index
    %c0_4 = arith.constant 0 : index
    %4 = vector.load %arg3[%c0_3, %c0_4] : memref<1x512xf32, #tpu.memory_space<vmem>>, vector<1x512xf32>
    %5 = vector.broadcast %4 : vector<1x512xf32> to vector<16x512xf32>
    %6 = arith.addf %3, %5 : vector<16x512xf32>
    %c0_5 = arith.constant 0 : index
    %c0_6 = arith.constant 0 : index
    %7 = vector.load %arg2[%c0_5, %c0_6] : memref<128x512xbf16, #tpu.memory_space<vmem>>, vector<128x512xbf16>
    %cst_7 = arith.constant 0.000000e+00 : f32
    %8 = vector.broadcast %cst_7 : f32 to vector<2x128xf32>
    %cst_8 = arith.constant 0.000000e+00 : f32
    %9 = vector.broadcast %cst_8 : f32 to vector<2x128xf32>
    %10 = vector.extract_strided_slice %6 {offsets = [0, 0], sizes = [2, 512], strides = [1, 1]} : vector<16x512xf32> to vector<2x512xf32>
    %11 = arith.truncf %8 : vector<2x128xf32> to vector<2x128xbf16>
    %cst_9 = arith.constant dense<0.000000e+00> : vector<2x512xf32>
    %12 = tpu.matmul %11, %7, %cst_9 {dimension_numbers = #tpu.dot_dimension_numbers<[1], [0], [0], [1], [0, 0, 1, 1], [], []>} : vector<2x128xbf16>, vector<128x512xbf16>, vector<2x512xf32> -> vector<2x512xf32>
    %13 = arith.addf %10, %12 : vector<2x512xf32>
    %14 = vector.extract_strided_slice %13 {offsets = [0, 0], sizes = [2, 384], strides = [1, 1]} : vector<2x512xf32> to vector<2x384xf32>
    %15 = arith.negf %14 : vector<2x384xf32>
    %16 = math.exp %15 : vector<2x384xf32>
    %cst_10 = arith.constant 1.000000e+00 : f32
    %17 = vector.broadcast %cst_10 : f32 to vector<2x384xf32>
    %18 = arith.addf %17, %16 : vector<2x384xf32>
    %19 = arith.divf %17, %18 : vector<2x384xf32>
    %20 = vector.extract_strided_slice %19 {offsets = [0, 0], sizes = [2, 128], strides = [1, 1]} : vector<2x384xf32> to vector<2x128xf32>
    %21 = vector.extract_strided_slice %19 {offsets = [0, 128], sizes = [2, 128], strides = [1, 1]} : vector<2x384xf32> to vector<2x128xf32>
    %22 = vector.extract_strided_slice %19 {offsets = [0, 256], sizes = [2, 128], strides = [1, 1]} : vector<2x384xf32> to vector<2x128xf32>
    %23 = vector.extract_strided_slice %13 {offsets = [0, 384], sizes = [2, 128], strides = [1, 1]} : vector<2x512xf32> to vector<2x128xf32>
    %24 = math.tanh %23 : vector<2x128xf32>
    %25 = arith.mulf %21, %9 : vector<2x128xf32>
    %26 = arith.mulf %20, %24 : vector<2x128xf32>
    %27 = arith.addf %25, %26 : vector<2x128xf32>
    %28 = math.tanh %27 : vector<2x128xf32>
    %29 = arith.mulf %22, %28 : vector<2x128xf32>
    %30 = arith.truncf %29 : vector<2x128xf32> to vector<2x128xbf16>
    %c0_11 = arith.constant 0 : index
    %c0_12 = arith.constant 0 : index
    %31 = vector.load %arg16[%c0_11, %c0_12] : memref<16x128xbf16, #tpu.memory_space<vmem>>, vector<2x128xbf16>
    tpu.vector_store %arg16[%c0_11, %c0_12], %30 {strides = array<i32>} : memref<16x128xbf16, #tpu.memory_space<vmem>>, vector<2x128xbf16>,
    %32 = vector.extract_strided_slice %6 {offsets = [2, 0], sizes = [2, 512], strides = [1, 1]} : vector<16x512xf32> to vector<2x512xf32>
    %33 = arith.truncf %29 : vector<2x128xf32> to vector<2x128xbf16>
    %cst_13 = arith.constant dense<0.000000e+00> : vector<2x512xf32>
    %34 = tpu.matmul %33, %7, %cst_13 {dimension_numbers = #tpu.dot_dimension_numbers<[1], [0], [0], [1], [0, 0, 1, 1], [], []>} : vector<2x128xbf16>, vector<128x512xbf16>, vector<2x512xf32> -> vector<2x512xf32>
    %35 = arith.addf %32, %34 : vector<2x512xf32>
    %36 = vector.extract_strided_slice %35 {offsets = [0, 0], sizes = [2, 384], strides = [1, 1]} : vector<2x512xf32> to vector<2x384xf32>
    %37 = arith.negf %36 : vector<2x384xf32>
    %38 = math.exp %37 : vector<2x384xf32>
    %cst_14 = arith.constant 1.000000e+00 : f32
    %39 = vector.broadcast %cst_14 : f32 to vector<2x384xf32>
    %40 = arith.addf %39, %38 : vector<2x384xf32>
    %41 = arith.divf %39, %40 : vector<2x384xf32>
    %42 = vector.extract_strided_slice %41 {offsets = [0, 0], sizes = [2, 128], strides = [1, 1]} : vector<2x384xf32> to vector<2x128xf32>
    %43 = vector.extract_strided_slice %41 {offsets = [0, 128], sizes = [2, 128], strides = [1, 1]} : vector<2x384xf32> to vector<2x128xf32>
    %44 = vector.extract_strided_slice %41 {offsets = [0, 256], sizes = [2, 128], strides = [1, 1]} : vector<2x384xf32> to vector<2x128xf32>
    %45 = vector.extract_strided_slice %35 {offsets = [0, 384], sizes = [2, 128], strides = [1, 1]} : vector<2x512xf32> to vector<2x128xf32>
    %46 = math.tanh %45 : vector<2x128xf32>
    %47 = arith.mulf %43, %27 : vector<2x128xf32>
    %48 = arith.mulf %42, %46 : vector<2x128xf32>
    %49 = arith.addf %47, %48 : vector<2x128xf32>
    %50 = math.tanh %49 : vector<2x128xf32>
    %51 = arith.mulf %44, %50 : vector<2x128xf32>
    %52 = arith.truncf %51 : vector<2x128xf32> to vector<2x128xbf16>
    %c2 = arith.constant 2 : index
    %c0_15 = arith.constant 0 : index
    %53 = vector.load %arg16[%c2, %c0_15] : memref<16x128xbf16, #tpu.memory_space<vmem>>, vector<2x128xbf16>
    tpu.vector_store %arg16[%c2, %c0_15], %52 {strides = array<i32>} : memref<16x128xbf16, #tpu.memory_space<vmem>>, vector<2x128xbf16>,
    %54 = vector.extract_strided_slice %6 {offsets = [4, 0], sizes = [2, 512], strides = [1, 1]} : vector<16x512xf32> to vector<2x512xf32>
    %55 = arith.truncf %51 : vector<2x128xf32> to vector<2x128xbf16>
    %cst_16 = arith.constant dense<0.000000e+00> : vector<2x512xf32>
    %56 = tpu.matmul %55, %7, %cst_16 {dimension_numbers = #tpu.dot_dimension_numbers<[1], [0], [0], [1], [0, 0, 1, 1], [], []>} : vector<2x128xbf16>, vector<128x512xbf16>, vector<2x512xf32> -> vector<2x512xf32>
    %57 = arith.addf %54, %56 : vector<2x512xf32>
    %58 = vector.extract_strided_slice %57 {offsets = [0, 0], sizes = [2, 384], strides = [1, 1]} : vector<2x512xf32> to vector<2x384xf32>
    %59 = arith.negf %58 : vector<2x384xf32>
    %60 = math.exp %59 : vector<2x384xf32>
    %cst_17 = arith.constant 1.000000e+00 : f32
    %61 = vector.broadcast %cst_17 : f32 to vector<2x384xf32>
    %62 = arith.addf %61, %60 : vector<2x384xf32>
    %63 = arith.divf %61, %62 : vector<2x384xf32>
    %64 = vector.extract_strided_slice %63 {offsets = [0, 0], sizes = [2, 128], strides = [1, 1]} : vector<2x384xf32> to vector<2x128xf32>
    %65 = vector.extract_strided_slice %63 {offsets = [0, 128], sizes = [2, 128], strides = [1, 1]} : vector<2x384xf32> to vector<2x128xf32>
    %66 = vector.extract_strided_slice %63 {offsets = [0, 256], sizes = [2, 128], strides = [1, 1]} : vector<2x384xf32> to vector<2x128xf32>
    %67 = vector.extract_strided_slice %57 {offsets = [0, 384], sizes = [2, 128], strides = [1, 1]} : vector<2x512xf32> to vector<2x128xf32>
    %68 = math.tanh %67 : vector<2x128xf32>
    %69 = arith.mulf %65, %49 : vector<2x128xf32>
    %70 = arith.mulf %64, %68 : vector<2x128xf32>
    %71 = arith.addf %69, %70 : vector<2x128xf32>
    %72 = math.tanh %71 : vector<2x128xf32>
    %73 = arith.mulf %66, %72 : vector<2x128xf32>
    %74 = arith.truncf %73 : vector<2x128xf32> to vector<2x128xbf16>
    %c4 = arith.constant 4 : index
    %c0_18 = arith.constant 0 : index
    %75 = vector.load %arg16[%c4, %c0_18] : memref<16x128xbf16, #tpu.memory_space<vmem>>, vector<2x128xbf16>
    tpu.vector_store %arg16[%c4, %c0_18], %74 {strides = array<i32>} : memref<16x128xbf16, #tpu.memory_space<vmem>>, vector<2x128xbf16>,
    %76 = vector.extract_strided_slice %6 {offsets = [6, 0], sizes = [2, 512], strides = [1, 1]} : vector<16x512xf32> to vector<2x512xf32>
    %77 = arith.truncf %73 : vector<2x128xf32> to vector<2x128xbf16>
    %cst_19 = arith.constant dense<0.000000e+00> : vector<2x512xf32>
    %78 = tpu.matmul %77, %7, %cst_19 {dimension_numbers = #tpu.dot_dimension_numbers<[1], [0], [0], [1], [0, 0, 1, 1], [], []>} : vector<2x128xbf16>, vector<128x512xbf16>, vector<2x512xf32> -> vector<2x512xf32>
    %79 = arith.addf %76, %78 : vector<2x512xf32>
    %80 = vector.extract_strided_slice %79 {offsets = [0, 0], sizes = [2, 384], strides = [1, 1]} : vector<2x512xf32> to vector<2x384xf32>
    %81 = arith.negf %80 : vector<2x384xf32>
    %82 = math.exp %81 : vector<2x384xf32>
    %cst_20 = arith.constant 1.000000e+00 : f32
    %83 = vector.broadcast %cst_20 : f32 to vector<2x384xf32>
    %84 = arith.addf %83, %82 : vector<2x384xf32>
    %85 = arith.divf %83, %84 : vector<2x384xf32>
    %86 = vector.extract_strided_slice %85 {offsets = [0, 0], sizes = [2, 128], strides = [1, 1]} : vector<2x384xf32> to vector<2x128xf32>
    %87 = vector.extract_strided_slice %85 {offsets = [0, 128], sizes = [2, 128], strides = [1, 1]} : vector<2x384xf32> to vector<2x128xf32>
    %88 = vector.extract_strided_slice %85 {offsets = [0, 256], sizes = [2, 128], strides = [1, 1]} : vector<2x384xf32> to vector<2x128xf32>
    %89 = vector.extract_strided_slice %79 {offsets = [0, 384], sizes = [2, 128], strides = [1, 1]} : vector<2x512xf32> to vector<2x128xf32>
    %90 = math.tanh %89 : vector<2x128xf32>
    %91 = arith.mulf %87, %71 : vector<2x128xf32>
    %92 = arith.mulf %86, %90 : vector<2x128xf32>
    %93 = arith.addf %91, %92 : vector<2x128xf32>
    %94 = math.tanh %93 : vector<2x128xf32>
    %95 = arith.mulf %88, %94 : vector<2x128xf32>
    %96 = arith.truncf %95 : vector<2x128xf32> to vector<2x128xbf16>
    %c6 = arith.constant 6 : index
    %c0_21 = arith.constant 0 : index
    %97 = vector.load %arg16[%c6, %c0_21] : memref<16x128xbf16, #tpu.memory_space<vmem>>, vector<2x128xbf16>
    tpu.vector_store %arg16[%c6, %c0_21], %96 {strides = array<i32>} : memref<16x128xbf16, #tpu.memory_space<vmem>>, vector<2x128xbf16>,
    %98 = vector.extract_strided_slice %6 {offsets = [8, 0], sizes = [2, 512], strides = [1, 1]} : vector<16x512xf32> to vector<2x512xf32>
    %99 = arith.truncf %95 : vector<2x128xf32> to vector<2x128xbf16>
    %cst_22 = arith.constant dense<0.000000e+00> : vector<2x512xf32>
    %100 = tpu.matmul %99, %7, %cst_22 {dimension_numbers = #tpu.dot_dimension_numbers<[1], [0], [0], [1], [0, 0, 1, 1], [], []>} : vector<2x128xbf16>, vector<128x512xbf16>, vector<2x512xf32> -> vector<2x512xf32>
    %101 = arith.addf %98, %100 : vector<2x512xf32>
    %102 = vector.extract_strided_slice %101 {offsets = [0, 0], sizes = [2, 384], strides = [1, 1]} : vector<2x512xf32> to vector<2x384xf32>
    %103 = arith.negf %102 : vector<2x384xf32>
    %104 = math.exp %103 : vector<2x384xf32>
    %cst_23 = arith.constant 1.000000e+00 : f32
    %105 = vector.broadcast %cst_23 : f32 to vector<2x384xf32>
    %106 = arith.addf %105, %104 : vector<2x384xf32>
    %107 = arith.divf %105, %106 : vector<2x384xf32>
    %108 = vector.extract_strided_slice %107 {offsets = [0, 0], sizes = [2, 128], strides = [1, 1]} : vector<2x384xf32> to vector<2x128xf32>
    %109 = vector.extract_strided_slice %107 {offsets = [0, 128], sizes = [2, 128], strides = [1, 1]} : vector<2x384xf32> to vector<2x128xf32>
    %110 = vector.extract_strided_slice %107 {offsets = [0, 256], sizes = [2, 128], strides = [1, 1]} : vector<2x384xf32> to vector<2x128xf32>
    %111 = vector.extract_strided_slice %101 {offsets = [0, 384], sizes = [2, 128], strides = [1, 1]} : vector<2x512xf32> to vector<2x128xf32>
    %112 = math.tanh %111 : vector<2x128xf32>
    %113 = arith.mulf %109, %93 : vector<2x128xf32>
    %114 = arith.mulf %108, %112 : vector<2x128xf32>
    %115 = arith.addf %113, %114 : vector<2x128xf32>
    %116 = math.tanh %115 : vector<2x128xf32>
    %117 = arith.mulf %110, %116 : vector<2x128xf32>
    %118 = arith.truncf %117 : vector<2x128xf32> to vector<2x128xbf16>
    %c8 = arith.constant 8 : index
    %c0_24 = arith.constant 0 : index
    %119 = vector.load %arg16[%c8, %c0_24] : memref<16x128xbf16, #tpu.memory_space<vmem>>, vector<2x128xbf16>
    tpu.vector_store %arg16[%c8, %c0_24], %118 {strides = array<i32>} : memref<16x128xbf16, #tpu.memory_space<vmem>>, vector<2x128xbf16>,
    %120 = vector.extract_strided_slice %6 {offsets = [10, 0], sizes = [2, 512], strides = [1, 1]} : vector<16x512xf32> to vector<2x512xf32>
    %121 = arith.truncf %117 : vector<2x128xf32> to vector<2x128xbf16>
    %cst_25 = arith.constant dense<0.000000e+00> : vector<2x512xf32>
    %122 = tpu.matmul %121, %7, %cst_25 {dimension_numbers = #tpu.dot_dimension_numbers<[1], [0], [0], [1], [0, 0, 1, 1], [], []>} : vector<2x128xbf16>, vector<128x512xbf16>, vector<2x512xf32> -> vector<2x512xf32>
    %123 = arith.addf %120, %122 : vector<2x512xf32>
    %124 = vector.extract_strided_slice %123 {offsets = [0, 0], sizes = [2, 384], strides = [1, 1]} : vector<2x512xf32> to vector<2x384xf32>
    %125 = arith.negf %124 : vector<2x384xf32>
    %126 = math.exp %125 : vector<2x384xf32>
    %cst_26 = arith.constant 1.000000e+00 : f32
    %127 = vector.broadcast %cst_26 : f32 to vector<2x384xf32>
    %128 = arith.addf %127, %126 : vector<2x384xf32>
    %129 = arith.divf %127, %128 : vector<2x384xf32>
    %130 = vector.extract_strided_slice %129 {offsets = [0, 0], sizes = [2, 128], strides = [1, 1]} : vector<2x384xf32> to vector<2x128xf32>
    %131 = vector.extract_strided_slice %129 {offsets = [0, 128], sizes = [2, 128], strides = [1, 1]} : vector<2x384xf32> to vector<2x128xf32>
    %132 = vector.extract_strided_slice %129 {offsets = [0, 256], sizes = [2, 128], strides = [1, 1]} : vector<2x384xf32> to vector<2x128xf32>
    %133 = vector.extract_strided_slice %123 {offsets = [0, 384], sizes = [2, 128], strides = [1, 1]} : vector<2x512xf32> to vector<2x128xf32>
    %134 = math.tanh %133 : vector<2x128xf32>
    %135 = arith.mulf %131, %115 : vector<2x128xf32>
    %136 = arith.mulf %130, %134 : vector<2x128xf32>
    %137 = arith.addf %135, %136 : vector<2x128xf32>
    %138 = math.tanh %137 : vector<2x128xf32>
    %139 = arith.mulf %132, %138 : vector<2x128xf32>
    %140 = arith.truncf %139 : vector<2x128xf32> to vector<2x128xbf16>
    %c10 = arith.constant 10 : index
    %c0_27 = arith.constant 0 : index
    %141 = vector.load %arg16[%c10, %c0_27] : memref<16x128xbf16, #tpu.memory_space<vmem>>, vector<2x128xbf16>
    tpu.vector_store %arg16[%c10, %c0_27], %140 {strides = array<i32>} : memref<16x128xbf16, #tpu.memory_space<vmem>>, vector<2x128xbf16>,
    %142 = vector.extract_strided_slice %6 {offsets = [12, 0], sizes = [2, 512], strides = [1, 1]} : vector<16x512xf32> to vector<2x512xf32>
    %143 = arith.truncf %139 : vector<2x128xf32> to vector<2x128xbf16>
    %cst_28 = arith.constant dense<0.000000e+00> : vector<2x512xf32>
    %144 = tpu.matmul %143, %7, %cst_28 {dimension_numbers = #tpu.dot_dimension_numbers<[1], [0], [0], [1], [0, 0, 1, 1], [], []>} : vector<2x128xbf16>, vector<128x512xbf16>, vector<2x512xf32> -> vector<2x512xf32>
    %145 = arith.addf %142, %144 : vector<2x512xf32>
    %146 = vector.extract_strided_slice %145 {offsets = [0, 0], sizes = [2, 384], strides = [1, 1]} : vector<2x512xf32> to vector<2x384xf32>
    %147 = arith.negf %146 : vector<2x384xf32>
    %148 = math.exp %147 : vector<2x384xf32>
    %cst_29 = arith.constant 1.000000e+00 : f32
    %149 = vector.broadcast %cst_29 : f32 to vector<2x384xf32>
    %150 = arith.addf %149, %148 : vector<2x384xf32>
    %151 = arith.divf %149, %150 : vector<2x384xf32>
    %152 = vector.extract_strided_slice %151 {offsets = [0, 0], sizes = [2, 128], strides = [1, 1]} : vector<2x384xf32> to vector<2x128xf32>
    %153 = vector.extract_strided_slice %151 {offsets = [0, 128], sizes = [2, 128], strides = [1, 1]} : vector<2x384xf32> to vector<2x128xf32>
    %154 = vector.extract_strided_slice %151 {offsets = [0, 256], sizes = [2, 128], strides = [1, 1]} : vector<2x384xf32> to vector<2x128xf32>
    %155 = vector.extract_strided_slice %145 {offsets = [0, 384], sizes = [2, 128], strides = [1, 1]} : vector<2x512xf32> to vector<2x128xf32>
    %156 = math.tanh %155 : vector<2x128xf32>
    %157 = arith.mulf %153, %137 : vector<2x128xf32>
    %158 = arith.mulf %152, %156 : vector<2x128xf32>
    %159 = arith.addf %157, %158 : vector<2x128xf32>
    %160 = math.tanh %159 : vector<2x128xf32>
    %161 = arith.mulf %154, %160 : vector<2x128xf32>
    %162 = arith.truncf %161 : vector<2x128xf32> to vector<2x128xbf16>
    %c12 = arith.constant 12 : index
    %c0_30 = arith.constant 0 : index
    %163 = vector.load %arg16[%c12, %c0_30] : memref<16x128xbf16, #tpu.memory_space<vmem>>, vector<2x128xbf16>
    tpu.vector_store %arg16[%c12, %c0_30], %162 {strides = array<i32>} : memref<16x128xbf16, #tpu.memory_space<vmem>>, vector<2x128xbf16>,
    %164 = vector.extract_strided_slice %6 {offsets = [14, 0], sizes = [2, 512], strides = [1, 1]} : vector<16x512xf32> to vector<2x512xf32>
    %165 = arith.truncf %161 : vector<2x128xf32> to vector<2x128xbf16>
    %cst_31 = arith.constant dense<0.000000e+00> : vector<2x512xf32>
    %166 = tpu.matmul %165, %7, %cst_31 {dimension_numbers = #tpu.dot_dimension_numbers<[1], [0], [0], [1], [0, 0, 1, 1], [], []>} : vector<2x128xbf16>, vector<128x512xbf16>, vector<2x512xf32> -> vector<2x512xf32>
    %167 = arith.addf %164, %166 : vector<2x512xf32>
    %168 = vector.extract_strided_slice %167 {offsets = [0, 0], sizes = [2, 384], strides = [1, 1]} : vector<2x512xf32> to vector<2x384xf32>
    %169 = arith.negf %168 : vector<2x384xf32>
    %170 = math.exp %169 : vector<2x384xf32>
    %cst_32 = arith.constant 1.000000e+00 : f32
    %171 = vector.broadcast %cst_32 : f32 to vector<2x384xf32>
    %172 = arith.addf %171, %170 : vector<2x384xf32>
    %173 = arith.divf %171, %172 : vector<2x384xf32>
    %174 = vector.extract_strided_slice %173 {offsets = [0, 0], sizes = [2, 128], strides = [1, 1]} : vector<2x384xf32> to vector<2x128xf32>
    %175 = vector.extract_strided_slice %173 {offsets = [0, 128], sizes = [2, 128], strides = [1, 1]} : vector<2x384xf32> to vector<2x128xf32>
    %176 = vector.extract_strided_slice %173 {offsets = [0, 256], sizes = [2, 128], strides = [1, 1]} : vector<2x384xf32> to vector<2x128xf32>
    %177 = vector.extract_strided_slice %167 {offsets = [0, 384], sizes = [2, 128], strides = [1, 1]} : vector<2x512xf32> to vector<2x128xf32>
    %178 = math.tanh %177 : vector<2x128xf32>
    %179 = arith.mulf %175, %159 : vector<2x128xf32>
    %180 = arith.mulf %174, %178 : vector<2x128xf32>
    %181 = arith.addf %179, %180 : vector<2x128xf32>
    %182 = math.tanh %181 : vector<2x128xf32>
    %183 = arith.mulf %176, %182 : vector<2x128xf32>
    %184 = arith.truncf %183 : vector<2x128xf32> to vector<2x128xbf16>
    %c14 = arith.constant 14 : index
    %c0_33 = arith.constant 0 : index
    %185 = vector.load %arg16[%c14, %c0_33] : memref<16x128xbf16, #tpu.memory_space<vmem>>, vector<2x128xbf16>
    tpu.vector_store %arg16[%c14, %c0_33], %184 {strides = array<i32>} : memref<16x128xbf16, #tpu.memory_space<vmem>>, vector<2x128xbf16>,
    tpu.wait_dma2 semaphore(%arg18 : memref<!tpu.dma_semaphore, #tpu.memory_space<semaphore_mem>>) src(%arg4 : memref<128x1792xbf16, #tpu.memory_space<any>>) dst(%arg15 : memref<128x1792xbf16, #tpu.memory_space<vmem>>)
    %c0_34 = arith.constant 0 : index
    %c0_35 = arith.constant 0 : index
    %186 = vector.load %arg16[%c0_34, %c0_35] : memref<16x128xbf16, #tpu.memory_space<vmem>>, vector<16x128xbf16>
    %c0_36 = arith.constant 0 : index
    %c0_37 = arith.constant 0 : index
    %187 = vector.load %arg15[%c0_36, %c0_37] : memref<128x1792xbf16, #tpu.memory_space<vmem>>, vector<128x512xbf16>
    %cst_38 = arith.constant dense<0.000000e+00> : vector<16x512xf32>
    %188 = tpu.matmul %186, %187, %cst_38 {dimension_numbers = #tpu.dot_dimension_numbers<[1], [0], [0], [1], [0, 0, 1, 1], [], []>} : vector<16x128xbf16>, vector<128x512xbf16>, vector<16x512xf32> -> vector<16x512xf32>
    %c0_39 = arith.constant 0 : index
    %c0_40 = arith.constant 0 : index
    %189 = vector.load %arg5[%c0_39, %c0_40] : memref<1x512xf32, #tpu.memory_space<vmem>>, vector<1x512xf32>
    %190 = vector.broadcast %189 : vector<1x512xf32> to vector<16x512xf32>
    %191 = arith.addf %188, %190 : vector<16x512xf32>
    %c0_41 = arith.constant 0 : index
    %c512 = arith.constant 512 : index
    %192 = vector.load %arg15[%c0_41, %c512] : memref<128x1792xbf16, #tpu.memory_space<vmem>>, vector<128x512xbf16>
    %cst_42 = arith.constant 0.000000e+00 : f32
    %193 = vector.broadcast %cst_42 : f32 to vector<2x128xf32>
    %cst_43 = arith.constant 0.000000e+00 : f32
    %194 = vector.broadcast %cst_43 : f32 to vector<2x128xf32>
    %195 = vector.extract_strided_slice %191 {offsets = [0, 0], sizes = [2, 512], strides = [1, 1]} : vector<16x512xf32> to vector<2x512xf32>
    %196 = arith.truncf %193 : vector<2x128xf32> to vector<2x128xbf16>
    %cst_44 = arith.constant dense<0.000000e+00> : vector<2x512xf32>
    %197 = tpu.matmul %196, %192, %cst_44 {dimension_numbers = #tpu.dot_dimension_numbers<[1], [0], [0], [1], [0, 0, 1, 1], [], []>} : vector<2x128xbf16>, vector<128x512xbf16>, vector<2x512xf32> -> vector<2x512xf32>
    %198 = arith.addf %195, %197 : vector<2x512xf32>
    %199 = vector.extract_strided_slice %198 {offsets = [0, 0], sizes = [2, 384], strides = [1, 1]} : vector<2x512xf32> to vector<2x384xf32>
    %200 = arith.negf %199 : vector<2x384xf32>
    %201 = math.exp %200 : vector<2x384xf32>
    %cst_45 = arith.constant 1.000000e+00 : f32
    %202 = vector.broadcast %cst_45 : f32 to vector<2x384xf32>
    %203 = arith.addf %202, %201 : vector<2x384xf32>
    %204 = arith.divf %202, %203 : vector<2x384xf32>
    %205 = vector.extract_strided_slice %204 {offsets = [0, 0], sizes = [2, 128], strides = [1, 1]} : vector<2x384xf32> to vector<2x128xf32>
    %206 = vector.extract_strided_slice %204 {offsets = [0, 128], sizes = [2, 128], strides = [1, 1]} : vector<2x384xf32> to vector<2x128xf32>
    %207 = vector.extract_strided_slice %204 {offsets = [0, 256], sizes = [2, 128], strides = [1, 1]} : vector<2x384xf32> to vector<2x128xf32>
    %208 = vector.extract_strided_slice %198 {offsets = [0, 384], sizes = [2, 128], strides = [1, 1]} : vector<2x512xf32> to vector<2x128xf32>
    %209 = math.tanh %208 : vector<2x128xf32>
    %210 = arith.mulf %206, %194 : vector<2x128xf32>
    %211 = arith.mulf %205, %209 : vector<2x128xf32>
    %212 = arith.addf %210, %211 : vector<2x128xf32>
    %213 = math.tanh %212 : vector<2x128xf32>
    %214 = arith.mulf %207, %213 : vector<2x128xf32>
    %215 = arith.truncf %214 : vector<2x128xf32> to vector<2x128xbf16>
    %c0_46 = arith.constant 0 : index
    %c0_47 = arith.constant 0 : index
    %216 = vector.load %arg17[%c0_46, %c0_47] : memref<16x128xbf16, #tpu.memory_space<vmem>>, vector<2x128xbf16>
    tpu.vector_store %arg17[%c0_46, %c0_47], %215 {strides = array<i32>} : memref<16x128xbf16, #tpu.memory_space<vmem>>, vector<2x128xbf16>,
    %217 = vector.extract_strided_slice %191 {offsets = [2, 0], sizes = [2, 512], strides = [1, 1]} : vector<16x512xf32> to vector<2x512xf32>
    %218 = arith.truncf %214 : vector<2x128xf32> to vector<2x128xbf16>
    %cst_48 = arith.constant dense<0.000000e+00> : vector<2x512xf32>
    %219 = tpu.matmul %218, %192, %cst_48 {dimension_numbers = #tpu.dot_dimension_numbers<[1], [0], [0], [1], [0, 0, 1, 1], [], []>} : vector<2x128xbf16>, vector<128x512xbf16>, vector<2x512xf32> -> vector<2x512xf32>
    %220 = arith.addf %217, %219 : vector<2x512xf32>
    %221 = vector.extract_strided_slice %220 {offsets = [0, 0], sizes = [2, 384], strides = [1, 1]} : vector<2x512xf32> to vector<2x384xf32>
    %222 = arith.negf %221 : vector<2x384xf32>
    %223 = math.exp %222 : vector<2x384xf32>
    %cst_49 = arith.constant 1.000000e+00 : f32
    %224 = vector.broadcast %cst_49 : f32 to vector<2x384xf32>
    %225 = arith.addf %224, %223 : vector<2x384xf32>
    %226 = arith.divf %224, %225 : vector<2x384xf32>
    %227 = vector.extract_strided_slice %226 {offsets = [0, 0], sizes = [2, 128], strides = [1, 1]} : vector<2x384xf32> to vector<2x128xf32>
    %228 = vector.extract_strided_slice %226 {offsets = [0, 128], sizes = [2, 128], strides = [1, 1]} : vector<2x384xf32> to vector<2x128xf32>
    %229 = vector.extract_strided_slice %226 {offsets = [0, 256], sizes = [2, 128], strides = [1, 1]} : vector<2x384xf32> to vector<2x128xf32>
    %230 = vector.extract_strided_slice %220 {offsets = [0, 384], sizes = [2, 128], strides = [1, 1]} : vector<2x512xf32> to vector<2x128xf32>
    %231 = math.tanh %230 : vector<2x128xf32>
    %232 = arith.mulf %228, %212 : vector<2x128xf32>
    %233 = arith.mulf %227, %231 : vector<2x128xf32>
    %234 = arith.addf %232, %233 : vector<2x128xf32>
    %235 = math.tanh %234 : vector<2x128xf32>
    %236 = arith.mulf %229, %235 : vector<2x128xf32>
    %237 = arith.truncf %236 : vector<2x128xf32> to vector<2x128xbf16>
    %c2_50 = arith.constant 2 : index
    %c0_51 = arith.constant 0 : index
    %238 = vector.load %arg17[%c2_50, %c0_51] : memref<16x128xbf16, #tpu.memory_space<vmem>>, vector<2x128xbf16>
    tpu.vector_store %arg17[%c2_50, %c0_51], %237 {strides = array<i32>} : memref<16x128xbf16, #tpu.memory_space<vmem>>, vector<2x128xbf16>,
    %239 = vector.extract_strided_slice %191 {offsets = [4, 0], sizes = [2, 512], strides = [1, 1]} : vector<16x512xf32> to vector<2x512xf32>
    %240 = arith.truncf %236 : vector<2x128xf32> to vector<2x128xbf16>
    %cst_52 = arith.constant dense<0.000000e+00> : vector<2x512xf32>
    %241 = tpu.matmul %240, %192, %cst_52 {dimension_numbers = #tpu.dot_dimension_numbers<[1], [0], [0], [1], [0, 0, 1, 1], [], []>} : vector<2x128xbf16>, vector<128x512xbf16>, vector<2x512xf32> -> vector<2x512xf32>
    %242 = arith.addf %239, %241 : vector<2x512xf32>
    %243 = vector.extract_strided_slice %242 {offsets = [0, 0], sizes = [2, 384], strides = [1, 1]} : vector<2x512xf32> to vector<2x384xf32>
    %244 = arith.negf %243 : vector<2x384xf32>
    %245 = math.exp %244 : vector<2x384xf32>
    %cst_53 = arith.constant 1.000000e+00 : f32
    %246 = vector.broadcast %cst_53 : f32 to vector<2x384xf32>
    %247 = arith.addf %246, %245 : vector<2x384xf32>
    %248 = arith.divf %246, %247 : vector<2x384xf32>
    %249 = vector.extract_strided_slice %248 {offsets = [0, 0], sizes = [2, 128], strides = [1, 1]} : vector<2x384xf32> to vector<2x128xf32>
    %250 = vector.extract_strided_slice %248 {offsets = [0, 128], sizes = [2, 128], strides = [1, 1]} : vector<2x384xf32> to vector<2x128xf32>
    %251 = vector.extract_strided_slice %248 {offsets = [0, 256], sizes = [2, 128], strides = [1, 1]} : vector<2x384xf32> to vector<2x128xf32>
    %252 = vector.extract_strided_slice %242 {offsets = [0, 384], sizes = [2, 128], strides = [1, 1]} : vector<2x512xf32> to vector<2x128xf32>
    %253 = math.tanh %252 : vector<2x128xf32>
    %254 = arith.mulf %250, %234 : vector<2x128xf32>
    %255 = arith.mulf %249, %253 : vector<2x128xf32>
    %256 = arith.addf %254, %255 : vector<2x128xf32>
    %257 = math.tanh %256 : vector<2x128xf32>
    %258 = arith.mulf %251, %257 : vector<2x128xf32>
    %259 = arith.truncf %258 : vector<2x128xf32> to vector<2x128xbf16>
    %c4_54 = arith.constant 4 : index
    %c0_55 = arith.constant 0 : index
    %260 = vector.load %arg17[%c4_54, %c0_55] : memref<16x128xbf16, #tpu.memory_space<vmem>>, vector<2x128xbf16>
    tpu.vector_store %arg17[%c4_54, %c0_55], %259 {strides = array<i32>} : memref<16x128xbf16, #tpu.memory_space<vmem>>, vector<2x128xbf16>,
    %261 = vector.extract_strided_slice %191 {offsets = [6, 0], sizes = [2, 512], strides = [1, 1]} : vector<16x512xf32> to vector<2x512xf32>
    %262 = arith.truncf %258 : vector<2x128xf32> to vector<2x128xbf16>
    %cst_56 = arith.constant dense<0.000000e+00> : vector<2x512xf32>
    %263 = tpu.matmul %262, %192, %cst_56 {dimension_numbers = #tpu.dot_dimension_numbers<[1], [0], [0], [1], [0, 0, 1, 1], [], []>} : vector<2x128xbf16>, vector<128x512xbf16>, vector<2x512xf32> -> vector<2x512xf32>
    %264 = arith.addf %261, %263 : vector<2x512xf32>
    %265 = vector.extract_strided_slice %264 {offsets = [0, 0], sizes = [2, 384], strides = [1, 1]} : vector<2x512xf32> to vector<2x384xf32>
    %266 = arith.negf %265 : vector<2x384xf32>
    %267 = math.exp %266 : vector<2x384xf32>
    %cst_57 = arith.constant 1.000000e+00 : f32
    %268 = vector.broadcast %cst_57 : f32 to vector<2x384xf32>
    %269 = arith.addf %268, %267 : vector<2x384xf32>
    %270 = arith.divf %268, %269 : vector<2x384xf32>
    %271 = vector.extract_strided_slice %270 {offsets = [0, 0], sizes = [2, 128], strides = [1, 1]} : vector<2x384xf32> to vector<2x128xf32>
    %272 = vector.extract_strided_slice %270 {offsets = [0, 128], sizes = [2, 128], strides = [1, 1]} : vector<2x384xf32> to vector<2x128xf32>
    %273 = vector.extract_strided_slice %270 {offsets = [0, 256], sizes = [2, 128], strides = [1, 1]} : vector<2x384xf32> to vector<2x128xf32>
    %274 = vector.extract_strided_slice %264 {offsets = [0, 384], sizes = [2, 128], strides = [1, 1]} : vector<2x512xf32> to vector<2x128xf32>
    %275 = math.tanh %274 : vector<2x128xf32>
    %276 = arith.mulf %272, %256 : vector<2x128xf32>
    %277 = arith.mulf %271, %275 : vector<2x128xf32>
    %278 = arith.addf %276, %277 : vector<2x128xf32>
    %279 = math.tanh %278 : vector<2x128xf32>
    %280 = arith.mulf %273, %279 : vector<2x128xf32>
    %281 = arith.truncf %280 : vector<2x128xf32> to vector<2x128xbf16>
    %c6_58 = arith.constant 6 : index
    %c0_59 = arith.constant 0 : index
    %282 = vector.load %arg17[%c6_58, %c0_59] : memref<16x128xbf16, #tpu.memory_space<vmem>>, vector<2x128xbf16>
    tpu.vector_store %arg17[%c6_58, %c0_59], %281 {strides = array<i32>} : memref<16x128xbf16, #tpu.memory_space<vmem>>, vector<2x128xbf16>,
    %283 = vector.extract_strided_slice %191 {offsets = [8, 0], sizes = [2, 512], strides = [1, 1]} : vector<16x512xf32> to vector<2x512xf32>
    %284 = arith.truncf %280 : vector<2x128xf32> to vector<2x128xbf16>
    %cst_60 = arith.constant dense<0.000000e+00> : vector<2x512xf32>
    %285 = tpu.matmul %284, %192, %cst_60 {dimension_numbers = #tpu.dot_dimension_numbers<[1], [0], [0], [1], [0, 0, 1, 1], [], []>} : vector<2x128xbf16>, vector<128x512xbf16>, vector<2x512xf32> -> vector<2x512xf32>
    %286 = arith.addf %283, %285 : vector<2x512xf32>
    %287 = vector.extract_strided_slice %286 {offsets = [0, 0], sizes = [2, 384], strides = [1, 1]} : vector<2x512xf32> to vector<2x384xf32>
    %288 = arith.negf %287 : vector<2x384xf32>
    %289 = math.exp %288 : vector<2x384xf32>
    %cst_61 = arith.constant 1.000000e+00 : f32
    %290 = vector.broadcast %cst_61 : f32 to vector<2x384xf32>
    %291 = arith.addf %290, %289 : vector<2x384xf32>
    %292 = arith.divf %290, %291 : vector<2x384xf32>
    %293 = vector.extract_strided_slice %292 {offsets = [0, 0], sizes = [2, 128], strides = [1, 1]} : vector<2x384xf32> to vector<2x128xf32>
    %294 = vector.extract_strided_slice %292 {offsets = [0, 128], sizes = [2, 128], strides = [1, 1]} : vector<2x384xf32> to vector<2x128xf32>
    %295 = vector.extract_strided_slice %292 {offsets = [0, 256], sizes = [2, 128], strides = [1, 1]} : vector<2x384xf32> to vector<2x128xf32>
    %296 = vector.extract_strided_slice %286 {offsets = [0, 384], sizes = [2, 128], strides = [1, 1]} : vector<2x512xf32> to vector<2x128xf32>
    %297 = math.tanh %296 : vector<2x128xf32>
    %298 = arith.mulf %294, %278 : vector<2x128xf32>
    %299 = arith.mulf %293, %297 : vector<2x128xf32>
    %300 = arith.addf %298, %299 : vector<2x128xf32>
    %301 = math.tanh %300 : vector<2x128xf32>
    %302 = arith.mulf %295, %301 : vector<2x128xf32>
    %303 = arith.truncf %302 : vector<2x128xf32> to vector<2x128xbf16>
    %c8_62 = arith.constant 8 : index
    %c0_63 = arith.constant 0 : index
    %304 = vector.load %arg17[%c8_62, %c0_63] : memref<16x128xbf16, #tpu.memory_space<vmem>>, vector<2x128xbf16>
    tpu.vector_store %arg17[%c8_62, %c0_63], %303 {strides = array<i32>} : memref<16x128xbf16, #tpu.memory_space<vmem>>, vector<2x128xbf16>,
    %305 = vector.extract_strided_slice %191 {offsets = [10, 0], sizes = [2, 512], strides = [1, 1]} : vector<16x512xf32> to vector<2x512xf32>
    %306 = arith.truncf %302 : vector<2x128xf32> to vector<2x128xbf16>
    %cst_64 = arith.constant dense<0.000000e+00> : vector<2x512xf32>
    %307 = tpu.matmul %306, %192, %cst_64 {dimension_numbers = #tpu.dot_dimension_numbers<[1], [0], [0], [1], [0, 0, 1, 1], [], []>} : vector<2x128xbf16>, vector<128x512xbf16>, vector<2x512xf32> -> vector<2x512xf32>
    %308 = arith.addf %305, %307 : vector<2x512xf32>
    %309 = vector.extract_strided_slice %308 {offsets = [0, 0], sizes = [2, 384], strides = [1, 1]} : vector<2x512xf32> to vector<2x384xf32>
    %310 = arith.negf %309 : vector<2x384xf32>
    %311 = math.exp %310 : vector<2x384xf32>
    %cst_65 = arith.constant 1.000000e+00 : f32
    %312 = vector.broadcast %cst_65 : f32 to vector<2x384xf32>
    %313 = arith.addf %312, %311 : vector<2x384xf32>
    %314 = arith.divf %312, %313 : vector<2x384xf32>
    %315 = vector.extract_strided_slice %314 {offsets = [0, 0], sizes = [2, 128], strides = [1, 1]} : vector<2x384xf32> to vector<2x128xf32>
    %316 = vector.extract_strided_slice %314 {offsets = [0, 128], sizes = [2, 128], strides = [1, 1]} : vector<2x384xf32> to vector<2x128xf32>
    %317 = vector.extract_strided_slice %314 {offsets = [0, 256], sizes = [2, 128], strides = [1, 1]} : vector<2x384xf32> to vector<2x128xf32>
    %318 = vector.extract_strided_slice %308 {offsets = [0, 384], sizes = [2, 128], strides = [1, 1]} : vector<2x512xf32> to vector<2x128xf32>
    %319 = math.tanh %318 : vector<2x128xf32>
    %320 = arith.mulf %316, %300 : vector<2x128xf32>
    %321 = arith.mulf %315, %319 : vector<2x128xf32>
    %322 = arith.addf %320, %321 : vector<2x128xf32>
    %323 = math.tanh %322 : vector<2x128xf32>
    %324 = arith.mulf %317, %323 : vector<2x128xf32>
    %325 = arith.truncf %324 : vector<2x128xf32> to vector<2x128xbf16>
    %c10_66 = arith.constant 10 : index
    %c0_67 = arith.constant 0 : index
    %326 = vector.load %arg17[%c10_66, %c0_67] : memref<16x128xbf16, #tpu.memory_space<vmem>>, vector<2x128xbf16>
    tpu.vector_store %arg17[%c10_66, %c0_67], %325 {strides = array<i32>} : memref<16x128xbf16, #tpu.memory_space<vmem>>, vector<2x128xbf16>,
    %327 = vector.extract_strided_slice %191 {offsets = [12, 0], sizes = [2, 512], strides = [1, 1]} : vector<16x512xf32> to vector<2x512xf32>
    %328 = arith.truncf %324 : vector<2x128xf32> to vector<2x128xbf16>
    %cst_68 = arith.constant dense<0.000000e+00> : vector<2x512xf32>
    %329 = tpu.matmul %328, %192, %cst_68 {dimension_numbers = #tpu.dot_dimension_numbers<[1], [0], [0], [1], [0, 0, 1, 1], [], []>} : vector<2x128xbf16>, vector<128x512xbf16>, vector<2x512xf32> -> vector<2x512xf32>
    %330 = arith.addf %327, %329 : vector<2x512xf32>
    %331 = vector.extract_strided_slice %330 {offsets = [0, 0], sizes = [2, 384], strides = [1, 1]} : vector<2x512xf32> to vector<2x384xf32>
    %332 = arith.negf %331 : vector<2x384xf32>
    %333 = math.exp %332 : vector<2x384xf32>
    %cst_69 = arith.constant 1.000000e+00 : f32
    %334 = vector.broadcast %cst_69 : f32 to vector<2x384xf32>
    %335 = arith.addf %334, %333 : vector<2x384xf32>
    %336 = arith.divf %334, %335 : vector<2x384xf32>
    %337 = vector.extract_strided_slice %336 {offsets = [0, 0], sizes = [2, 128], strides = [1, 1]} : vector<2x384xf32> to vector<2x128xf32>
    %338 = vector.extract_strided_slice %336 {offsets = [0, 128], sizes = [2, 128], strides = [1, 1]} : vector<2x384xf32> to vector<2x128xf32>
    %339 = vector.extract_strided_slice %336 {offsets = [0, 256], sizes = [2, 128], strides = [1, 1]} : vector<2x384xf32> to vector<2x128xf32>
    %340 = vector.extract_strided_slice %330 {offsets = [0, 384], sizes = [2, 128], strides = [1, 1]} : vector<2x512xf32> to vector<2x128xf32>
    %341 = math.tanh %340 : vector<2x128xf32>
    %342 = arith.mulf %338, %322 : vector<2x128xf32>
    %343 = arith.mulf %337, %341 : vector<2x128xf32>
    %344 = arith.addf %342, %343 : vector<2x128xf32>
    %345 = math.tanh %344 : vector<2x128xf32>
    %346 = arith.mulf %339, %345 : vector<2x128xf32>
    %347 = arith.truncf %346 : vector<2x128xf32> to vector<2x128xbf16>
    %c12_70 = arith.constant 12 : index
    %c0_71 = arith.constant 0 : index
    %348 = vector.load %arg17[%c12_70, %c0_71] : memref<16x128xbf16, #tpu.memory_space<vmem>>, vector<2x128xbf16>
    tpu.vector_store %arg17[%c12_70, %c0_71], %347 {strides = array<i32>} : memref<16x128xbf16, #tpu.memory_space<vmem>>, vector<2x128xbf16>,
    %349 = vector.extract_strided_slice %191 {offsets = [14, 0], sizes = [2, 512], strides = [1, 1]} : vector<16x512xf32> to vector<2x512xf32>
    %350 = arith.truncf %346 : vector<2x128xf32> to vector<2x128xbf16>
    %cst_72 = arith.constant dense<0.000000e+00> : vector<2x512xf32>
    %351 = tpu.matmul %350, %192, %cst_72 {dimension_numbers = #tpu.dot_dimension_numbers<[1], [0], [0], [1], [0, 0, 1, 1], [], []>} : vector<2x128xbf16>, vector<128x512xbf16>, vector<2x512xf32> -> vector<2x512xf32>
    %352 = arith.addf %349, %351 : vector<2x512xf32>
    %353 = vector.extract_strided_slice %352 {offsets = [0, 0], sizes = [2, 384], strides = [1, 1]} : vector<2x512xf32> to vector<2x384xf32>
    %354 = arith.negf %353 : vector<2x384xf32>
    %355 = math.exp %354 : vector<2x384xf32>
    %cst_73 = arith.constant 1.000000e+00 : f32
    %356 = vector.broadcast %cst_73 : f32 to vector<2x384xf32>
    %357 = arith.addf %356, %355 : vector<2x384xf32>
    %358 = arith.divf %356, %357 : vector<2x384xf32>
    %359 = vector.extract_strided_slice %358 {offsets = [0, 0], sizes = [2, 128], strides = [1, 1]} : vector<2x384xf32> to vector<2x128xf32>
    %360 = vector.extract_strided_slice %358 {offsets = [0, 128], sizes = [2, 128], strides = [1, 1]} : vector<2x384xf32> to vector<2x128xf32>
    %361 = vector.extract_strided_slice %358 {offsets = [0, 256], sizes = [2, 128], strides = [1, 1]} : vector<2x384xf32> to vector<2x128xf32>
    %362 = vector.extract_strided_slice %352 {offsets = [0, 384], sizes = [2, 128], strides = [1, 1]} : vector<2x512xf32> to vector<2x128xf32>
    %363 = math.tanh %362 : vector<2x128xf32>
    %364 = arith.mulf %360, %344 : vector<2x128xf32>
    %365 = arith.mulf %359, %363 : vector<2x128xf32>
    %366 = arith.addf %364, %365 : vector<2x128xf32>
    %367 = math.tanh %366 : vector<2x128xf32>
    %368 = arith.mulf %361, %367 : vector<2x128xf32>
    %369 = arith.truncf %368 : vector<2x128xf32> to vector<2x128xbf16>
    %c14_74 = arith.constant 14 : index
    %c0_75 = arith.constant 0 : index
    %370 = vector.load %arg17[%c14_74, %c0_75] : memref<16x128xbf16, #tpu.memory_space<vmem>>, vector<2x128xbf16>
    tpu.vector_store %arg17[%c14_74, %c0_75], %369 {strides = array<i32>} : memref<16x128xbf16, #tpu.memory_space<vmem>>, vector<2x128xbf16>,
    %c0_76 = arith.constant 0 : index
    %c0_77 = arith.constant 0 : index
    %371 = vector.load %arg12[%c0_76, %c0_77] : memref<16x16xbf16, #tpu.memory_space<vmem>>, vector<16x16xbf16>
    %c0_78 = arith.constant 0 : index
    %c0_79 = arith.constant 0 : index
    %372 = vector.load %arg17[%c0_78, %c0_79] : memref<16x128xbf16, #tpu.memory_space<vmem>>, vector<16x128xbf16>
    %cst_80 = arith.constant dense<0.000000e+00> : vector<16x128xf32>
    %373 = tpu.matmul %371, %372, %cst_80 {dimension_numbers = #tpu.dot_dimension_numbers<[1], [0], [0], [1], [0, 0, 1, 1], [], []>} : vector<16x16xbf16>, vector<16x128xbf16>, vector<16x128xf32> -> vector<16x128xf32>
    %374 = arith.truncf %373 : vector<16x128xf32> to vector<16x128xbf16>
    %c0_81 = arith.constant 0 : index
    %c1024 = arith.constant 1024 : index
    %375 = vector.load %arg15[%c0_81, %c1024] : memref<128x1792xbf16, #tpu.memory_space<vmem>>, vector<128x384xbf16>
    %cst_82 = arith.constant dense<0.000000e+00> : vector<16x384xf32>
    %376 = tpu.matmul %374, %375, %cst_82 {dimension_numbers = #tpu.dot_dimension_numbers<[1], [0], [0], [1], [0, 0, 1, 1], [], []>} : vector<16x128xbf16>, vector<128x384xbf16>, vector<16x384xf32> -> vector<16x384xf32>
    %c0_83 = arith.constant 0 : index
    %c0_84 = arith.constant 0 : index
    %377 = vector.load %arg6[%c0_83, %c0_84] : memref<1x384xf32, #tpu.memory_space<vmem>>, vector<1x384xf32>
    %378 = vector.broadcast %377 : vector<1x384xf32> to vector<16x384xf32>
    %379 = arith.addf %376, %378 : vector<16x384xf32>
    %380 = vector.extract_strided_slice %379 {offsets = [0, 0], sizes = [8, 128], strides = [1, 1]} : vector<16x384xf32> to vector<8x128xf32>
    %381 = vector.extract_strided_slice %379 {offsets = [8, 0], sizes = [8, 128], strides = [1, 1]} : vector<16x384xf32> to vector<8x128xf32>
    %382 = vector.extract_strided_slice %379 {offsets = [0, 128], sizes = [8, 128], strides = [1, 1]} : vector<16x384xf32> to vector<8x128xf32>
    %383 = vector.extract_strided_slice %379 {offsets = [8, 128], sizes = [8, 128], strides = [1, 1]} : vector<16x384xf32> to vector<8x128xf32>
    %384 = vector.extract_strided_slice %379 {offsets = [0, 256], sizes = [8, 128], strides = [1, 1]} : vector<16x384xf32> to vector<8x128xf32>
    %385 = vector.extract_strided_slice %379 {offsets = [8, 256], sizes = [8, 128], strides = [1, 1]} : vector<16x384xf32> to vector<8x128xf32>
    %386 = arith.mulf %380, %382 : vector<8x128xf32>
    %387 = arith.mulf %380, %383 : vector<8x128xf32>
    %388 = arith.mulf %381, %382 : vector<8x128xf32>
    %389 = arith.mulf %381, %383 : vector<8x128xf32>
    %390 = tpu.concatenate %386, %387, %388, %389 in 0 : vector<8x128xf32>, vector<8x128xf32>, vector<8x128xf32>, vector<8x128xf32> -> vector<32x128xf32>
    %391 = arith.truncf %390 : vector<32x128xf32> to vector<32x128xbf16>
    %c0_85 = arith.constant 0 : index
    %c0_86 = arith.constant 0 : index
    %392 = vector.load %arg10[%c0_85, %c0_86] : memref<128x4xbf16, #tpu.memory_space<vmem>>, vector<128x4xbf16>
    %cst_87 = arith.constant dense<0.000000e+00> : vector<32x4xf32>
    %393 = tpu.matmul %391, %392, %cst_87 {dimension_numbers = #tpu.dot_dimension_numbers<[1], [0], [0], [1], [0, 0, 1, 1], [], []>} : vector<32x128xbf16>, vector<128x4xbf16>, vector<32x4xf32> -> vector<32x4xf32>
    %394 = vector.extract_strided_slice %393 {offsets = [0, 0], sizes = [8, 4], strides = [1, 1]} : vector<32x4xf32> to vector<8x4xf32>
    %395 = vector.extract_strided_slice %393 {offsets = [8, 0], sizes = [8, 4], strides = [1, 1]} : vector<32x4xf32> to vector<8x4xf32>
    %396 = vector.extract_strided_slice %393 {offsets = [16, 0], sizes = [8, 4], strides = [1, 1]} : vector<32x4xf32> to vector<8x4xf32>
    %397 = vector.extract_strided_slice %393 {offsets = [24, 0], sizes = [8, 4], strides = [1, 1]} : vector<32x4xf32> to vector<8x4xf32>
    %398 = arith.subf %394, %395 : vector<8x4xf32>
    %399 = arith.negf %398 : vector<8x4xf32>
    %400 = math.exp %399 : vector<8x4xf32>
    %cst_88 = arith.constant 1.000000e+00 : f32
    %401 = vector.broadcast %cst_88 : f32 to vector<8x4xf32>
    %402 = arith.addf %401, %400 : vector<8x4xf32>
    %403 = arith.divf %401, %402 : vector<8x4xf32>
    %cst_89 = arith.constant 1.000000e+00 : f32
    %404 = vector.broadcast %cst_89 : f32 to vector<8x4xf32>
    %405 = arith.subf %404, %403 : vector<8x4xf32>
    %406 = arith.subf %396, %397 : vector<8x4xf32>
    %407 = arith.negf %406 : vector<8x4xf32>
    %408 = math.exp %407 : vector<8x4xf32>
    %cst_90 = arith.constant 1.000000e+00 : f32
    %409 = vector.broadcast %cst_90 : f32 to vector<8x4xf32>
    %410 = arith.addf %409, %408 : vector<8x4xf32>
    %411 = arith.divf %409, %410 : vector<8x4xf32>
    %cst_91 = arith.constant 1.000000e+00 : f32
    %412 = vector.broadcast %cst_91 : f32 to vector<8x4xf32>
    %413 = arith.subf %412, %411 : vector<8x4xf32>
    %414 = tpu.concatenate %403, %405, %411, %413 in 0 : vector<8x4xf32>, vector<8x4xf32>, vector<8x4xf32>, vector<8x4xf32> -> vector<32x4xf32>
    %415 = arith.truncf %414 : vector<32x4xf32> to vector<32x4xbf16>
    %c0_92 = arith.constant 0 : index
    %c0_93 = arith.constant 0 : index
    %416 = vector.load %arg11[%c0_92, %c0_93] : memref<4x128xbf16, #tpu.memory_space<vmem>>, vector<4x128xbf16>
    %cst_94 = arith.constant dense<0.000000e+00> : vector<32x128xf32>
    %417 = tpu.matmul %415, %416, %cst_94 {dimension_numbers = #tpu.dot_dimension_numbers<[1], [0], [0], [1], [0, 0, 1, 1], [], []>} : vector<32x4xbf16>, vector<4x128xbf16>, vector<32x128xf32> -> vector<32x128xf32>
    %418 = vector.extract_strided_slice %417 {offsets = [0, 0], sizes = [8, 128], strides = [1, 1]} : vector<32x128xf32> to vector<8x128xf32>
    %419 = arith.mulf %418, %384 : vector<8x128xf32>
    %420 = vector.extract_strided_slice %417 {offsets = [8, 0], sizes = [8, 128], strides = [1, 1]} : vector<32x128xf32> to vector<8x128xf32>
    %421 = arith.mulf %420, %385 : vector<8x128xf32>
    %422 = arith.addf %419, %421 : vector<8x128xf32>
    %423 = vector.extract_strided_slice %417 {offsets = [16, 0], sizes = [8, 128], strides = [1, 1]} : vector<32x128xf32> to vector<8x128xf32>
    %424 = arith.mulf %423, %384 : vector<8x128xf32>
    %425 = vector.extract_strided_slice %417 {offsets = [24, 0], sizes = [8, 128], strides = [1, 1]} : vector<32x128xf32> to vector<8x128xf32>
    %426 = arith.mulf %425, %385 : vector<8x128xf32>
    %427 = arith.addf %424, %426 : vector<8x128xf32>
    %428 = tpu.concatenate %422, %427 in 0 : vector<8x128xf32>, vector<8x128xf32> -> vector<16x128xf32>
    %429 = arith.truncf %428 : vector<16x128xf32> to vector<16x128xbf16>
    %c0_95 = arith.constant 0 : index
    %c1408 = arith.constant 1408 : index
    %430 = vector.load %arg15[%c0_95, %c1408] : memref<128x1792xbf16, #tpu.memory_space<vmem>>, vector<128x128xbf16>
    %cst_96 = arith.constant dense<0.000000e+00> : vector<16x128xf32>
    %431 = tpu.matmul %429, %430, %cst_96 {dimension_numbers = #tpu.dot_dimension_numbers<[1], [0], [0], [1], [0, 0, 1, 1], [], []>} : vector<16x128xbf16>, vector<128x128xbf16>, vector<16x128xf32> -> vector<16x128xf32>
    %c0_97 = arith.constant 0 : index
    %c0_98 = arith.constant 0 : index
    %432 = vector.load %arg7[%c0_97, %c0_98] : memref<1x128xf32, #tpu.memory_space<vmem>>, vector<1x128xf32>
    %433 = vector.broadcast %432 : vector<1x128xf32> to vector<16x128xf32>
    %434 = arith.addf %431, %433 : vector<16x128xf32>
    %435 = arith.addf %373, %434 : vector<16x128xf32>
    %c0_99 = arith.constant 0 : index
    %c0_100 = arith.constant 0 : index
    %436 = vector.load %arg13[%c0_99, %c0_100] : memref<2x16xbf16, #tpu.memory_space<vmem>>, vector<2x16xbf16>
    %437 = arith.truncf %435 : vector<16x128xf32> to vector<16x128xbf16>
    %cst_101 = arith.constant dense<0.000000e+00> : vector<2x128xf32>
    %438 = tpu.matmul %436, %437, %cst_101 {dimension_numbers = #tpu.dot_dimension_numbers<[1], [0], [0], [1], [0, 0, 1, 1], [], []>} : vector<2x16xbf16>, vector<16x128xbf16>, vector<2x128xf32> -> vector<2x128xf32>
    %439 = arith.truncf %438 : vector<2x128xf32> to vector<2x128xbf16>
    %c0_102 = arith.constant 0 : index
    %c1536 = arith.constant 1536 : index
    %440 = vector.load %arg15[%c0_102, %c1536] : memref<128x1792xbf16, #tpu.memory_space<vmem>>, vector<128x128xbf16>
    %cst_103 = arith.constant dense<0.000000e+00> : vector<2x128xf32>
    %441 = tpu.matmul %439, %440, %cst_103 {dimension_numbers = #tpu.dot_dimension_numbers<[1], [0], [0], [1], [0, 0, 1, 1], [], []>} : vector<2x128xbf16>, vector<128x128xbf16>, vector<2x128xf32> -> vector<2x128xf32>
    %c0_104 = arith.constant 0 : index
    %c0_105 = arith.constant 0 : index
    %442 = vector.load %arg8[%c0_104, %c0_105] : memref<1x128xf32, #tpu.memory_space<vmem>>, vector<1x128xf32>
    %443 = vector.broadcast %442 : vector<1x128xf32> to vector<2x128xf32>
    %444 = arith.addf %441, %443 : vector<2x128xf32>
    %cst_106 = arith.constant 0.000000e+00 : f32
    %445 = vector.broadcast %cst_106 : f32 to vector<2x128xf32>
    %446 = arith.maximumf %444, %445 : vector<2x128xf32>
    %447 = arith.truncf %446 : vector<2x128xf32> to vector<2x128xbf16>
    %c0_107 = arith.constant 0 : index
    %c1664 = arith.constant 1664 : index
    %448 = vector.load %arg15[%c0_107, %c1664] : memref<128x1792xbf16, #tpu.memory_space<vmem>>, vector<128x128xbf16>
    %cst_108 = arith.constant dense<0.000000e+00> : vector<2x128xf32>
    %449 = tpu.matmul %447, %448, %cst_108 {dimension_numbers = #tpu.dot_dimension_numbers<[1], [0], [0], [1], [0, 0, 1, 1], [], []>} : vector<2x128xbf16>, vector<128x128xbf16>, vector<2x128xf32> -> vector<2x128xf32>
    %c0_109 = arith.constant 0 : index
    %c0_110 = arith.constant 0 : index
    %450 = vector.load %arg9[%c0_109, %c0_110] : memref<1x128xf32, #tpu.memory_space<vmem>>, vector<1x128xf32>
    %451 = vector.broadcast %450 : vector<1x128xf32> to vector<2x128xf32>
    %452 = arith.addf %449, %451 : vector<2x128xf32>
    %453 = arith.negf %452 : vector<2x128xf32>
    %454 = math.exp %453 : vector<2x128xf32>
    %cst_111 = arith.constant 1.000000e+00 : f32
    %455 = vector.broadcast %cst_111 : f32 to vector<2x128xf32>
    %456 = arith.addf %455, %454 : vector<2x128xf32>
    %457 = arith.divf %455, %456 : vector<2x128xf32>
    %458 = tpu.iota {dimensions = array<i32: 1>} : vector<2x128xi32>
    %c50_i32 = arith.constant 50 : i32
    %459 = vector.broadcast %c50_i32 : i32 to vector<2x128xi32>
    %460 = arith.cmpi eq, %458, %459 : vector<2x128xi32>
    %461 = arith.select %460, %457, %452 : vector<2x128xi1>, vector<2x128xf32>
    %c0_112 = arith.constant 0 : index
    %c0_113 = arith.constant 0 : index
    %462 = vector.load %arg14[%c0_112, %c0_113] : memref<2x128xf32, #tpu.memory_space<vmem>>, vector<2x128xf32>
    tpu.vector_store %arg14[%c0_112, %c0_113], %461 {strides = array<i32>} : memref<2x128xf32, #tpu.memory_space<vmem>>, vector<2x128xf32>,
    return
  }
}

</mosaic_0001>

<llo_original>
// kernel: forward.1
$region0: #{forward.1}
  #allocation0 [shape = 'u32[]', space=smem, size = 0x4, offset = 0x4, fixed_abs, tag = 'smem constant byte address 0x4 - core index']
  #allocation1 [shape = 'u32[144,128]{1,0:T(1,128)}', space=vmem, size = 0x12000, scoped, tag = 'internal scratch']
  #allocation2 [shape = 'bf16[128,1792]{1,0:T(16,128)(2,1)}', space=vmem, size = 0x70000, scoped, tag = 'scratch operand']
  #allocation3 [shape = 'bf16[16,128]{1,0:T(16,128)(2,1)}', space=vmem, size = 0x1000, scoped, tag = 'scratch operand']
  #allocation4 [shape = 'bf16[16,128]{1,0:T(16,128)(2,1)}', space=vmem, size = 0x1000, scoped, tag = 'scratch operand']
  #allocation5 [shape = 's32[1]{0}', space=sflag, size = 0x4, scoped, tag = 'scratch operand']
  #allocation8 [shape = 's32[]', space=sflag, size = 0x4, offset = 0, fixed_abs, tag = 'sflag constant byte address 0x0 - dummy sync flag']
  %s0 = inlined_call_operand.vmem [shape: f32[16,16], index: 0, kind: input, shape index: {}]
  %s1 = inlined_call_operand.vmem [shape: bf16[16,512], index: 1, kind: input, shape index: {}]
  %s2 = inlined_call_operand.hbm [shape: bf16[128,512], index: 2, kind: input, shape index: {}]
  %s3 = inlined_call_operand.vmem [shape: f32[1,512], index: 3, kind: input, shape index: {}]
  %s4 = inlined_call_operand.hbm [shape: bf16[128,1792], index: 4, kind: input, shape index: {}]
  %s5 = inlined_call_operand.vmem [shape: f32[1,512], index: 5, kind: input, shape index: {}]
  %s6 = inlined_call_operand.vmem [shape: f32[1,384], index: 6, kind: input, shape index: {}]
  %s7 = inlined_call_operand.vmem [shape: f32[1,128], index: 7, kind: input, shape index: {}]
  %s8 = inlined_call_operand.vmem [shape: f32[1,128], index: 8, kind: input, shape index: {}]
  %s9 = inlined_call_operand.vmem [shape: f32[1,128], index: 9, kind: input, shape index: {}]
  %s10 = inlined_call_operand.vmem [shape: bf16[128,4], index: 10, kind: input, shape index: {}]
  %s11 = inlined_call_operand.vmem [shape: bf16[4,128], index: 11, kind: input, shape index: {}]
  %s12 = inlined_call_operand.vmem [shape: bf16[16,16], index: 12, kind: input, shape index: {}]
  %s13 = inlined_call_operand.vmem [shape: bf16[2,16], index: 13, kind: input, shape index: {}]
  %s14 = inlined_call_operand.vmem [shape: f32[2,128], index: 14, kind: output, shape index: {}]
  %s15 = sld [smem:[#allocation0]]
  $region66: #{forward.1} parent=0
    _
  %s17 = ssub.s32 1, %s15
  %s18 = scalar_select 0, %s17, %s15
  $region1: #{forward.1} parent=0
    #allocation6 [shape = 'u8[131072]{0}', space=vmem, size = 0x20000, scoped, tag = 'input window, operand 2, single buffered']
    #allocation7 [shape = 's32[1]{0}', space=sflag, size = 0x4, scoped, tag = 'scoped memory for forward.1']
    #allocation9 [shape = 'u32[9]{0}', space=smem, size = 0x24, scoped, tag = 'DMA stride descriptor']
    %19 = vsyncpa [#allocation7], 0
    // Predicated region
    $region2: #{forward.1} parent=1 // pred_check
      _
    $region3: #{forward.1} parent=1 // pred_check_branch
      %21 = sbr.rel (0) target = $region5
    $region4: #{forward.1} parent=1 // pred_region
      _
    $region5: #{forward.1} parent=1 // pred_fallthru
      _
    // Predicated region
    $region6: #{forward.1} parent=1 // pred_check
      _
    $region7: #{forward.1} parent=1 // pred_check_branch
      %23 = sbr.rel (0) target = $region9
    $region8: #{forward.1} parent=1 // pred_region
      _
    $region9: #{forward.1} parent=1 // pred_fallthru
      _
    // Predicated region
    $region10: #{forward.1} parent=1 // pred_check
      _
    $region11: #{forward.1} parent=1 // pred_check_branch
      %25 = sbr.rel (0) target = $region13
    $region12: #{forward.1} parent=1 // pred_region
      %s27 = ssub.s32 4096, 4096
      %28 = vsyncadd [#allocation7], %s27
      %s29 = sshll.u32 [#allocation6], 4
      %s30 = int_to_ptr.vmem [resolvable:$true] %s29
      %35 = dma.hbm_to_vmem [thread:$0]  %s2, 4096, %s30, [#allocation7], 256, 256, 16
    $region13: #{forward.1} parent=1 // pred_fallthru
      _
    // Predicated region
    $region14: #{forward.1} parent=1 // pred_check
      _
    $region15: #{forward.1} parent=1 // pred_check_branch
      %37 = sbr.rel (0) target = $region17
    $region16: #{forward.1} parent=1 // pred_region
      _
    $region17: #{forward.1} parent=1 // pred_fallthru
      _
    // Predicated region
    $region18: #{forward.1} parent=1 // pred_check
      _
    $region19: #{forward.1} parent=1 // pred_check_branch
      %39 = sbr.rel (0) target = $region21
    $region20: #{forward.1} parent=1 // pred_region
      _
    $region21: #{forward.1} parent=1 // pred_fallthru
      _
    // Predicated region
    $region22: #{forward.1} parent=1 // pred_check
      _
    $region23: #{forward.1} parent=1 // pred_check_branch
      %41 = sbr.rel (0) target = $region25
    $region24: #{forward.1} parent=1 // pred_region
      _
    $region25: #{forward.1} parent=1 // pred_fallthru
      _
    // Predicated region
    $region26: #{forward.1} parent=1 // pred_check
      _
    $region27: #{forward.1} parent=1 // pred_check_branch
      %43 = sbr.rel (0) target = $region29
    $region28: #{forward.1} parent=1 // pred_region
      _
    $region29: #{forward.1} parent=1 // pred_fallthru
      _
    // Predicated region
    $region30: #{forward.1} parent=1 // pred_check
      _
    $region31: #{forward.1} parent=1 // pred_check_branch
      %45 = sbr.rel (0) target = $region33
    $region32: #{forward.1} parent=1 // pred_region
      _
    $region33: #{forward.1} parent=1 // pred_fallthru
      _
    // Predicated region
    $region34: #{forward.1} parent=1 // pred_check
      _
    $region35: #{forward.1} parent=1 // pred_check_branch
      %47 = sbr.rel (0) target = $region37
    $region36: #{forward.1} parent=1 // pred_region
      _
    $region37: #{forward.1} parent=1 // pred_fallthru
      _
    // Predicated region
    $region38: #{forward.1} parent=1 // pred_check
      _
    $region39: #{forward.1} parent=1 // pred_check_branch
      %49 = sbr.rel (0) target = $region41
    $region40: #{forward.1} parent=1 // pred_region
      _
    $region41: #{forward.1} parent=1 // pred_fallthru
      _
    // Predicated region
    $region42: #{forward.1} parent=1 // pred_check
      _
    $region43: #{forward.1} parent=1 // pred_check_branch
      %51 = sbr.rel (0) target = $region45
    $region44: #{forward.1} parent=1 // pred_region
      _
    $region45: #{forward.1} parent=1 // pred_fallthru
      _
    // Predicated region
    $region46: #{forward.1} parent=1 // pred_check
      _
    $region47: #{forward.1} parent=1 // pred_check_branch
      %53 = sbr.rel (0) target = $region49
    $region48: #{forward.1} parent=1 // pred_region
      _
    $region49: #{forward.1} parent=1 // pred_fallthru
      _
    // Predicated region
    $region50: #{forward.1} parent=1 // pred_check
      _
    $region51: #{forward.1} parent=1 // pred_check_branch
      %55 = sbr.rel (0) target = $region53
    $region52: #{forward.1} parent=1 // pred_region
      _
    $region53: #{forward.1} parent=1 // pred_fallthru
      _
    // Predicated region
    $region54: #{forward.1} parent=1 // pred_check
      _
    $region55: #{forward.1} parent=1 // pred_check_branch
      %57 = sbr.rel (0) target = $region57
    $region56: #{forward.1} parent=1 // pred_region
      %58 = dma.done [#allocation7], 4096
    $region57: #{forward.1} parent=1 // pred_fallthru
      _
    %s61 = sshll.u32 1, 14
    %s62 = sxor.u32 4294967295, %s61
    %s64 = sld [smem:[#allocation0]]
    %s65 = sadd.s32 2, %s64
    %s67 = sshll.u32 7, 26
    %s68 = sxor.u32 4294967295, %s67
    %s69 = sand.u32 0, %s68
    %s70 = sshll.u32 %s65, 26
    %s71 = sor.u32 %s69, %s70
    %s72 = sshll.u32 [#allocation2], 4
    %s73 = int_to_ptr.vmem [resolvable:$true] %s72
    %76 = sst [smem:[#allocation9]] 1792
    %s77 = scalar_lea.smem [#allocation9], 1
    %78 = sst [smem:[%s77]] 1792
    %s79 = scalar_lea.smem [#allocation9], 2
    %80 = sst [smem:[%s79]] 14
    %s81 = scalar_lea.smem [#allocation9], 3
    %82 = sst [smem:[%s81]] 64
    %s83 = scalar_lea.smem [#allocation9], 4
    %84 = sst [smem:[%s83]] 128
    %s85 = scalar_lea.smem [#allocation9], 5
    %86 = sst [smem:[%s85]] 2
    %s87 = scalar_lea.smem [#allocation9], 6
    %88 = sst [smem:[%s87]] 896
    %s89 = scalar_lea.smem [#allocation9], 7
    %90 = sst [smem:[%s89]] 64
    %s91 = scalar_lea.smem [#allocation9], 8
    %92 = sst [smem:[%s91]] 4
    %94 = dma.general %s4, 14336, %s73, [#allocation5], [#allocation8], [#allocation9], %s71, 0
    %v95 = vld [vmem:[%s0] sm:$0xff]
    %v96 = vld [vmem:[%s0 + $0x8] sm:$0xff]
    %v97 = vpack.c.bf16 %v96, %v95
    %v98 = vld [vmem:[%s1] sm:$0xff]
    %v99 = vld [vmem:[%s1 + $0x8] sm:$0xff]
    %v100 = vld [vmem:[%s1 + $0x10] sm:$0xff]
    %v101 = vld [vmem:[%s1 + $0x18] sm:$0xff]
    %v102 = vld [vmem:[%s3] sm:$0xf]
    %v104 = vlaneseq
    %v105 = vshrl.u32 %v104, 7
    %v106 = vsub.s32 0, %v105
    %v107 = vrot.slane %v102, %v106
    %v108 = vlaneseq
    %v109 = vshrl.u32 %v108, 7
    %v110 = vsub.s32 1, %v109
    %v111 = vrot.slane %v102, %v110
    %v112 = vlaneseq
    %v113 = vshrl.u32 %v112, 7
    %v114 = vsub.s32 2, %v113
    %v115 = vrot.slane %v102, %v114
    %v116 = vlaneseq
    %v117 = vshrl.u32 %v116, 7
    %v118 = vsub.s32 3, %v117
    %v119 = vrot.slane %v102, %v118
    %v128 = vunpack.c.l.b16 %v98
    %v129 = vunpack.c.h.b16 %v98
    %v130 = vunpack.c.l.b16 %v99
    %v131 = vunpack.c.h.b16 %v99
    %v132 = vunpack.c.l.b16 %v100
    %v133 = vunpack.c.h.b16 %v100
    %v134 = vunpack.c.l.b16 %v101
    %v135 = vunpack.c.h.b16 %v101
    %v136 = vpack.c.b16 %v132, %v128
    %v137 = vpack.c.b16 %v133, %v129
    %v138 = vpack.c.b16 %v134, %v130
    %v139 = vpack.c.b16 %v135, %v131
    %vm144 = vcmask 130048
    %v146 = vsel %vm144, %v97, 0
    %148 = vmatprep.subr.bf16.mxu0 %v137
    %149 = vmatpush1.bf16.msra.mxu0 %v136
    %150 = vmatprep.subr.bf16.mxu0 0
    %151 = vmatpush1.bf16.msra.mxu0 0
    %152 = vmatprep.subr.bf16.mxu0 0
    %153 = vmatpush1.bf16.msra.mxu0 0
    %154 = vmatprep.subr.bf16.mxu0 0
    %155 = vmatpush1.bf16.msra.mxu0 0
    %156 = vmatprep.subr.bf16.mxu0 0
    %157 = vmatpush1.bf16.msra.mxu0 0
    %158 = vmatprep.subr.bf16.mxu0 0
    %159 = vmatpush1.bf16.msra.mxu0 0
    %160 = vmatprep.subr.bf16.mxu0 0
    %161 = vmatpush1.bf16.msra.mxu0 0
    %162 = vmatprep.subr.bf16.mxu0 0
    %163 = vmatpush1.bf16.msra.mxu0 0
    %164 = vmatprep.subr.bf16.mxu0 0
    %165 = vmatpush1.bf16.msra.mxu0 0
    %166 = vmatprep.subr.bf16.mxu0 0
    %167 = vmatpush1.bf16.msra.mxu0 0
    %168 = vmatprep.subr.bf16.mxu0 0
    %169 = vmatpush1.bf16.msra.mxu0 0
    %170 = vmatprep.subr.bf16.mxu0 0
    %171 = vmatpush1.bf16.msra.mxu0 0
    %172 = vmatprep.subr.bf16.mxu0 0
    %173 = vmatpush1.bf16.msra.mxu0 0
    %174 = vmatprep.subr.bf16.mxu0 0
    %175 = vmatpush1.bf16.msra.mxu0 0
    %176 = vmatprep.subr.bf16.mxu0 0
    %177 = vmatpush1.bf16.msra.mxu0 0
    %178 = vmatprep.subr.bf16.mxu0 0
    %179 = vmatpush1.bf16.msra.mxu0 0
    %180 = vmatprep.mubr.bf16.mxu0 0
    %181 = vmatmul.mubr.bf16.gmra.mrb[0].mxu0 %v146
    %v182 = vpop.f32.mrb[0].mxu0
    %v183 = vadd.f32 %v107, %v182
    %v184 = vpop.f32.mrb[0].mxu0
    %v185 = vadd.f32 %v111, %v184
    %v186 = vpop.f32.mrb[0].mxu0
    %v187 = vadd.f32 %v107, %v186
    %v188 = vpop.f32.mrb[0].mxu0
    %v189 = vadd.f32 %v111, %v188
    %190 = vdwg.mxu0
    %191 = vmatprep.subr.bf16.mxu0 %v139
    %192 = vmatpush1.bf16.msra.mxu0 %v138
    %193 = vmatprep.subr.bf16.mxu0 0
    %194 = vmatpush1.bf16.msra.mxu0 0
    %195 = vmatprep.subr.bf16.mxu0 0
    %196 = vmatpush1.bf16.msra.mxu0 0
    %197 = vmatprep.subr.bf16.mxu0 0
    %198 = vmatpush1.bf16.msra.mxu0 0
    %199 = vmatprep.subr.bf16.mxu0 0
    %200 = vmatpush1.bf16.msra.mxu0 0
    %201 = vmatprep.subr.bf16.mxu0 0
    %202 = vmatpush1.bf16.msra.mxu0 0
    %203 = vmatprep.subr.bf16.mxu0 0
    %204 = vmatpush1.bf16.msra.mxu0 0
    %205 = vmatprep.subr.bf16.mxu0 0
    %206 = vmatpush1.bf16.msra.mxu0 0
    %207 = vmatprep.subr.bf16.mxu0 0
    %208 = vmatpush1.bf16.msra.mxu0 0
    %209 = vmatprep.subr.bf16.mxu0 0
    %210 = vmatpush1.bf16.msra.mxu0 0
    %211 = vmatprep.subr.bf16.mxu0 0
    %212 = vmatpush1.bf16.msra.mxu0 0
    %213 = vmatprep.subr.bf16.mxu0 0
    %214 = vmatpush1.bf16.msra.mxu0 0
    %215 = vmatprep.subr.bf16.mxu0 0
    %216 = vmatpush1.bf16.msra.mxu0 0
    %217 = vmatprep.subr.bf16.mxu0 0
    %218 = vmatpush1.bf16.msra.mxu0 0
    %219 = vmatprep.subr.bf16.mxu0 0
    %220 = vmatpush1.bf16.msra.mxu0 0
    %221 = vmatprep.subr.bf16.mxu0 0
    %222 = vmatpush1.bf16.msra.mxu0 0
    %223 = vmatprep.mubr.bf16.mxu0 0
    %224 = vmatmul.mubr.bf16.gmra.mrb[0].mxu0 %v146
    %v225 = vpop.f32.mrb[0].mxu0
    %v226 = vadd.f32 %v115, %v225
    %v227 = vpop.f32.mrb[0].mxu0
    %v228 = vadd.f32 %v119, %v227
    %v229 = vpop.f32.mrb[0].mxu0
    %v230 = vadd.f32 %v115, %v229
    %v231 = vpop.f32.mrb[0].mxu0
    %v232 = vadd.f32 %v119, %v231
    %233 = vdwg.mxu0
    %v234 = vld [vmem:[#allocation6] sm:$0xff]
    %v235 = vld [vmem:[#allocation6 + $0x8] sm:$0xff]
    %v236 = vld [vmem:[#allocation6 + $0x10] sm:$0xff]
    %v237 = vld [vmem:[#allocation6 + $0x18] sm:$0xff]
    %v238 = vld [vmem:[#allocation6 + $0x20] sm:$0xff]
    %v239 = vld [vmem:[#allocation6 + $0x28] sm:$0xff]
    %v240 = vld [vmem:[#allocation6 + $0x30] sm:$0xff]
    %v241 = vld [vmem:[#allocation6 + $0x38] sm:$0xff]
    %v242 = vld [vmem:[#allocation6 + $0x40] sm:$0xff]
    %v243 = vld [vmem:[#allocation6 + $0x48] sm:$0xff]
    %v244 = vld [vmem:[#allocation6 + $0x50] sm:$0xff]
    %v245 = vld [vmem:[#allocation6 + $0x58] sm:$0xff]
    %v246 = vld [vmem:[#allocation6 + $0x60] sm:$0xff]
    %v247 = vld [vmem:[#allocation6 + $0x68] sm:$0xff]
    %v248 = vld [vmem:[#allocation6 + $0x70] sm:$0xff]
    %v249 = vld [vmem:[#allocation6 + $0x78] sm:$0xff]
    %v250 = vld [vmem:[#allocation6 + $0x80] sm:$0xff]
    %v251 = vld [vmem:[#allocation6 + $0x88] sm:$0xff]
    %v252 = vld [vmem:[#allocation6 + $0x90] sm:$0xff]
    %v253 = vld [vmem:[#allocation6 + $0x98] sm:$0xff]
    %v254 = vld [vmem:[#allocation6 + $0xa0] sm:$0xff]
    %v255 = vld [vmem:[#allocation6 + $0xa8] sm:$0xff]
    %v256 = vld [vmem:[#allocation6 + $0xb0] sm:$0xff]
    %v257 = vld [vmem:[#allocation6 + $0xb8] sm:$0xff]
    %v258 = vld [vmem:[#allocation6 + $0xc0] sm:$0xff]
    %v259 = vld [vmem:[#allocation6 + $0xc8] sm:$0xff]
    %v260 = vld [vmem:[#allocation6 + $0xd0] sm:$0xff]
    %v261 = vld [vmem:[#allocation6 + $0xd8] sm:$0xff]
    %v262 = vld [vmem:[#allocation6 + $0xe0] sm:$0xff]
    %v263 = vld [vmem:[#allocation6 + $0xe8] sm:$0xff]
    %v264 = vld [vmem:[#allocation6 + $0xf0] sm:$0xff]
    %v265 = vld [vmem:[#allocation6 + $0xf8] sm:$0xff]
    %v298 = vunpack.c.l.b16 %v234
    %v299 = vunpack.c.h.b16 %v234
    %v300 = vunpack.c.l.b16 %v235
    %v301 = vunpack.c.h.b16 %v235
    %v302 = vunpack.c.l.b16 %v236
    %v303 = vunpack.c.h.b16 %v236
    %v304 = vunpack.c.l.b16 %v237
    %v305 = vunpack.c.h.b16 %v237
    %v306 = vunpack.c.l.b16 %v238
    %v307 = vunpack.c.h.b16 %v238
    %v308 = vunpack.c.l.b16 %v239
    %v309 = vunpack.c.h.b16 %v239
    %v310 = vunpack.c.l.b16 %v240
    %v311 = vunpack.c.h.b16 %v240
    %v312 = vunpack.c.l.b16 %v241
    %v313 = vunpack.c.h.b16 %v241
    %v314 = vunpack.c.l.b16 %v242
    %v315 = vunpack.c.h.b16 %v242
    %v316 = vunpack.c.l.b16 %v243
    %v317 = vunpack.c.h.b16 %v243
    %v318 = vunpack.c.l.b16 %v244
    %v319 = vunpack.c.h.b16 %v244
    %v320 = vunpack.c.l.b16 %v245
    %v321 = vunpack.c.h.b16 %v245
    %v322 = vunpack.c.l.b16 %v246
    %v323 = vunpack.c.h.b16 %v246
    %v324 = vunpack.c.l.b16 %v247
    %v325 = vunpack.c.h.b16 %v247
    %v326 = vunpack.c.l.b16 %v248
    %v327 = vunpack.c.h.b16 %v248
    %v328 = vunpack.c.l.b16 %v249
    %v329 = vunpack.c.h.b16 %v249
    %v330 = vunpack.c.l.b16 %v250
    %v331 = vunpack.c.h.b16 %v250
    %v332 = vunpack.c.l.b16 %v251
    %v333 = vunpack.c.h.b16 %v251
    %v334 = vunpack.c.l.b16 %v252
    %v335 = vunpack.c.h.b16 %v252
    %v336 = vunpack.c.l.b16 %v253
    %v337 = vunpack.c.h.b16 %v253
    %v338 = vunpack.c.l.b16 %v254
    %v339 = vunpack.c.h.b16 %v254
    %v340 = vunpack.c.l.b16 %v255
    %v341 = vunpack.c.h.b16 %v255
    %v342 = vunpack.c.l.b16 %v256
    %v343 = vunpack.c.h.b16 %v256
    %v344 = vunpack.c.l.b16 %v257
    %v345 = vunpack.c.h.b16 %v257
    %v346 = vunpack.c.l.b16 %v258
    %v347 = vunpack.c.h.b16 %v258
    %v348 = vunpack.c.l.b16 %v259
    %v349 = vunpack.c.h.b16 %v259
    %v350 = vunpack.c.l.b16 %v260
    %v351 = vunpack.c.h.b16 %v260
    %v352 = vunpack.c.l.b16 %v261
    %v353 = vunpack.c.h.b16 %v261
    %v354 = vunpack.c.l.b16 %v262
    %v355 = vunpack.c.h.b16 %v262
    %v356 = vunpack.c.l.b16 %v263
    %v357 = vunpack.c.h.b16 %v263
    %v358 = vunpack.c.l.b16 %v264
    %v359 = vunpack.c.h.b16 %v264
    %v360 = vunpack.c.l.b16 %v265
    %v361 = vunpack.c.h.b16 %v265
    %v362 = vpack.c.b16 %v302, %v298
    %v363 = vpack.c.b16 %v303, %v299
    %v364 = vpack.c.b16 %v304, %v300
    %v365 = vpack.c.b16 %v305, %v301
    %v366 = vpack.c.b16 %v310, %v306
    %v367 = vpack.c.b16 %v311, %v307
    %v368 = vpack.c.b16 %v312, %v308
    %v369 = vpack.c.b16 %v313, %v309
    %v370 = vpack.c.b16 %v318, %v314
    %v371 = vpack.c.b16 %v319, %v315
    %v372 = vpack.c.b16 %v320, %v316
    %v373 = vpack.c.b16 %v321, %v317
    %v374 = vpack.c.b16 %v326, %v322
    %v375 = vpack.c.b16 %v327, %v323
    %v376 = vpack.c.b16 %v328, %v324
    %v377 = vpack.c.b16 %v329, %v325
    %v378 = vpack.c.b16 %v334, %v330
    %v379 = vpack.c.b16 %v335, %v331
    %v380 = vpack.c.b16 %v336, %v332
    %v381 = vpack.c.b16 %v337, %v333
    %v382 = vpack.c.b16 %v342, %v338
    %v383 = vpack.c.b16 %v343, %v339
    %v384 = vpack.c.b16 %v344, %v340
    %v385 = vpack.c.b16 %v345, %v341
    %v386 = vpack.c.b16 %v350, %v346
    %v387 = vpack.c.b16 %v351, %v347
    %v388 = vpack.c.b16 %v352, %v348
    %v389 = vpack.c.b16 %v353, %v349
    %v390 = vpack.c.b16 %v358, %v354
    %v391 = vpack.c.b16 %v359, %v355
    %v392 = vpack.c.b16 %v360, %v356
    %v393 = vpack.c.b16 %v361, %v357
    %426 = vmatprep.subr.bf16.mxu0 %v363
    %427 = vmatpush1.bf16.msra.mxu0 %v362
    %428 = vmatprep.subr.bf16.mxu0 %v367
    %429 = vmatpush1.bf16.msra.mxu0 %v366
    %430 = vmatprep.subr.bf16.mxu0 %v371
    %431 = vmatpush1.bf16.msra.mxu0 %v370
    %432 = vmatprep.subr.bf16.mxu0 %v375
    %433 = vmatpush1.bf16.msra.mxu0 %v374
    %434 = vmatprep.subr.bf16.mxu0 %v379
    %435 = vmatpush1.bf16.msra.mxu0 %v378
    %436 = vmatprep.subr.bf16.mxu0 %v383
    %437 = vmatpush1.bf16.msra.mxu0 %v382
    %438 = vmatprep.subr.bf16.mxu0 %v387
    %439 = vmatpush1.bf16.msra.mxu0 %v386
    %440 = vmatprep.subr.bf16.mxu0 %v391
    %441 = vmatpush1.bf16.msra.mxu0 %v390
    %442 = vmatprep.subr.bf16.mxu0 0
    %443 = vmatpush1.bf16.msra.mxu0 0
    %444 = vmatprep.subr.bf16.mxu0 0
    %445 = vmatpush1.bf16.msra.mxu0 0
    %446 = vmatprep.subr.bf16.mxu0 0
    %447 = vmatpush1.bf16.msra.mxu0 0
    %448 = vmatprep.subr.bf16.mxu0 0
    %449 = vmatpush1.bf16.msra.mxu0 0
    %450 = vmatprep.subr.bf16.mxu0 0
    %451 = vmatpush1.bf16.msra.mxu0 0
    %452 = vmatprep.subr.bf16.mxu0 0
    %453 = vmatpush1.bf16.msra.mxu0 0
    %454 = vmatprep.subr.bf16.mxu0 0
    %455 = vmatpush1.bf16.msra.mxu0 0
    %456 = vmatprep.subr.bf16.mxu0 0
    %457 = vmatpush1.bf16.msra.mxu0 0
    %458 = vmatprep.mubr.bf16.mxu0 0
    %459 = vmatmul.mubr.bf16.gmra.mrb[0].mxu0 0
    %v460 = vpop.f32.mrb[0].mxu0
    %v461 = vadd.f32 0.0, %v460
    %v462 = vpop.f32.mrb[0].mxu0
    %v463 = vadd.f32 0.0, %v462
    %v464 = vpop.f32.mrb[0].mxu0
    %v465 = vpop.f32.mrb[0].mxu0
    %466 = vdwg.mxu0
    %467 = vmatprep.subr.bf16.mxu0 %v365
    %468 = vmatpush1.bf16.msra.mxu0 %v364
    %469 = vmatprep.subr.bf16.mxu0 %v369
    %470 = vmatpush1.bf16.msra.mxu0 %v368
    %471 = vmatprep.subr.bf16.mxu0 %v373
    %472 = vmatpush1.bf16.msra.mxu0 %v372
    %473 = vmatprep.subr.bf16.mxu0 %v377
    %474 = vmatpush1.bf16.msra.mxu0 %v376
    %475 = vmatprep.subr.bf16.mxu0 %v381
    %476 = vmatpush1.bf16.msra.mxu0 %v380
    %477 = vmatprep.subr.bf16.mxu0 %v385
    %478 = vmatpush1.bf16.msra.mxu0 %v384
    %479 = vmatprep.subr.bf16.mxu0 %v389
    %480 = vmatpush1.bf16.msra.mxu0 %v388
    %481 = vmatprep.subr.bf16.mxu0 %v393
    %482 = vmatpush1.bf16.msra.mxu0 %v392
    %483 = vmatprep.subr.bf16.mxu0 0
    %484 = vmatpush1.bf16.msra.mxu0 0
    %485 = vmatprep.subr.bf16.mxu0 0
    %486 = vmatpush1.bf16.msra.mxu0 0
    %487 = vmatprep.subr.bf16.mxu0 0
    %488 = vmatpush1.bf16.msra.mxu0 0
    %489 = vmatprep.subr.bf16.mxu0 0
    %490 = vmatpush1.bf16.msra.mxu0 0
    %491 = vmatprep.subr.bf16.mxu0 0
    %492 = vmatpush1.bf16.msra.mxu0 0
    %493 = vmatprep.subr.bf16.mxu0 0
    %494 = vmatpush1.bf16.msra.mxu0 0
    %495 = vmatprep.subr.bf16.mxu0 0
    %496 = vmatpush1.bf16.msra.mxu0 0
    %497 = vmatprep.subr.bf16.mxu0 0
    %498 = vmatpush1.bf16.msra.mxu0 0
    %499 = vmatprep.mubr.bf16.mxu0 0
    %500 = vmatmul.mubr.bf16.gmra.mrb[0].mxu0 0
    %v501 = vpop.f32.mrb[0].mxu0
    %v502 = vadd.f32 0.0, %v501
    %v503 = vpop.f32.mrb[0].mxu0
    %v504 = vadd.f32 0.0, %v503
    %v505 = vpop.f32.mrb[0].mxu0
    %v506 = vpop.f32.mrb[0].mxu0
    %507 = vdwg.mxu0
    %v508 = vadd.f32 %v183, %v461
    %v509 = vadd.f32 %v185, %v463
    %v510 = vadd.f32 %v226, %v502
    %v511 = vadd.f32 %v228, %v504
    %v512 = vxor.u32 %v508, 2147483648
    %v513 = vxor.u32 %v509, 2147483648
    %v514 = vxor.u32 %v510, 2147483648
    %v515 = vmul.f32 %v512, 1.442695
    %v516 = vpow.pop %v515
    %v517 = vmul.f32 %v513, 1.442695
    %v518 = vpow.pop %v517
    %v519 = vmul.f32 %v514, 1.442695
    %v520 = vpow.pop %v519
    %v521 = vadd.f32 %v516, 1.0
    %v522 = vadd.f32 %v518, 1.0
    %v523 = vadd.f32 %v520, 1.0
    %v524 = vrcp.pop %v521
    %v525 = vmul.f32 1.0, %v524
    %v526 = vrcp.pop %v522
    %v527 = vmul.f32 1.0, %v526
    %v528 = vrcp.pop %v523
    %v529 = vmul.f32 1.0, %v528
    %v530 = vtanh.pop %v511
    %v531 = vmul.f32 %v527, 0.0
    %v532 = vmul.f32 %v525, %v530
    %v533 = vadd.f32 %v531, %v532
    %v534 = vtanh.pop %v533
    %v535 = vmul.f32 %v529, %v534
    %v536 = vpack.c.bf16 %v535, %v535
    %537 = vst [vmem:[#allocation3] sm:$0x1] %v536
    %538 = vmatprep.subr.bf16.mxu0 %v363
    %539 = vmatpush1.bf16.msra.mxu0 %v362
    %540 = vmatprep.subr.bf16.mxu0 %v367
    %541 = vmatpush1.bf16.msra.mxu0 %v366
    %542 = vmatprep.subr.bf16.mxu0 %v371
    %543 = vmatpush1.bf16.msra.mxu0 %v370
    %544 = vmatprep.subr.bf16.mxu0 %v375
    %545 = vmatpush1.bf16.msra.mxu0 %v374
    %546 = vmatprep.subr.bf16.mxu0 %v379
    %547 = vmatpush1.bf16.msra.mxu0 %v378
    %548 = vmatprep.subr.bf16.mxu0 %v383
    %549 = vmatpush1.bf16.msra.mxu0 %v382
    %550 = vmatprep.subr.bf16.mxu0 %v387
    %551 = vmatpush1.bf16.msra.mxu0 %v386
    %552 = vmatprep.subr.bf16.mxu0 %v391
    %553 = vmatpush1.bf16.msra.mxu0 %v390
    %554 = vmatprep.subr.bf16.mxu0 0
    %555 = vmatpush1.bf16.msra.mxu0 0
    %556 = vmatprep.subr.bf16.mxu0 0
    %557 = vmatpush1.bf16.msra.mxu0 0
    %558 = vmatprep.subr.bf16.mxu0 0
    %559 = vmatpush1.bf16.msra.mxu0 0
    %560 = vmatprep.subr.bf16.mxu0 0
    %561 = vmatpush1.bf16.msra.mxu0 0
    %562 = vmatprep.subr.bf16.mxu0 0
    %563 = vmatpush1.bf16.msra.mxu0 0
    %564 = vmatprep.subr.bf16.mxu0 0
    %565 = vmatpush1.bf16.msra.mxu0 0
    %566 = vmatprep.subr.bf16.mxu0 0
    %567 = vmatpush1.bf16.msra.mxu0 0
    %568 = vmatprep.subr.bf16.mxu0 0
    %569 = vmatpush1.bf16.msra.mxu0 0
    %570 = vmatprep.mubr.bf16.mxu0 0
    %571 = vmatmul.mubr.bf16.gmra.mrb[0].mxu0 %v536
    %v572 = vpop.f32.mrb[0].mxu0
    %v573 = vadd.f32 0.0, %v572
    %v574 = vpop.f32.mrb[0].mxu0
    %v575 = vadd.f32 0.0, %v574
    %v576 = vpop.f32.mrb[0].mxu0
    %v577 = vpop.f32.mrb[0].mxu0
    %578 = vdwg.mxu0
    %579 = vmatprep.subr.bf16.mxu0 %v365
    %580 = vmatpush1.bf16.msra.mxu0 %v364
    %581 = vmatprep.subr.bf16.mxu0 %v369
    %582 = vmatpush1.bf16.msra.mxu0 %v368
    %583 = vmatprep.subr.bf16.mxu0 %v373
    %584 = vmatpush1.bf16.msra.mxu0 %v372
    %585 = vmatprep.subr.bf16.mxu0 %v377
    %586 = vmatpush1.bf16.msra.mxu0 %v376
    %587 = vmatprep.subr.bf16.mxu0 %v381
    %588 = vmatpush1.bf16.msra.mxu0 %v380
    %589 = vmatprep.subr.bf16.mxu0 %v385
    %590 = vmatpush1.bf16.msra.mxu0 %v384
    %591 = vmatprep.subr.bf16.mxu0 %v389
    %592 = vmatpush1.bf16.msra.mxu0 %v388
    %593 = vmatprep.subr.bf16.mxu0 %v393
    %594 = vmatpush1.bf16.msra.mxu0 %v392
    %595 = vmatprep.subr.bf16.mxu0 0
    %596 = vmatpush1.bf16.msra.mxu0 0
    %597 = vmatprep.subr.bf16.mxu0 0
    %598 = vmatpush1.bf16.msra.mxu0 0
    %599 = vmatprep.subr.bf16.mxu0 0
    %600 = vmatpush1.bf16.msra.mxu0 0
    %601 = vmatprep.subr.bf16.mxu0 0
    %602 = vmatpush1.bf16.msra.mxu0 0
    %603 = vmatprep.subr.bf16.mxu0 0
    %604 = vmatpush1.bf16.msra.mxu0 0
    %605 = vmatprep.subr.bf16.mxu0 0
    %606 = vmatpush1.bf16.msra.mxu0 0
    %607 = vmatprep.subr.bf16.mxu0 0
    %608 = vmatpush1.bf16.msra.mxu0 0
    %609 = vmatprep.subr.bf16.mxu0 0
    %610 = vmatpush1.bf16.msra.mxu0 0
    %611 = vmatprep.mubr.bf16.mxu0 0
    %612 = vmatmul.mubr.bf16.gmra.mrb[0].mxu0 %v536
    %v613 = vpop.f32.mrb[0].mxu0
    %v614 = vadd.f32 0.0, %v613
    %v615 = vpop.f32.mrb[0].mxu0
    %v616 = vadd.f32 0.0, %v615
    %v617 = vpop.f32.mrb[0].mxu0
    %v618 = vpop.f32.mrb[0].mxu0
    %619 = vdwg.mxu0
    %v624 = vrot.slane %v573, 6
    %v625 = vrot.slane %v575, 6
    %v626 = vrot.slane %v614, 6
    %v627 = vrot.slane %v616, 6
    %v632 = vadd.f32 %v183, %v624
    %v633 = vadd.f32 %v185, %v625
    %v634 = vadd.f32 %v226, %v626
    %v635 = vadd.f32 %v228, %v627
    %v636 = vxor.u32 %v632, 2147483648
    %v637 = vxor.u32 %v633, 2147483648
    %v638 = vxor.u32 %v634, 2147483648
    %v639 = vmul.f32 %v636, 1.442695
    %v640 = vpow.pop %v639
    %v641 = vmul.f32 %v637, 1.442695
    %v642 = vpow.pop %v641
    %v643 = vmul.f32 %v638, 1.442695
    %v644 = vpow.pop %v643
    %v645 = vadd.f32 %v640, 1.0
    %v646 = vadd.f32 %v642, 1.0
    %v647 = vadd.f32 %v644, 1.0
    %v648 = vrcp.pop %v645
    %v649 = vmul.f32 1.0, %v648
    %v650 = vrcp.pop %v646
    %v651 = vmul.f32 1.0, %v650
    %v652 = vrcp.pop %v647
    %v653 = vmul.f32 1.0, %v652
    %v654 = vtanh.pop %v635
    %v656 = vrot.slane %v533, 6
    %v658 = vmul.f32 %v651, %v656
    %v659 = vmul.f32 %v649, %v654
    %v660 = vadd.f32 %v658, %v659
    %v661 = vtanh.pop %v660
    %v662 = vmul.f32 %v653, %v661
    %v663 = vpack.c.bf16 %v662, %v662
    %664 = vst [vmem:[#allocation3] sm:$0x2] %v663
    %v666 = vrot.slane %v663, 1
    %668 = vmatprep.subr.bf16.mxu0 %v363
    %669 = vmatpush1.bf16.msra.mxu0 %v362
    %670 = vmatprep.subr.bf16.mxu0 %v367
    %671 = vmatpush1.bf16.msra.mxu0 %v366
    %672 = vmatprep.subr.bf16.mxu0 %v371
    %673 = vmatpush1.bf16.msra.mxu0 %v370
    %674 = vmatprep.subr.bf16.mxu0 %v375
    %675 = vmatpush1.bf16.msra.mxu0 %v374
    %676 = vmatprep.subr.bf16.mxu0 %v379
    %677 = vmatpush1.bf16.msra.mxu0 %v378
    %678 = vmatprep.subr.bf16.mxu0 %v383
    %679 = vmatpush1.bf16.msra.mxu0 %v382
    %680 = vmatprep.subr.bf16.mxu0 %v387
    %681 = vmatpush1.bf16.msra.mxu0 %v386
    %682 = vmatprep.subr.bf16.mxu0 %v391
    %683 = vmatpush1.bf16.msra.mxu0 %v390
    %684 = vmatprep.subr.bf16.mxu0 0
    %685 = vmatpush1.bf16.msra.mxu0 0
    %686 = vmatprep.subr.bf16.mxu0 0
    %687 = vmatpush1.bf16.msra.mxu0 0
    %688 = vmatprep.subr.bf16.mxu0 0
    %689 = vmatpush1.bf16.msra.mxu0 0
    %690 = vmatprep.subr.bf16.mxu0 0
    %691 = vmatpush1.bf16.msra.mxu0 0
    %692 = vmatprep.subr.bf16.mxu0 0
    %693 = vmatpush1.bf16.msra.mxu0 0
    %694 = vmatprep.subr.bf16.mxu0 0
    %695 = vmatpush1.bf16.msra.mxu0 0
    %696 = vmatprep.subr.bf16.mxu0 0
    %697 = vmatpush1.bf16.msra.mxu0 0
    %698 = vmatprep.subr.bf16.mxu0 0
    %699 = vmatpush1.bf16.msra.mxu0 0
    %700 = vmatprep.mubr.bf16.mxu0 0
    %701 = vmatmul.mubr.bf16.gmra.mrb[0].mxu0 %v666
    %v702 = vpop.f32.mrb[0].mxu0
    %v703 = vadd.f32 0.0, %v702
    %v704 = vpop.f32.mrb[0].mxu0
    %v705 = vadd.f32 0.0, %v704
    %v706 = vpop.f32.mrb[0].mxu0
    %v707 = vpop.f32.mrb[0].mxu0
    %708 = vdwg.mxu0
    %709 = vmatprep.subr.bf16.mxu0 %v365
    %710 = vmatpush1.bf16.msra.mxu0 %v364
    %711 = vmatprep.subr.bf16.mxu0 %v369
    %712 = vmatpush1.bf16.msra.mxu0 %v368
    %713 = vmatprep.subr.bf16.mxu0 %v373
    %714 = vmatpush1.bf16.msra.mxu0 %v372
    %715 = vmatprep.subr.bf16.mxu0 %v377
    %716 = vmatpush1.bf16.msra.mxu0 %v376
    %717 = vmatprep.subr.bf16.mxu0 %v381
    %718 = vmatpush1.bf16.msra.mxu0 %v380
    %719 = vmatprep.subr.bf16.mxu0 %v385
    %720 = vmatpush1.bf16.msra.mxu0 %v384
    %721 = vmatprep.subr.bf16.mxu0 %v389
    %722 = vmatpush1.bf16.msra.mxu0 %v388
    %723 = vmatprep.subr.bf16.mxu0 %v393
    %724 = vmatpush1.bf16.msra.mxu0 %v392
    %725 = vmatprep.subr.bf16.mxu0 0
    %726 = vmatpush1.bf16.msra.mxu0 0
    %727 = vmatprep.subr.bf16.mxu0 0
    %728 = vmatpush1.bf16.msra.mxu0 0
    %729 = vmatprep.subr.bf16.mxu0 0
    %730 = vmatpush1.bf16.msra.mxu0 0
    %731 = vmatprep.subr.bf16.mxu0 0
    %732 = vmatpush1.bf16.msra.mxu0 0
    %733 = vmatprep.subr.bf16.mxu0 0
    %734 = vmatpush1.bf16.msra.mxu0 0
    %735 = vmatprep.subr.bf16.mxu0 0
    %736 = vmatpush1.bf16.msra.mxu0 0
    %737 = vmatprep.subr.bf16.mxu0 0
    %738 = vmatpush1.bf16.msra.mxu0 0
    %739 = vmatprep.subr.bf16.mxu0 0
    %740 = vmatpush1.bf16.msra.mxu0 0
    %741 = vmatprep.mubr.bf16.mxu0 0
    %742 = vmatmul.mubr.bf16.gmra.mrb[0].mxu0 %v666
    %v743 = vpop.f32.mrb[0].mxu0
    %v744 = vadd.f32 0.0, %v743
    %v745 = vpop.f32.mrb[0].mxu0
    %v746 = vadd.f32 0.0, %v745
    %v747 = vpop.f32.mrb[0].mxu0
    %v748 = vpop.f32.mrb[0].mxu0
    %749 = vdwg.mxu0
    %v754 = vrot.slane %v703, 4
    %v755 = vrot.slane %v705, 4
    %v756 = vrot.slane %v744, 4
    %v757 = vrot.slane %v746, 4
    %v762 = vadd.f32 %v183, %v754
    %v763 = vadd.f32 %v185, %v755
    %v764 = vadd.f32 %v226, %v756
    %v765 = vadd.f32 %v228, %v757
    %v766 = vxor.u32 %v762, 2147483648
    %v767 = vxor.u32 %v763, 2147483648
    %v768 = vxor.u32 %v764, 2147483648
    %v769 = vmul.f32 %v766, 1.442695
    %v770 = vpow.pop %v769
    %v771 = vmul.f32 %v767, 1.442695
    %v772 = vpow.pop %v771
    %v773 = vmul.f32 %v768, 1.442695
    %v774 = vpow.pop %v773
    %v775 = vadd.f32 %v770, 1.0
    %v776 = vadd.f32 %v772, 1.0
    %v777 = vadd.f32 %v774, 1.0
    %v778 = vrcp.pop %v775
    %v779 = vmul.f32 1.0, %v778
    %v780 = vrcp.pop %v776
    %v781 = vmul.f32 1.0, %v780
    %v782 = vrcp.pop %v777
    %v783 = vmul.f32 1.0, %v782
    %v784 = vtanh.pop %v765
    %v786 = vrot.slane %v660, 6
    %v788 = vmul.f32 %v781, %v786
    %v789 = vmul.f32 %v779, %v784
    %v790 = vadd.f32 %v788, %v789
    %v791 = vtanh.pop %v790
    %v792 = vmul.f32 %v783, %v791
    %v793 = vpack.c.bf16 %v792, %v792
    %794 = vst [vmem:[#allocation3] sm:$0x4] %v793
    %v796 = vrot.slane %v793, 2
    %798 = vmatprep.subr.bf16.mxu0 %v363
    %799 = vmatpush1.bf16.msra.mxu0 %v362
    %800 = vmatprep.subr.bf16.mxu0 %v367
    %801 = vmatpush1.bf16.msra.mxu0 %v366
    %802 = vmatprep.subr.bf16.mxu0 %v371
    %803 = vmatpush1.bf16.msra.mxu0 %v370
    %804 = vmatprep.subr.bf16.mxu0 %v375
    %805 = vmatpush1.bf16.msra.mxu0 %v374
    %806 = vmatprep.subr.bf16.mxu0 %v379
    %807 = vmatpush1.bf16.msra.mxu0 %v378
    %808 = vmatprep.subr.bf16.mxu0 %v383
    %809 = vmatpush1.bf16.msra.mxu0 %v382
    %810 = vmatprep.subr.bf16.mxu0 %v387
    %811 = vmatpush1.bf16.msra.mxu0 %v386
    %812 = vmatprep.subr.bf16.mxu0 %v391
    %813 = vmatpush1.bf16.msra.mxu0 %v390
    %814 = vmatprep.subr.bf16.mxu0 0
    %815 = vmatpush1.bf16.msra.mxu0 0
    %816 = vmatprep.subr.bf16.mxu0 0
    %817 = vmatpush1.bf16.msra.mxu0 0
    %818 = vmatprep.subr.bf16.mxu0 0
    %819 = vmatpush1.bf16.msra.mxu0 0
    %820 = vmatprep.subr.bf16.mxu0 0
    %821 = vmatpush1.bf16.msra.mxu0 0
    %822 = vmatprep.subr.bf16.mxu0 0
    %823 = vmatpush1.bf16.msra.mxu0 0
    %824 = vmatprep.subr.bf16.mxu0 0
    %825 = vmatpush1.bf16.msra.mxu0 0
    %826 = vmatprep.subr.bf16.mxu0 0
    %827 = vmatpush1.bf16.msra.mxu0 0
    %828 = vmatprep.subr.bf16.mxu0 0
    %829 = vmatpush1.bf16.msra.mxu0 0
    %830 = vmatprep.mubr.bf16.mxu0 0
    %831 = vmatmul.mubr.bf16.gmra.mrb[0].mxu0 %v796
    %v832 = vpop.f32.mrb[0].mxu0
    %v833 = vadd.f32 0.0, %v832
    %v834 = vpop.f32.mrb[0].mxu0
    %v835 = vadd.f32 0.0, %v834
    %v836 = vpop.f32.mrb[0].mxu0
    %v837 = vpop.f32.mrb[0].mxu0
    %838 = vdwg.mxu0
    %839 = vmatprep.subr.bf16.mxu0 %v365
    %840 = vmatpush1.bf16.msra.mxu0 %v364
    %841 = vmatprep.subr.bf16.mxu0 %v369
    %842 = vmatpush1.bf16.msra.mxu0 %v368
    %843 = vmatprep.subr.bf16.mxu0 %v373
    %844 = vmatpush1.bf16.msra.mxu0 %v372
    %845 = vmatprep.subr.bf16.mxu0 %v377
    %846 = vmatpush1.bf16.msra.mxu0 %v376
    %847 = vmatprep.subr.bf16.mxu0 %v381
    %848 = vmatpush1.bf16.msra.mxu0 %v380
    %849 = vmatprep.subr.bf16.mxu0 %v385
    %850 = vmatpush1.bf16.msra.mxu0 %v384
    %851 = vmatprep.subr.bf16.mxu0 %v389
    %852 = vmatpush1.bf16.msra.mxu0 %v388
    %853 = vmatprep.subr.bf16.mxu0 %v393
    %854 = vmatpush1.bf16.msra.mxu0 %v392
    %855 = vmatprep.subr.bf16.mxu0 0
    %856 = vmatpush1.bf16.msra.mxu0 0
    %857 = vmatprep.subr.bf16.mxu0 0
    %858 = vmatpush1.bf16.msra.mxu0 0
    %859 = vmatprep.subr.bf16.mxu0 0
    %860 = vmatpush1.bf16.msra.mxu0 0
    %861 = vmatprep.subr.bf16.mxu0 0
    %862 = vmatpush1.bf16.msra.mxu0 0
    %863 = vmatprep.subr.bf16.mxu0 0
    %864 = vmatpush1.bf16.msra.mxu0 0
    %865 = vmatprep.subr.bf16.mxu0 0
    %866 = vmatpush1.bf16.msra.mxu0 0
    %867 = vmatprep.subr.bf16.mxu0 0
    %868 = vmatpush1.bf16.msra.mxu0 0
    %869 = vmatprep.subr.bf16.mxu0 0
    %870 = vmatpush1.bf16.msra.mxu0 0
    %871 = vmatprep.mubr.bf16.mxu0 0
    %872 = vmatmul.mubr.bf16.gmra.mrb[0].mxu0 %v796
    %v873 = vpop.f32.mrb[0].mxu0
    %v874 = vadd.f32 0.0, %v873
    %v875 = vpop.f32.mrb[0].mxu0
    %v876 = vadd.f32 0.0, %v875
    %v877 = vpop.f32.mrb[0].mxu0
    %v878 = vpop.f32.mrb[0].mxu0
    %879 = vdwg.mxu0
    %v884 = vrot.slane %v833, 2
    %v885 = vrot.slane %v835, 2
    %v886 = vrot.slane %v874, 2
    %v887 = vrot.slane %v876, 2
    %v892 = vadd.f32 %v183, %v884
    %v893 = vadd.f32 %v185, %v885
    %v894 = vadd.f32 %v226, %v886
    %v895 = vadd.f32 %v228, %v887
    %v896 = vxor.u32 %v892, 2147483648
    %v897 = vxor.u32 %v893, 2147483648
    %v898 = vxor.u32 %v894, 2147483648
    %v899 = vmul.f32 %v896, 1.442695
    %v900 = vpow.pop %v899
    %v901 = vmul.f32 %v897, 1.442695
    %v902 = vpow.pop %v901
    %v903 = vmul.f32 %v898, 1.442695
    %v904 = vpow.pop %v903
    %v905 = vadd.f32 %v900, 1.0
    %v906 = vadd.f32 %v902, 1.0
    %v907 = vadd.f32 %v904, 1.0
    %v908 = vrcp.pop %v905
    %v909 = vmul.f32 1.0, %v908
    %v910 = vrcp.pop %v906
    %v911 = vmul.f32 1.0, %v910
    %v912 = vrcp.pop %v907
    %v913 = vmul.f32 1.0, %v912
    %v914 = vtanh.pop %v895
    %v916 = vrot.slane %v790, 6
    %v918 = vmul.f32 %v911, %v916
    %v919 = vmul.f32 %v909, %v914
    %v920 = vadd.f32 %v918, %v919
    %v921 = vtanh.pop %v920
    %v922 = vmul.f32 %v913, %v921
    %v923 = vpack.c.bf16 %v922, %v922
    %924 = vst [vmem:[#allocation3] sm:$0x8] %v923
    %v926 = vrot.slane %v923, 3
    %928 = vmatprep.subr.bf16.mxu0 %v363
    %929 = vmatpush1.bf16.msra.mxu0 %v362
    %930 = vmatprep.subr.bf16.mxu0 %v367
    %931 = vmatpush1.bf16.msra.mxu0 %v366
    %932 = vmatprep.subr.bf16.mxu0 %v371
    %933 = vmatpush1.bf16.msra.mxu0 %v370
    %934 = vmatprep.subr.bf16.mxu0 %v375
    %935 = vmatpush1.bf16.msra.mxu0 %v374
    %936 = vmatprep.subr.bf16.mxu0 %v379
    %937 = vmatpush1.bf16.msra.mxu0 %v378
    %938 = vmatprep.subr.bf16.mxu0 %v383
    %939 = vmatpush1.bf16.msra.mxu0 %v382
    %940 = vmatprep.subr.bf16.mxu0 %v387
    %941 = vmatpush1.bf16.msra.mxu0 %v386
    %942 = vmatprep.subr.bf16.mxu0 %v391
    %943 = vmatpush1.bf16.msra.mxu0 %v390
    %944 = vmatprep.subr.bf16.mxu0 0
    %945 = vmatpush1.bf16.msra.mxu0 0
    %946 = vmatprep.subr.bf16.mxu0 0
    %947 = vmatpush1.bf16.msra.mxu0 0
    %948 = vmatprep.subr.bf16.mxu0 0
    %949 = vmatpush1.bf16.msra.mxu0 0
    %950 = vmatprep.subr.bf16.mxu0 0
    %951 = vmatpush1.bf16.msra.mxu0 0
    %952 = vmatprep.subr.bf16.mxu0 0
    %953 = vmatpush1.bf16.msra.mxu0 0
    %954 = vmatprep.subr.bf16.mxu0 0
    %955 = vmatpush1.bf16.msra.mxu0 0
    %956 = vmatprep.subr.bf16.mxu0 0
    %957 = vmatpush1.bf16.msra.mxu0 0
    %958 = vmatprep.subr.bf16.mxu0 0
    %959 = vmatpush1.bf16.msra.mxu0 0
    %960 = vmatprep.mubr.bf16.mxu0 0
    %961 = vmatmul.mubr.bf16.gmra.mrb[0].mxu0 %v926
    %v962 = vpop.f32.mrb[0].mxu0
    %v963 = vadd.f32 0.0, %v962
    %v964 = vpop.f32.mrb[0].mxu0
    %v965 = vadd.f32 0.0, %v964
    %v966 = vpop.f32.mrb[0].mxu0
    %v967 = vpop.f32.mrb[0].mxu0
    %968 = vdwg.mxu0
    %969 = vmatprep.subr.bf16.mxu0 %v365
    %970 = vmatpush1.bf16.msra.mxu0 %v364
    %971 = vmatprep.subr.bf16.mxu0 %v369
    %972 = vmatpush1.bf16.msra.mxu0 %v368
    %973 = vmatprep.subr.bf16.mxu0 %v373
    %974 = vmatpush1.bf16.msra.mxu0 %v372
    %975 = vmatprep.subr.bf16.mxu0 %v377
    %976 = vmatpush1.bf16.msra.mxu0 %v376
    %977 = vmatprep.subr.bf16.mxu0 %v381
    %978 = vmatpush1.bf16.msra.mxu0 %v380
    %979 = vmatprep.subr.bf16.mxu0 %v385
    %980 = vmatpush1.bf16.msra.mxu0 %v384
    %981 = vmatprep.subr.bf16.mxu0 %v389
    %982 = vmatpush1.bf16.msra.mxu0 %v388
    %983 = vmatprep.subr.bf16.mxu0 %v393
    %984 = vmatpush1.bf16.msra.mxu0 %v392
    %985 = vmatprep.subr.bf16.mxu0 0
    %986 = vmatpush1.bf16.msra.mxu0 0
    %987 = vmatprep.subr.bf16.mxu0 0
    %988 = vmatpush1.bf16.msra.mxu0 0
    %989 = vmatprep.subr.bf16.mxu0 0
    %990 = vmatpush1.bf16.msra.mxu0 0
    %991 = vmatprep.subr.bf16.mxu0 0
    %992 = vmatpush1.bf16.msra.mxu0 0
    %993 = vmatprep.subr.bf16.mxu0 0
    %994 = vmatpush1.bf16.msra.mxu0 0
    %995 = vmatprep.subr.bf16.mxu0 0
    %996 = vmatpush1.bf16.msra.mxu0 0
    %997 = vmatprep.subr.bf16.mxu0 0
    %998 = vmatpush1.bf16.msra.mxu0 0
    %999 = vmatprep.subr.bf16.mxu0 0
    %1000 = vmatpush1.bf16.msra.mxu0 0
    %1001 = vmatprep.mubr.bf16.mxu0 0
    %1002 = vmatmul.mubr.bf16.gmra.mrb[0].mxu0 %v926
    %v1003 = vpop.f32.mrb[0].mxu0
    %v1004 = vadd.f32 0.0, %v1003
    %v1005 = vpop.f32.mrb[0].mxu0
    %v1006 = vadd.f32 0.0, %v1005
    %v1007 = vpop.f32.mrb[0].mxu0
    %v1008 = vpop.f32.mrb[0].mxu0
    %1009 = vdwg.mxu0
    %v1010 = vadd.f32 %v187, %v963
    %v1011 = vadd.f32 %v189, %v965
    %v1012 = vadd.f32 %v230, %v1004
    %v1013 = vadd.f32 %v232, %v1006
    %v1014 = vxor.u32 %v1010, 2147483648
    %v1015 = vxor.u32 %v1011, 2147483648
    %v1016 = vxor.u32 %v1012, 2147483648
    %v1017 = vmul.f32 %v1014, 1.442695
    %v1018 = vpow.pop %v1017
    %v1019 = vmul.f32 %v1015, 1.442695
    %v1020 = vpow.pop %v1019
    %v1021 = vmul.f32 %v1016, 1.442695
    %v1022 = vpow.pop %v1021
    %v1023 = vadd.f32 %v1018, 1.0
    %v1024 = vadd.f32 %v1020, 1.0
    %v1025 = vadd.f32 %v1022, 1.0
    %v1026 = vrcp.pop %v1023
    %v1027 = vmul.f32 1.0, %v1026
    %v1028 = vrcp.pop %v1024
    %v1029 = vmul.f32 1.0, %v1028
    %v1030 = vrcp.pop %v1025
    %v1031 = vmul.f32 1.0, %v1030
    %v1032 = vtanh.pop %v1013
    %v1034 = vrot.slane %v920, 6
    %v1036 = vmul.f32 %v1029, %v1034
    %v1037 = vmul.f32 %v1027, %v1032
    %v1038 = vadd.f32 %v1036, %v1037
    %v1039 = vtanh.pop %v1038
    %v1040 = vmul.f32 %v1031, %v1039
    %v1041 = vpack.c.bf16 %v1040, %v1040
    %v1043 = vrot.slane %v1041, 4
    %1045 = vst [vmem:[#allocation3] sm:$0x10] %v1043
    %1046 = vmatprep.subr.bf16.mxu0 %v363
    %1047 = vmatpush1.bf16.msra.mxu0 %v362
    %1048 = vmatprep.subr.bf16.mxu0 %v367
    %1049 = vmatpush1.bf16.msra.mxu0 %v366
    %1050 = vmatprep.subr.bf16.mxu0 %v371
    %1051 = vmatpush1.bf16.msra.mxu0 %v370
    %1052 = vmatprep.subr.bf16.mxu0 %v375
    %1053 = vmatpush1.bf16.msra.mxu0 %v374
    %1054 = vmatprep.subr.bf16.mxu0 %v379
    %1055 = vmatpush1.bf16.msra.mxu0 %v378
    %1056 = vmatprep.subr.bf16.mxu0 %v383
    %1057 = vmatpush1.bf16.msra.mxu0 %v382
    %1058 = vmatprep.subr.bf16.mxu0 %v387
    %1059 = vmatpush1.bf16.msra.mxu0 %v386
    %1060 = vmatprep.subr.bf16.mxu0 %v391
    %1061 = vmatpush1.bf16.msra.mxu0 %v390
    %1062 = vmatprep.subr.bf16.mxu0 0
    %1063 = vmatpush1.bf16.msra.mxu0 0
    %1064 = vmatprep.subr.bf16.mxu0 0
    %1065 = vmatpush1.bf16.msra.mxu0 0
    %1066 = vmatprep.subr.bf16.mxu0 0
    %1067 = vmatpush1.bf16.msra.mxu0 0
    %1068 = vmatprep.subr.bf16.mxu0 0
    %1069 = vmatpush1.bf16.msra.mxu0 0
    %1070 = vmatprep.subr.bf16.mxu0 0
    %1071 = vmatpush1.bf16.msra.mxu0 0
    %1072 = vmatprep.subr.bf16.mxu0 0
    %1073 = vmatpush1.bf16.msra.mxu0 0
    %1074 = vmatprep.subr.bf16.mxu0 0
    %1075 = vmatpush1.bf16.msra.mxu0 0
    %1076 = vmatprep.subr.bf16.mxu0 0
    %1077 = vmatpush1.bf16.msra.mxu0 0
    %1078 = vmatprep.mubr.bf16.mxu0 0
    %1079 = vmatmul.mubr.bf16.gmra.mrb[0].mxu0 %v1041
    %v1080 = vpop.f32.mrb[0].mxu0
    %v1081 = vadd.f32 0.0, %v1080
    %v1082 = vpop.f32.mrb[0].mxu0
    %v1083 = vadd.f32 0.0, %v1082
    %v1084 = vpop.f32.mrb[0].mxu0
    %v1085 = vpop.f32.mrb[0].mxu0
    %1086 = vdwg.mxu0
    %1087 = vmatprep.subr.bf16.mxu0 %v365
    %1088 = vmatpush1.bf16.msra.mxu0 %v364
    %1089 = vmatprep.subr.bf16.mxu0 %v369
    %1090 = vmatpush1.bf16.msra.mxu0 %v368
    %1091 = vmatprep.subr.bf16.mxu0 %v373
    %1092 = vmatpush1.bf16.msra.mxu0 %v372
    %1093 = vmatprep.subr.bf16.mxu0 %v377
    %1094 = vmatpush1.bf16.msra.mxu0 %v376
    %1095 = vmatprep.subr.bf16.mxu0 %v381
    %1096 = vmatpush1.bf16.msra.mxu0 %v380
    %1097 = vmatprep.subr.bf16.mxu0 %v385
    %1098 = vmatpush1.bf16.msra.mxu0 %v384
    %1099 = vmatprep.subr.bf16.mxu0 %v389
    %1100 = vmatpush1.bf16.msra.mxu0 %v388
    %1101 = vmatprep.subr.bf16.mxu0 %v393
    %1102 = vmatpush1.bf16.msra.mxu0 %v392
    %1103 = vmatprep.subr.bf16.mxu0 0
    %1104 = vmatpush1.bf16.msra.mxu0 0
    %1105 = vmatprep.subr.bf16.mxu0 0
    %1106 = vmatpush1.bf16.msra.mxu0 0
    %1107 = vmatprep.subr.bf16.mxu0 0
    %1108 = vmatpush1.bf16.msra.mxu0 0
    %1109 = vmatprep.subr.bf16.mxu0 0
    %1110 = vmatpush1.bf16.msra.mxu0 0
    %1111 = vmatprep.subr.bf16.mxu0 0
    %1112 = vmatpush1.bf16.msra.mxu0 0
    %1113 = vmatprep.subr.bf16.mxu0 0
    %1114 = vmatpush1.bf16.msra.mxu0 0
    %1115 = vmatprep.subr.bf16.mxu0 0
    %1116 = vmatpush1.bf16.msra.mxu0 0
    %1117 = vmatprep.subr.bf16.mxu0 0
    %1118 = vmatpush1.bf16.msra.mxu0 0
    %1119 = vmatprep.mubr.bf16.mxu0 0
    %1120 = vmatmul.mubr.bf16.gmra.mrb[0].mxu0 %v1041
    %v1121 = vpop.f32.mrb[0].mxu0
    %v1122 = vadd.f32 0.0, %v1121
    %v1123 = vpop.f32.mrb[0].mxu0
    %v1124 = vadd.f32 0.0, %v1123
    %v1125 = vpop.f32.mrb[0].mxu0
    %v1126 = vpop.f32.mrb[0].mxu0
    %1127 = vdwg.mxu0
    %v1132 = vrot.slane %v1081, 6
    %v1133 = vrot.slane %v1083, 6
    %v1134 = vrot.slane %v1122, 6
    %v1135 = vrot.slane %v1124, 6
    %v1140 = vadd.f32 %v187, %v1132
    %v1141 = vadd.f32 %v189, %v1133
    %v1142 = vadd.f32 %v230, %v1134
    %v1143 = vadd.f32 %v232, %v1135
    %v1144 = vxor.u32 %v1140, 2147483648
    %v1145 = vxor.u32 %v1141, 2147483648
    %v1146 = vxor.u32 %v1142, 2147483648
    %v1147 = vmul.f32 %v1144, 1.442695
    %v1148 = vpow.pop %v1147
    %v1149 = vmul.f32 %v1145, 1.442695
    %v1150 = vpow.pop %v1149
    %v1151 = vmul.f32 %v1146, 1.442695
    %v1152 = vpow.pop %v1151
    %v1153 = vadd.f32 %v1148, 1.0
    %v1154 = vadd.f32 %v1150, 1.0
    %v1155 = vadd.f32 %v1152, 1.0
    %v1156 = vrcp.pop %v1153
    %v1157 = vmul.f32 1.0, %v1156
    %v1158 = vrcp.pop %v1154
    %v1159 = vmul.f32 1.0, %v1158
    %v1160 = vrcp.pop %v1155
    %v1161 = vmul.f32 1.0, %v1160
    %v1162 = vtanh.pop %v1143
    %v1164 = vrot.slane %v1038, 6
    %v1166 = vmul.f32 %v1159, %v1164
    %v1167 = vmul.f32 %v1157, %v1162
    %v1168 = vadd.f32 %v1166, %v1167
    %v1169 = vtanh.pop %v1168
    %v1170 = vmul.f32 %v1161, %v1169
    %v1171 = vpack.c.bf16 %v1170, %v1170
    %v1173 = vrot.slane %v1171, 4
    %1175 = vst [vmem:[#allocation3] sm:$0x20] %v1173
    %v1176 = vrot.slane %v1171, 1
    %1178 = vmatprep.subr.bf16.mxu0 %v363
    %1179 = vmatpush1.bf16.msra.mxu0 %v362
    %1180 = vmatprep.subr.bf16.mxu0 %v367
    %1181 = vmatpush1.bf16.msra.mxu0 %v366
    %1182 = vmatprep.subr.bf16.mxu0 %v371
    %1183 = vmatpush1.bf16.msra.mxu0 %v370
    %1184 = vmatprep.subr.bf16.mxu0 %v375
    %1185 = vmatpush1.bf16.msra.mxu0 %v374
    %1186 = vmatprep.subr.bf16.mxu0 %v379
    %1187 = vmatpush1.bf16.msra.mxu0 %v378
    %1188 = vmatprep.subr.bf16.mxu0 %v383
    %1189 = vmatpush1.bf16.msra.mxu0 %v382
    %1190 = vmatprep.subr.bf16.mxu0 %v387
    %1191 = vmatpush1.bf16.msra.mxu0 %v386
    %1192 = vmatprep.subr.bf16.mxu0 %v391
    %1193 = vmatpush1.bf16.msra.mxu0 %v390
    %1194 = vmatprep.subr.bf16.mxu0 0
    %1195 = vmatpush1.bf16.msra.mxu0 0
    %1196 = vmatprep.subr.bf16.mxu0 0
    %1197 = vmatpush1.bf16.msra.mxu0 0
    %1198 = vmatprep.subr.bf16.mxu0 0
    %1199 = vmatpush1.bf16.msra.mxu0 0
    %1200 = vmatprep.subr.bf16.mxu0 0
    %1201 = vmatpush1.bf16.msra.mxu0 0
    %1202 = vmatprep.subr.bf16.mxu0 0
    %1203 = vmatpush1.bf16.msra.mxu0 0
    %1204 = vmatprep.subr.bf16.mxu0 0
    %1205 = vmatpush1.bf16.msra.mxu0 0
    %1206 = vmatprep.subr.bf16.mxu0 0
    %1207 = vmatpush1.bf16.msra.mxu0 0
    %1208 = vmatprep.subr.bf16.mxu0 0
    %1209 = vmatpush1.bf16.msra.mxu0 0
    %1210 = vmatprep.mubr.bf16.mxu0 0
    %1211 = vmatmul.mubr.bf16.gmra.mrb[0].mxu0 %v1176
    %v1212 = vpop.f32.mrb[0].mxu0
    %v1213 = vadd.f32 0.0, %v1212
    %v1214 = vpop.f32.mrb[0].mxu0
    %v1215 = vadd.f32 0.0, %v1214
    %v1216 = vpop.f32.mrb[0].mxu0
    %v1217 = vpop.f32.mrb[0].mxu0
    %1218 = vdwg.mxu0
    %1219 = vmatprep.subr.bf16.mxu0 %v365
    %1220 = vmatpush1.bf16.msra.mxu0 %v364
    %1221 = vmatprep.subr.bf16.mxu0 %v369
    %1222 = vmatpush1.bf16.msra.mxu0 %v368
    %1223 = vmatprep.subr.bf16.mxu0 %v373
    %1224 = vmatpush1.bf16.msra.mxu0 %v372
    %1225 = vmatprep.subr.bf16.mxu0 %v377
    %1226 = vmatpush1.bf16.msra.mxu0 %v376
    %1227 = vmatprep.subr.bf16.mxu0 %v381
    %1228 = vmatpush1.bf16.msra.mxu0 %v380
    %1229 = vmatprep.subr.bf16.mxu0 %v385
    %1230 = vmatpush1.bf16.msra.mxu0 %v384
    %1231 = vmatprep.subr.bf16.mxu0 %v389
    %1232 = vmatpush1.bf16.msra.mxu0 %v388
    %1233 = vmatprep.subr.bf16.mxu0 %v393
    %1234 = vmatpush1.bf16.msra.mxu0 %v392
    %1235 = vmatprep.subr.bf16.mxu0 0
    %1236 = vmatpush1.bf16.msra.mxu0 0
    %1237 = vmatprep.subr.bf16.mxu0 0
    %1238 = vmatpush1.bf16.msra.mxu0 0
    %1239 = vmatprep.subr.bf16.mxu0 0
    %1240 = vmatpush1.bf16.msra.mxu0 0
    %1241 = vmatprep.subr.bf16.mxu0 0
    %1242 = vmatpush1.bf16.msra.mxu0 0
    %1243 = vmatprep.subr.bf16.mxu0 0
    %1244 = vmatpush1.bf16.msra.mxu0 0
    %1245 = vmatprep.subr.bf16.mxu0 0
    %1246 = vmatpush1.bf16.msra.mxu0 0
    %1247 = vmatprep.subr.bf16.mxu0 0
    %1248 = vmatpush1.bf16.msra.mxu0 0
    %1249 = vmatprep.subr.bf16.mxu0 0
    %1250 = vmatpush1.bf16.msra.mxu0 0
    %1251 = vmatprep.mubr.bf16.mxu0 0
    %1252 = vmatmul.mubr.bf16.gmra.mrb[0].mxu0 %v1176
    %v1253 = vpop.f32.mrb[0].mxu0
    %v1254 = vadd.f32 0.0, %v1253
    %v1255 = vpop.f32.mrb[0].mxu0
    %v1256 = vadd.f32 0.0, %v1255
    %v1257 = vpop.f32.mrb[0].mxu0
    %v1258 = vpop.f32.mrb[0].mxu0
    %1259 = vdwg.mxu0
    %v1264 = vrot.slane %v1213, 4
    %v1265 = vrot.slane %v1215, 4
    %v1266 = vrot.slane %v1254, 4
    %v1267 = vrot.slane %v1256, 4
    %v1272 = vadd.f32 %v187, %v1264
    %v1273 = vadd.f32 %v189, %v1265
    %v1274 = vadd.f32 %v230, %v1266
    %v1275 = vadd.f32 %v232, %v1267
    %v1276 = vxor.u32 %v1272, 2147483648
    %v1277 = vxor.u32 %v1273, 2147483648
    %v1278 = vxor.u32 %v1274, 2147483648
    %v1279 = vmul.f32 %v1276, 1.442695
    %v1280 = vpow.pop %v1279
    %v1281 = vmul.f32 %v1277, 1.442695
    %v1282 = vpow.pop %v1281
    %v1283 = vmul.f32 %v1278, 1.442695
    %v1284 = vpow.pop %v1283
    %v1285 = vadd.f32 %v1280, 1.0
    %v1286 = vadd.f32 %v1282, 1.0
    %v1287 = vadd.f32 %v1284, 1.0
    %v1288 = vrcp.pop %v1285
    %v1289 = vmul.f32 1.0, %v1288
    %v1290 = vrcp.pop %v1286
    %v1291 = vmul.f32 1.0, %v1290
    %v1292 = vrcp.pop %v1287
    %v1293 = vmul.f32 1.0, %v1292
    %v1294 = vtanh.pop %v1275
    %v1296 = vrot.slane %v1168, 6
    %v1298 = vmul.f32 %v1291, %v1296
    %v1299 = vmul.f32 %v1289, %v1294
    %v1300 = vadd.f32 %v1298, %v1299
    %v1301 = vtanh.pop %v1300
    %v1302 = vmul.f32 %v1293, %v1301
    %v1303 = vpack.c.bf16 %v1302, %v1302
    %v1305 = vrot.slane %v1303, 4
    %1307 = vst [vmem:[#allocation3] sm:$0x40] %v1305
    %v1308 = vrot.slane %v1303, 2
    %1310 = vmatprep.subr.bf16.mxu0 %v363
    %1311 = vmatpush1.bf16.msra.mxu0 %v362
    %1312 = vmatprep.subr.bf16.mxu0 %v367
    %1313 = vmatpush1.bf16.msra.mxu0 %v366
    %1314 = vmatprep.subr.bf16.mxu0 %v371
    %1315 = vmatpush1.bf16.msra.mxu0 %v370
    %1316 = vmatprep.subr.bf16.mxu0 %v375
    %1317 = vmatpush1.bf16.msra.mxu0 %v374
    %1318 = vmatprep.subr.bf16.mxu0 %v379
    %1319 = vmatpush1.bf16.msra.mxu0 %v378
    %1320 = vmatprep.subr.bf16.mxu0 %v383
    %1321 = vmatpush1.bf16.msra.mxu0 %v382
    %1322 = vmatprep.subr.bf16.mxu0 %v387
    %1323 = vmatpush1.bf16.msra.mxu0 %v386
    %1324 = vmatprep.subr.bf16.mxu0 %v391
    %1325 = vmatpush1.bf16.msra.mxu0 %v390
    %1326 = vmatprep.subr.bf16.mxu0 0
    %1327 = vmatpush1.bf16.msra.mxu0 0
    %1328 = vmatprep.subr.bf16.mxu0 0
    %1329 = vmatpush1.bf16.msra.mxu0 0
    %1330 = vmatprep.subr.bf16.mxu0 0
    %1331 = vmatpush1.bf16.msra.mxu0 0
    %1332 = vmatprep.subr.bf16.mxu0 0
    %1333 = vmatpush1.bf16.msra.mxu0 0
    %1334 = vmatprep.subr.bf16.mxu0 0
    %1335 = vmatpush1.bf16.msra.mxu0 0
    %1336 = vmatprep.subr.bf16.mxu0 0
    %1337 = vmatpush1.bf16.msra.mxu0 0
    %1338 = vmatprep.subr.bf16.mxu0 0
    %1339 = vmatpush1.bf16.msra.mxu0 0
    %1340 = vmatprep.subr.bf16.mxu0 0
    %1341 = vmatpush1.bf16.msra.mxu0 0
    %1342 = vmatprep.mubr.bf16.mxu0 0
    %1343 = vmatmul.mubr.bf16.gmra.mrb[0].mxu0 %v1308
    %v1344 = vpop.f32.mrb[0].mxu0
    %v1345 = vadd.f32 0.0, %v1344
    %v1346 = vpop.f32.mrb[0].mxu0
    %v1347 = vadd.f32 0.0, %v1346
    %v1348 = vpop.f32.mrb[0].mxu0
    %v1349 = vpop.f32.mrb[0].mxu0
    %1350 = vdwg.mxu0
    %1351 = vmatprep.subr.bf16.mxu0 %v365
    %1352 = vmatpush1.bf16.msra.mxu0 %v364
    %1353 = vmatprep.subr.bf16.mxu0 %v369
    %1354 = vmatpush1.bf16.msra.mxu0 %v368
    %1355 = vmatprep.subr.bf16.mxu0 %v373
    %1356 = vmatpush1.bf16.msra.mxu0 %v372
    %1357 = vmatprep.subr.bf16.mxu0 %v377
    %1358 = vmatpush1.bf16.msra.mxu0 %v376
    %1359 = vmatprep.subr.bf16.mxu0 %v381
    %1360 = vmatpush1.bf16.msra.mxu0 %v380
    %1361 = vmatprep.subr.bf16.mxu0 %v385
    %1362 = vmatpush1.bf16.msra.mxu0 %v384
    %1363 = vmatprep.subr.bf16.mxu0 %v389
    %1364 = vmatpush1.bf16.msra.mxu0 %v388
    %1365 = vmatprep.subr.bf16.mxu0 %v393
    %1366 = vmatpush1.bf16.msra.mxu0 %v392
    %1367 = vmatprep.subr.bf16.mxu0 0
    %1368 = vmatpush1.bf16.msra.mxu0 0
    %1369 = vmatprep.subr.bf16.mxu0 0
    %1370 = vmatpush1.bf16.msra.mxu0 0
    %1371 = vmatprep.subr.bf16.mxu0 0
    %1372 = vmatpush1.bf16.msra.mxu0 0
    %1373 = vmatprep.subr.bf16.mxu0 0
    %1374 = vmatpush1.bf16.msra.mxu0 0
    %1375 = vmatprep.subr.bf16.mxu0 0
    %1376 = vmatpush1.bf16.msra.mxu0 0
    %1377 = vmatprep.subr.bf16.mxu0 0
    %1378 = vmatpush1.bf16.msra.mxu0 0
    %1379 = vmatprep.subr.bf16.mxu0 0
    %1380 = vmatpush1.bf16.msra.mxu0 0
    %1381 = vmatprep.subr.bf16.mxu0 0
    %1382 = vmatpush1.bf16.msra.mxu0 0
    %1383 = vmatprep.mubr.bf16.mxu0 0
    %1384 = vmatmul.mubr.bf16.gmra.mrb[0].mxu0 %v1308
    %v1385 = vpop.f32.mrb[0].mxu0
    %v1386 = vadd.f32 0.0, %v1385
    %v1387 = vpop.f32.mrb[0].mxu0
    %v1388 = vadd.f32 0.0, %v1387
    %v1389 = vpop.f32.mrb[0].mxu0
    %v1390 = vpop.f32.mrb[0].mxu0
    %1391 = vdwg.mxu0
    %v1396 = vrot.slane %v1345, 2
    %v1397 = vrot.slane %v1347, 2
    %v1398 = vrot.slane %v1386, 2
    %v1399 = vrot.slane %v1388, 2
    %v1404 = vadd.f32 %v187, %v1396
    %v1405 = vadd.f32 %v189, %v1397
    %v1406 = vadd.f32 %v230, %v1398
    %v1407 = vadd.f32 %v232, %v1399
    %v1408 = vxor.u32 %v1404, 2147483648
    %v1409 = vxor.u32 %v1405, 2147483648
    %v1410 = vxor.u32 %v1406, 2147483648
    %v1411 = vmul.f32 %v1408, 1.442695
    %v1412 = vpow.pop %v1411
    %v1413 = vmul.f32 %v1409, 1.442695
    %v1414 = vpow.pop %v1413
    %v1415 = vmul.f32 %v1410, 1.442695
    %v1416 = vpow.pop %v1415
    %v1417 = vadd.f32 %v1412, 1.0
    %v1418 = vadd.f32 %v1414, 1.0
    %v1419 = vadd.f32 %v1416, 1.0
    %v1420 = vrcp.pop %v1417
    %v1421 = vmul.f32 1.0, %v1420
    %v1422 = vrcp.pop %v1418
    %v1423 = vmul.f32 1.0, %v1422
    %v1424 = vrcp.pop %v1419
    %v1425 = vmul.f32 1.0, %v1424
    %v1426 = vtanh.pop %v1407
    %v1428 = vrot.slane %v1300, 6
    %v1430 = vmul.f32 %v1423, %v1428
    %v1431 = vmul.f32 %v1421, %v1426
    %v1432 = vadd.f32 %v1430, %v1431
    %v1433 = vtanh.pop %v1432
    %v1434 = vmul.f32 %v1425, %v1433
    %v1435 = vpack.c.bf16 %v1434, %v1434
    %v1437 = vrot.slane %v1435, 4
    %1439 = vst [vmem:[#allocation3] sm:$0x80] %v1437
    %s1440 = smul.u32 4, 16
    %s1441 = smul.u32 %s1440, 14
    %s1442 = sshll.u32 %s1441, 4
    %1443 = dma.done [#allocation5], %s1442
    %v1444 = vld [vmem:[#allocation3] sm:$0xff]
    %v1445 = vld [vmem:[#allocation2] sm:$0xff]
    %v1446 = vld [vmem:[#allocation2 + $0x8] sm:$0xff]
    %v1447 = vld [vmem:[#allocation2 + $0x10] sm:$0xff]
    %v1448 = vld [vmem:[#allocation2 + $0x18] sm:$0xff]
    %v1449 = vld [vmem:[#allocation2 + $0x70] sm:$0xff]
    %v1450 = vld [vmem:[#allocation2 + $0x78] sm:$0xff]
    %v1451 = vld [vmem:[#allocation2 + $0x80] sm:$0xff]
    %v1452 = vld [vmem:[#allocation2 + $0x88] sm:$0xff]
    %v1453 = vld [vmem:[#allocation2 + $0xe0] sm:$0xff]
    %v1454 = vld [vmem:[#allocation2 + $0xe8] sm:$0xff]
    %v1455 = vld [vmem:[#allocation2 + $0xf0] sm:$0xff]
    %v1456 = vld [vmem:[#allocation2 + $0xf8] sm:$0xff]
    %v1457 = vld [vmem:[#allocation2 + $0x150] sm:$0xff]
    %v1458 = vld [vmem:[#allocation2 + $0x158] sm:$0xff]
    %v1459 = vld [vmem:[#allocation2 + $0x160] sm:$0xff]
    %v1460 = vld [vmem:[#allocation2 + $0x168] sm:$0xff]
    %v1461 = vld [vmem:[#allocation2 + $0x1c0] sm:$0xff]
    %v1462 = vld [vmem:[#allocation2 + $0x1c8] sm:$0xff]
    %v1463 = vld [vmem:[#allocation2 + $0x1d0] sm:$0xff]
    %v1464 = vld [vmem:[#allocation2 + $0x1d8] sm:$0xff]
    %v1465 = vld [vmem:[#allocation2 + $0x230] sm:$0xff]
    %v1466 = vld [vmem:[#allocation2 + $0x238] sm:$0xff]
    %v1467 = vld [vmem:[#allocation2 + $0x240] sm:$0xff]
    %v1468 = vld [vmem:[#allocation2 + $0x248] sm:$0xff]
    %v1469 = vld [vmem:[#allocation2 + $0x2a0] sm:$0xff]
    %v1470 = vld [vmem:[#allocation2 + $0x2a8] sm:$0xff]
    %v1471 = vld [vmem:[#allocation2 + $0x2b0] sm:$0xff]
    %v1472 = vld [vmem:[#allocation2 + $0x2b8] sm:$0xff]
    %v1473 = vld [vmem:[#allocation2 + $0x310] sm:$0xff]
    %v1474 = vld [vmem:[#allocation2 + $0x318] sm:$0xff]
    %v1475 = vld [vmem:[#allocation2 + $0x320] sm:$0xff]
    %v1476 = vld [vmem:[#allocation2 + $0x328] sm:$0xff]
    %v1477 = vld [vmem:[%s5] sm:$0xf]
    %v1479 = vlaneseq
    %v1480 = vshrl.u32 %v1479, 7
    %v1481 = vsub.s32 0, %v1480
    %v1482 = vrot.slane %v1477, %v1481
    %v1483 = vlaneseq
    %v1484 = vshrl.u32 %v1483, 7
    %v1485 = vsub.s32 1, %v1484
    %v1486 = vrot.slane %v1477, %v1485
    %v1487 = vlaneseq
    %v1488 = vshrl.u32 %v1487, 7
    %v1489 = vsub.s32 2, %v1488
    %v1490 = vrot.slane %v1477, %v1489
    %v1491 = vlaneseq
    %v1492 = vshrl.u32 %v1491, 7
    %v1493 = vsub.s32 3, %v1492
    %v1494 = vrot.slane %v1477, %v1493
    %1499 = vmatprep.subr.bf16.mxu0 %v1446
    %1500 = vmatpush1.bf16.msra.mxu0 %v1445
    %1501 = vmatprep.subr.bf16.mxu0 %v1450
    %1502 = vmatpush1.bf16.msra.mxu0 %v1449
    %1503 = vmatprep.subr.bf16.mxu0 %v1454
    %1504 = vmatpush1.bf16.msra.mxu0 %v1453
    %1505 = vmatprep.subr.bf16.mxu0 %v1458
    %1506 = vmatpush1.bf16.msra.mxu0 %v1457
    %1507 = vmatprep.subr.bf16.mxu0 %v1462
    %1508 = vmatpush1.bf16.msra.mxu0 %v1461
    %1509 = vmatprep.subr.bf16.mxu0 %v1466
    %1510 = vmatpush1.bf16.msra.mxu0 %v1465
    %1511 = vmatprep.subr.bf16.mxu0 %v1470
    %1512 = vmatpush1.bf16.msra.mxu0 %v1469
    %1513 = vmatprep.subr.bf16.mxu0 %v1474
    %1514 = vmatpush1.bf16.msra.mxu0 %v1473
    %1515 = vmatprep.subr.bf16.mxu0 0
    %1516 = vmatpush1.bf16.msra.mxu0 0
    %1517 = vmatprep.subr.bf16.mxu0 0
    %1518 = vmatpush1.bf16.msra.mxu0 0
    %1519 = vmatprep.subr.bf16.mxu0 0
    %1520 = vmatpush1.bf16.msra.mxu0 0
    %1521 = vmatprep.subr.bf16.mxu0 0
    %1522 = vmatpush1.bf16.msra.mxu0 0
    %1523 = vmatprep.subr.bf16.mxu0 0
    %1524 = vmatpush1.bf16.msra.mxu0 0
    %1525 = vmatprep.subr.bf16.mxu0 0
    %1526 = vmatpush1.bf16.msra.mxu0 0
    %1527 = vmatprep.subr.bf16.mxu0 0
    %1528 = vmatpush1.bf16.msra.mxu0 0
    %1529 = vmatprep.subr.bf16.mxu0 0
    %1530 = vmatpush1.bf16.msra.mxu0 0
    %1531 = vmatprep.mubr.bf16.mxu0 0
    %1532 = vmatmul.mubr.bf16.gmra.mrb[0].mxu0 %v1444
    %v1533 = vpop.f32.mrb[0].mxu0
    %v1534 = vadd.f32 %v1482, %v1533
    %v1535 = vpop.f32.mrb[0].mxu0
    %v1536 = vadd.f32 %v1486, %v1535
    %v1537 = vpop.f32.mrb[0].mxu0
    %v1538 = vadd.f32 %v1482, %v1537
    %v1539 = vpop.f32.mrb[0].mxu0
    %v1540 = vadd.f32 %v1486, %v1539
    %1541 = vdwg.mxu0
    %1542 = vmatprep.subr.bf16.mxu0 %v1448
    %1543 = vmatpush1.bf16.msra.mxu0 %v1447
    %1544 = vmatprep.subr.bf16.mxu0 %v1452
    %1545 = vmatpush1.bf16.msra.mxu0 %v1451
    %1546 = vmatprep.subr.bf16.mxu0 %v1456
    %1547 = vmatpush1.bf16.msra.mxu0 %v1455
    %1548 = vmatprep.subr.bf16.mxu0 %v1460
    %1549 = vmatpush1.bf16.msra.mxu0 %v1459
    %1550 = vmatprep.subr.bf16.mxu0 %v1464
    %1551 = vmatpush1.bf16.msra.mxu0 %v1463
    %1552 = vmatprep.subr.bf16.mxu0 %v1468
    %1553 = vmatpush1.bf16.msra.mxu0 %v1467
    %1554 = vmatprep.subr.bf16.mxu0 %v1472
    %1555 = vmatpush1.bf16.msra.mxu0 %v1471
    %1556 = vmatprep.subr.bf16.mxu0 %v1476
    %1557 = vmatpush1.bf16.msra.mxu0 %v1475
    %1558 = vmatprep.subr.bf16.mxu0 0
    %1559 = vmatpush1.bf16.msra.mxu0 0
    %1560 = vmatprep.subr.bf16.mxu0 0
    %1561 = vmatpush1.bf16.msra.mxu0 0
    %1562 = vmatprep.subr.bf16.mxu0 0
    %1563 = vmatpush1.bf16.msra.mxu0 0
    %1564 = vmatprep.subr.bf16.mxu0 0
    %1565 = vmatpush1.bf16.msra.mxu0 0
    %1566 = vmatprep.subr.bf16.mxu0 0
    %1567 = vmatpush1.bf16.msra.mxu0 0
    %1568 = vmatprep.subr.bf16.mxu0 0
    %1569 = vmatpush1.bf16.msra.mxu0 0
    %1570 = vmatprep.subr.bf16.mxu0 0
    %1571 = vmatpush1.bf16.msra.mxu0 0
    %1572 = vmatprep.subr.bf16.mxu0 0
    %1573 = vmatpush1.bf16.msra.mxu0 0
    %1574 = vmatprep.mubr.bf16.mxu0 0
    %1575 = vmatmul.mubr.bf16.gmra.mrb[0].mxu0 %v1444
    %v1576 = vpop.f32.mrb[0].mxu0
    %v1577 = vadd.f32 %v1490, %v1576
    %v1578 = vpop.f32.mrb[0].mxu0
    %v1579 = vadd.f32 %v1494, %v1578
    %v1580 = vpop.f32.mrb[0].mxu0
    %v1581 = vadd.f32 %v1490, %v1580
    %v1582 = vpop.f32.mrb[0].mxu0
    %v1583 = vadd.f32 %v1494, %v1582
    %1584 = vdwg.mxu0
    %v1585 = vld [vmem:[#allocation2 + $0x20] sm:$0xff]
    %v1586 = vld [vmem:[#allocation2 + $0x28] sm:$0xff]
    %v1587 = vld [vmem:[#allocation2 + $0x30] sm:$0xff]
    %v1588 = vld [vmem:[#allocation2 + $0x38] sm:$0xff]
    %v1589 = vld [vmem:[#allocation2 + $0x90] sm:$0xff]
    %v1590 = vld [vmem:[#allocation2 + $0x98] sm:$0xff]
    %v1591 = vld [vmem:[#allocation2 + $0xa0] sm:$0xff]
    %v1592 = vld [vmem:[#allocation2 + $0xa8] sm:$0xff]
    %v1593 = vld [vmem:[#allocation2 + $0x100] sm:$0xff]
    %v1594 = vld [vmem:[#allocation2 + $0x108] sm:$0xff]
    %v1595 = vld [vmem:[#allocation2 + $0x110] sm:$0xff]
    %v1596 = vld [vmem:[#allocation2 + $0x118] sm:$0xff]
    %v1597 = vld [vmem:[#allocation2 + $0x170] sm:$0xff]
    %v1598 = vld [vmem:[#allocation2 + $0x178] sm:$0xff]
    %v1599 = vld [vmem:[#allocation2 + $0x180] sm:$0xff]
    %v1600 = vld [vmem:[#allocation2 + $0x188] sm:$0xff]
    %v1601 = vld [vmem:[#allocation2 + $0x1e0] sm:$0xff]
    %v1602 = vld [vmem:[#allocation2 + $0x1e8] sm:$0xff]
    %v1603 = vld [vmem:[#allocation2 + $0x1f0] sm:$0xff]
    %v1604 = vld [vmem:[#allocation2 + $0x1f8] sm:$0xff]
    %v1605 = vld [vmem:[#allocation2 + $0x250] sm:$0xff]
    %v1606 = vld [vmem:[#allocation2 + $0x258] sm:$0xff]
    %v1607 = vld [vmem:[#allocation2 + $0x260] sm:$0xff]
    %v1608 = vld [vmem:[#allocation2 + $0x268] sm:$0xff]
    %v1609 = vld [vmem:[#allocation2 + $0x2c0] sm:$0xff]
    %v1610 = vld [vmem:[#allocation2 + $0x2c8] sm:$0xff]
    %v1611 = vld [vmem:[#allocation2 + $0x2d0] sm:$0xff]
    %v1612 = vld [vmem:[#allocation2 + $0x2d8] sm:$0xff]
    %v1613 = vld [vmem:[#allocation2 + $0x330] sm:$0xff]
    %v1614 = vld [vmem:[#allocation2 + $0x338] sm:$0xff]
    %v1615 = vld [vmem:[#allocation2 + $0x340] sm:$0xff]
    %v1616 = vld [vmem:[#allocation2 + $0x348] sm:$0xff]
    %1617 = vmatprep.subr.bf16.mxu0 %v1586
    %1618 = vmatpush1.bf16.msra.mxu0 %v1585
    %1619 = vmatprep.subr.bf16.mxu0 %v1590
    %1620 = vmatpush1.bf16.msra.mxu0 %v1589
    %1621 = vmatprep.subr.bf16.mxu0 %v1594
    %1622 = vmatpush1.bf16.msra.mxu0 %v1593
    %1623 = vmatprep.subr.bf16.mxu0 %v1598
    %1624 = vmatpush1.bf16.msra.mxu0 %v1597
    %1625 = vmatprep.subr.bf16.mxu0 %v1602
    %1626 = vmatpush1.bf16.msra.mxu0 %v1601
    %1627 = vmatprep.subr.bf16.mxu0 %v1606
    %1628 = vmatpush1.bf16.msra.mxu0 %v1605
    %1629 = vmatprep.subr.bf16.mxu0 %v1610
    %1630 = vmatpush1.bf16.msra.mxu0 %v1609
    %1631 = vmatprep.subr.bf16.mxu0 %v1614
    %1632 = vmatpush1.bf16.msra.mxu0 %v1613
    %1633 = vmatprep.subr.bf16.mxu0 0
    %1634 = vmatpush1.bf16.msra.mxu0 0
    %1635 = vmatprep.subr.bf16.mxu0 0
    %1636 = vmatpush1.bf16.msra.mxu0 0
    %1637 = vmatprep.subr.bf16.mxu0 0
    %1638 = vmatpush1.bf16.msra.mxu0 0
    %1639 = vmatprep.subr.bf16.mxu0 0
    %1640 = vmatpush1.bf16.msra.mxu0 0
    %1641 = vmatprep.subr.bf16.mxu0 0
    %1642 = vmatpush1.bf16.msra.mxu0 0
    %1643 = vmatprep.subr.bf16.mxu0 0
    %1644 = vmatpush1.bf16.msra.mxu0 0
    %1645 = vmatprep.subr.bf16.mxu0 0
    %1646 = vmatpush1.bf16.msra.mxu0 0
    %1647 = vmatprep.subr.bf16.mxu0 0
    %1648 = vmatpush1.bf16.msra.mxu0 0
    %1649 = vmatprep.mubr.bf16.mxu0 0
    %1650 = vmatmul.mubr.bf16.gmra.mrb[0].mxu0 0
    %v1651 = vpop.f32.mrb[0].mxu0
    %v1652 = vadd.f32 0.0, %v1651
    %v1653 = vpop.f32.mrb[0].mxu0
    %v1654 = vadd.f32 0.0, %v1653
    %v1655 = vpop.f32.mrb[0].mxu0
    %v1656 = vpop.f32.mrb[0].mxu0
    %1657 = vdwg.mxu0
    %1658 = vmatprep.subr.bf16.mxu0 %v1588
    %1659 = vmatpush1.bf16.msra.mxu0 %v1587
    %1660 = vmatprep.subr.bf16.mxu0 %v1592
    %1661 = vmatpush1.bf16.msra.mxu0 %v1591
    %1662 = vmatprep.subr.bf16.mxu0 %v1596
    %1663 = vmatpush1.bf16.msra.mxu0 %v1595
    %1664 = vmatprep.subr.bf16.mxu0 %v1600
    %1665 = vmatpush1.bf16.msra.mxu0 %v1599
    %1666 = vmatprep.subr.bf16.mxu0 %v1604
    %1667 = vmatpush1.bf16.msra.mxu0 %v1603
    %1668 = vmatprep.subr.bf16.mxu0 %v1608
    %1669 = vmatpush1.bf16.msra.mxu0 %v1607
    %1670 = vmatprep.subr.bf16.mxu0 %v1612
    %1671 = vmatpush1.bf16.msra.mxu0 %v1611
    %1672 = vmatprep.subr.bf16.mxu0 %v1616
    %1673 = vmatpush1.bf16.msra.mxu0 %v1615
    %1674 = vmatprep.subr.bf16.mxu0 0
    %1675 = vmatpush1.bf16.msra.mxu0 0
    %1676 = vmatprep.subr.bf16.mxu0 0
    %1677 = vmatpush1.bf16.msra.mxu0 0
    %1678 = vmatprep.subr.bf16.mxu0 0
    %1679 = vmatpush1.bf16.msra.mxu0 0
    %1680 = vmatprep.subr.bf16.mxu0 0
    %1681 = vmatpush1.bf16.msra.mxu0 0
    %1682 = vmatprep.subr.bf16.mxu0 0
    %1683 = vmatpush1.bf16.msra.mxu0 0
    %1684 = vmatprep.subr.bf16.mxu0 0
    %1685 = vmatpush1.bf16.msra.mxu0 0
    %1686 = vmatprep.subr.bf16.mxu0 0
    %1687 = vmatpush1.bf16.msra.mxu0 0
    %1688 = vmatprep.subr.bf16.mxu0 0
    %1689 = vmatpush1.bf16.msra.mxu0 0
    %1690 = vmatprep.mubr.bf16.mxu0 0
    %1691 = vmatmul.mubr.bf16.gmra.mrb[0].mxu0 0
    %v1692 = vpop.f32.mrb[0].mxu0
    %v1693 = vadd.f32 0.0, %v1692
    %v1694 = vpop.f32.mrb[0].mxu0
    %v1695 = vadd.f32 0.0, %v1694
    %v1696 = vpop.f32.mrb[0].mxu0
    %v1697 = vpop.f32.mrb[0].mxu0
    %1698 = vdwg.mxu0
    %v1699 = vadd.f32 %v1534, %v1652
    %v1700 = vadd.f32 %v1536, %v1654
    %v1701 = vadd.f32 %v1577, %v1693
    %v1702 = vadd.f32 %v1579, %v1695
    %v1703 = vxor.u32 %v1699, 2147483648
    %v1704 = vxor.u32 %v1700, 2147483648
    %v1705 = vxor.u32 %v1701, 2147483648
    %v1706 = vmul.f32 %v1703, 1.442695
    %v1707 = vpow.pop %v1706
    %v1708 = vmul.f32 %v1704, 1.442695
    %v1709 = vpow.pop %v1708
    %v1710 = vmul.f32 %v1705, 1.442695
    %v1711 = vpow.pop %v1710
    %v1712 = vadd.f32 %v1707, 1.0
    %v1713 = vadd.f32 %v1709, 1.0
    %v1714 = vadd.f32 %v1711, 1.0
    %v1715 = vrcp.pop %v1712
    %v1716 = vmul.f32 1.0, %v1715
    %v1717 = vrcp.pop %v1713
    %v1718 = vmul.f32 1.0, %v1717
    %v1719 = vrcp.pop %v1714
    %v1720 = vmul.f32 1.0, %v1719
    %v1721 = vtanh.pop %v1702
    %v1722 = vmul.f32 %v1718, 0.0
    %v1723 = vmul.f32 %v1716, %v1721
    %v1724 = vadd.f32 %v1722, %v1723
    %v1725 = vtanh.pop %v1724
    %v1726 = vmul.f32 %v1720, %v1725
    %v1727 = vpack.c.bf16 %v1726, %v1726
    %1728 = vst [vmem:[#allocation4] sm:$0x1] %v1727
    %1729 = vmatprep.subr.bf16.mxu0 %v1586
    %1730 = vmatpush1.bf16.msra.mxu0 %v1585
    %1731 = vmatprep.subr.bf16.mxu0 %v1590
    %1732 = vmatpush1.bf16.msra.mxu0 %v1589
    %1733 = vmatprep.subr.bf16.mxu0 %v1594
    %1734 = vmatpush1.bf16.msra.mxu0 %v1593
    %1735 = vmatprep.subr.bf16.mxu0 %v1598
    %1736 = vmatpush1.bf16.msra.mxu0 %v1597
    %1737 = vmatprep.subr.bf16.mxu0 %v1602
    %1738 = vmatpush1.bf16.msra.mxu0 %v1601
    %1739 = vmatprep.subr.bf16.mxu0 %v1606
    %1740 = vmatpush1.bf16.msra.mxu0 %v1605
    %1741 = vmatprep.subr.bf16.mxu0 %v1610
    %1742 = vmatpush1.bf16.msra.mxu0 %v1609
    %1743 = vmatprep.subr.bf16.mxu0 %v1614
    %1744 = vmatpush1.bf16.msra.mxu0 %v1613
    %1745 = vmatprep.subr.bf16.mxu0 0
    %1746 = vmatpush1.bf16.msra.mxu0 0
    %1747 = vmatprep.subr.bf16.mxu0 0
    %1748 = vmatpush1.bf16.msra.mxu0 0
    %1749 = vmatprep.subr.bf16.mxu0 0
    %1750 = vmatpush1.bf16.msra.mxu0 0
    %1751 = vmatprep.subr.bf16.mxu0 0
    %1752 = vmatpush1.bf16.msra.mxu0 0
    %1753 = vmatprep.subr.bf16.mxu0 0
    %1754 = vmatpush1.bf16.msra.mxu0 0
    %1755 = vmatprep.subr.bf16.mxu0 0
    %1756 = vmatpush1.bf16.msra.mxu0 0
    %1757 = vmatprep.subr.bf16.mxu0 0
    %1758 = vmatpush1.bf16.msra.mxu0 0
    %1759 = vmatprep.subr.bf16.mxu0 0
    %1760 = vmatpush1.bf16.msra.mxu0 0
    %1761 = vmatprep.mubr.bf16.mxu0 0
    %1762 = vmatmul.mubr.bf16.gmra.mrb[0].mxu0 %v1727
    %v1763 = vpop.f32.mrb[0].mxu0
    %v1764 = vadd.f32 0.0, %v1763
    %v1765 = vpop.f32.mrb[0].mxu0
    %v1766 = vadd.f32 0.0, %v1765
    %v1767 = vpop.f32.mrb[0].mxu0
    %v1768 = vpop.f32.mrb[0].mxu0
    %1769 = vdwg.mxu0
    %1770 = vmatprep.subr.bf16.mxu0 %v1588
    %1771 = vmatpush1.bf16.msra.mxu0 %v1587
    %1772 = vmatprep.subr.bf16.mxu0 %v1592
    %1773 = vmatpush1.bf16.msra.mxu0 %v1591
    %1774 = vmatprep.subr.bf16.mxu0 %v1596
    %1775 = vmatpush1.bf16.msra.mxu0 %v1595
    %1776 = vmatprep.subr.bf16.mxu0 %v1600
    %1777 = vmatpush1.bf16.msra.mxu0 %v1599
    %1778 = vmatprep.subr.bf16.mxu0 %v1604
    %1779 = vmatpush1.bf16.msra.mxu0 %v1603
    %1780 = vmatprep.subr.bf16.mxu0 %v1608
    %1781 = vmatpush1.bf16.msra.mxu0 %v1607
    %1782 = vmatprep.subr.bf16.mxu0 %v1612
    %1783 = vmatpush1.bf16.msra.mxu0 %v1611
    %1784 = vmatprep.subr.bf16.mxu0 %v1616
    %1785 = vmatpush1.bf16.msra.mxu0 %v1615
    %1786 = vmatprep.subr.bf16.mxu0 0
    %1787 = vmatpush1.bf16.msra.mxu0 0
    %1788 = vmatprep.subr.bf16.mxu0 0
    %1789 = vmatpush1.bf16.msra.mxu0 0
    %1790 = vmatprep.subr.bf16.mxu0 0
    %1791 = vmatpush1.bf16.msra.mxu0 0
    %1792 = vmatprep.subr.bf16.mxu0 0
    %1793 = vmatpush1.bf16.msra.mxu0 0
    %1794 = vmatprep.subr.bf16.mxu0 0
    %1795 = vmatpush1.bf16.msra.mxu0 0
    %1796 = vmatprep.subr.bf16.mxu0 0
    %1797 = vmatpush1.bf16.msra.mxu0 0
    %1798 = vmatprep.subr.bf16.mxu0 0
    %1799 = vmatpush1.bf16.msra.mxu0 0
    %1800 = vmatprep.subr.bf16.mxu0 0
    %1801 = vmatpush1.bf16.msra.mxu0 0
    %1802 = vmatprep.mubr.bf16.mxu0 0
    %1803 = vmatmul.mubr.bf16.gmra.mrb[0].mxu0 %v1727
    %v1804 = vpop.f32.mrb[0].mxu0
    %v1805 = vadd.f32 0.0, %v1804
    %v1806 = vpop.f32.mrb[0].mxu0
    %v1807 = vadd.f32 0.0, %v1806
    %v1808 = vpop.f32.mrb[0].mxu0
    %v1809 = vpop.f32.mrb[0].mxu0
    %1810 = vdwg.mxu0
    %v1815 = vrot.slane %v1764, 6
    %v1816 = vrot.slane %v1766, 6
    %v1817 = vrot.slane %v1805, 6
    %v1818 = vrot.slane %v1807, 6
    %v1823 = vadd.f32 %v1534, %v1815
    %v1824 = vadd.f32 %v1536, %v1816
    %v1825 = vadd.f32 %v1577, %v1817
    %v1826 = vadd.f32 %v1579, %v1818
    %v1827 = vxor.u32 %v1823, 2147483648
    %v1828 = vxor.u32 %v1824, 2147483648
    %v1829 = vxor.u32 %v1825, 2147483648
    %v1830 = vmul.f32 %v1827, 1.442695
    %v1831 = vpow.pop %v1830
    %v1832 = vmul.f32 %v1828, 1.442695
    %v1833 = vpow.pop %v1832
    %v1834 = vmul.f32 %v1829, 1.442695
    %v1835 = vpow.pop %v1834
    %v1836 = vadd.f32 %v1831, 1.0
    %v1837 = vadd.f32 %v1833, 1.0
    %v1838 = vadd.f32 %v1835, 1.0
    %v1839 = vrcp.pop %v1836
    %v1840 = vmul.f32 1.0, %v1839
    %v1841 = vrcp.pop %v1837
    %v1842 = vmul.f32 1.0, %v1841
    %v1843 = vrcp.pop %v1838
    %v1844 = vmul.f32 1.0, %v1843
    %v1845 = vtanh.pop %v1826
    %v1847 = vrot.slane %v1724, 6
    %v1849 = vmul.f32 %v1842, %v1847
    %v1850 = vmul.f32 %v1840, %v1845
    %v1851 = vadd.f32 %v1849, %v1850
    %v1852 = vtanh.pop %v1851
    %v1853 = vmul.f32 %v1844, %v1852
    %v1854 = vpack.c.bf16 %v1853, %v1853
    %1855 = vst [vmem:[#allocation4] sm:$0x2] %v1854
    %v1857 = vrot.slane %v1854, 1
    %1859 = vmatprep.subr.bf16.mxu0 %v1586
    %1860 = vmatpush1.bf16.msra.mxu0 %v1585
    %1861 = vmatprep.subr.bf16.mxu0 %v1590
    %1862 = vmatpush1.bf16.msra.mxu0 %v1589
    %1863 = vmatprep.subr.bf16.mxu0 %v1594
    %1864 = vmatpush1.bf16.msra.mxu0 %v1593
    %1865 = vmatprep.subr.bf16.mxu0 %v1598
    %1866 = vmatpush1.bf16.msra.mxu0 %v1597
    %1867 = vmatprep.subr.bf16.mxu0 %v1602
    %1868 = vmatpush1.bf16.msra.mxu0 %v1601
    %1869 = vmatprep.subr.bf16.mxu0 %v1606
    %1870 = vmatpush1.bf16.msra.mxu0 %v1605
    %1871 = vmatprep.subr.bf16.mxu0 %v1610
    %1872 = vmatpush1.bf16.msra.mxu0 %v1609
    %1873 = vmatprep.subr.bf16.mxu0 %v1614
    %1874 = vmatpush1.bf16.msra.mxu0 %v1613
    %1875 = vmatprep.subr.bf16.mxu0 0
    %1876 = vmatpush1.bf16.msra.mxu0 0
    %1877 = vmatprep.subr.bf16.mxu0 0
    %1878 = vmatpush1.bf16.msra.mxu0 0
    %1879 = vmatprep.subr.bf16.mxu0 0
    %1880 = vmatpush1.bf16.msra.mxu0 0
    %1881 = vmatprep.subr.bf16.mxu0 0
    %1882 = vmatpush1.bf16.msra.mxu0 0
    %1883 = vmatprep.subr.bf16.mxu0 0
    %1884 = vmatpush1.bf16.msra.mxu0 0
    %1885 = vmatprep.subr.bf16.mxu0 0
    %1886 = vmatpush1.bf16.msra.mxu0 0
    %1887 = vmatprep.subr.bf16.mxu0 0
    %1888 = vmatpush1.bf16.msra.mxu0 0
    %1889 = vmatprep.subr.bf16.mxu0 0
    %1890 = vmatpush1.bf16.msra.mxu0 0
    %1891 = vmatprep.mubr.bf16.mxu0 0
    %1892 = vmatmul.mubr.bf16.gmra.mrb[0].mxu0 %v1857
    %v1893 = vpop.f32.mrb[0].mxu0
    %v1894 = vadd.f32 0.0, %v1893
    %v1895 = vpop.f32.mrb[0].mxu0
    %v1896 = vadd.f32 0.0, %v1895
    %v1897 = vpop.f32.mrb[0].mxu0
    %v1898 = vpop.f32.mrb[0].mxu0
    %1899 = vdwg.mxu0
    %1900 = vmatprep.subr.bf16.mxu0 %v1588
    %1901 = vmatpush1.bf16.msra.mxu0 %v1587
    %1902 = vmatprep.subr.bf16.mxu0 %v1592
    %1903 = vmatpush1.bf16.msra.mxu0 %v1591
    %1904 = vmatprep.subr.bf16.mxu0 %v1596
    %1905 = vmatpush1.bf16.msra.mxu0 %v1595
    %1906 = vmatprep.subr.bf16.mxu0 %v1600
    %1907 = vmatpush1.bf16.msra.mxu0 %v1599
    %1908 = vmatprep.subr.bf16.mxu0 %v1604
    %1909 = vmatpush1.bf16.msra.mxu0 %v1603
    %1910 = vmatprep.subr.bf16.mxu0 %v1608
    %1911 = vmatpush1.bf16.msra.mxu0 %v1607
    %1912 = vmatprep.subr.bf16.mxu0 %v1612
    %1913 = vmatpush1.bf16.msra.mxu0 %v1611
    %1914 = vmatprep.subr.bf16.mxu0 %v1616
    %1915 = vmatpush1.bf16.msra.mxu0 %v1615
    %1916 = vmatprep.subr.bf16.mxu0 0
    %1917 = vmatpush1.bf16.msra.mxu0 0
    %1918 = vmatprep.subr.bf16.mxu0 0
    %1919 = vmatpush1.bf16.msra.mxu0 0
    %1920 = vmatprep.subr.bf16.mxu0 0
    %1921 = vmatpush1.bf16.msra.mxu0 0
    %1922 = vmatprep.subr.bf16.mxu0 0
    %1923 = vmatpush1.bf16.msra.mxu0 0
    %1924 = vmatprep.subr.bf16.mxu0 0
    %1925 = vmatpush1.bf16.msra.mxu0 0
    %1926 = vmatprep.subr.bf16.mxu0 0
    %1927 = vmatpush1.bf16.msra.mxu0 0
    %1928 = vmatprep.subr.bf16.mxu0 0
    %1929 = vmatpush1.bf16.msra.mxu0 0
    %1930 = vmatprep.subr.bf16.mxu0 0
    %1931 = vmatpush1.bf16.msra.mxu0 0
    %1932 = vmatprep.mubr.bf16.mxu0 0
    %1933 = vmatmul.mubr.bf16.gmra.mrb[0].mxu0 %v1857
    %v1934 = vpop.f32.mrb[0].mxu0
    %v1935 = vadd.f32 0.0, %v1934
    %v1936 = vpop.f32.mrb[0].mxu0
    %v1937 = vadd.f32 0.0, %v1936
    %v1938 = vpop.f32.mrb[0].mxu0
    %v1939 = vpop.f32.mrb[0].mxu0
    %1940 = vdwg.mxu0
    %v1945 = vrot.slane %v1894, 4
    %v1946 = vrot.slane %v1896, 4
    %v1947 = vrot.slane %v1935, 4
    %v1948 = vrot.slane %v1937, 4
    %v1953 = vadd.f32 %v1534, %v1945
    %v1954 = vadd.f32 %v1536, %v1946
    %v1955 = vadd.f32 %v1577, %v1947
    %v1956 = vadd.f32 %v1579, %v1948
    %v1957 = vxor.u32 %v1953, 2147483648
    %v1958 = vxor.u32 %v1954, 2147483648
    %v1959 = vxor.u32 %v1955, 2147483648
    %v1960 = vmul.f32 %v1957, 1.442695
    %v1961 = vpow.pop %v1960
    %v1962 = vmul.f32 %v1958, 1.442695
    %v1963 = vpow.pop %v1962
    %v1964 = vmul.f32 %v1959, 1.442695
    %v1965 = vpow.pop %v1964
    %v1966 = vadd.f32 %v1961, 1.0
    %v1967 = vadd.f32 %v1963, 1.0
    %v1968 = vadd.f32 %v1965, 1.0
    %v1969 = vrcp.pop %v1966
    %v1970 = vmul.f32 1.0, %v1969
    %v1971 = vrcp.pop %v1967
    %v1972 = vmul.f32 1.0, %v1971
    %v1973 = vrcp.pop %v1968
    %v1974 = vmul.f32 1.0, %v1973
    %v1975 = vtanh.pop %v1956
    %v1977 = vrot.slane %v1851, 6
    %v1979 = vmul.f32 %v1972, %v1977
    %v1980 = vmul.f32 %v1970, %v1975
    %v1981 = vadd.f32 %v1979, %v1980
    %v1982 = vtanh.pop %v1981
    %v1983 = vmul.f32 %v1974, %v1982
    %v1984 = vpack.c.bf16 %v1983, %v1983
    %1985 = vst [vmem:[#allocation4] sm:$0x4] %v1984
    %v1987 = vrot.slane %v1984, 2
    %1989 = vmatprep.subr.bf16.mxu0 %v1586
    %1990 = vmatpush1.bf16.msra.mxu0 %v1585
    %1991 = vmatprep.subr.bf16.mxu0 %v1590
    %1992 = vmatpush1.bf16.msra.mxu0 %v1589
    %1993 = vmatprep.subr.bf16.mxu0 %v1594
    %1994 = vmatpush1.bf16.msra.mxu0 %v1593
    %1995 = vmatprep.subr.bf16.mxu0 %v1598
    %1996 = vmatpush1.bf16.msra.mxu0 %v1597
    %1997 = vmatprep.subr.bf16.mxu0 %v1602
    %1998 = vmatpush1.bf16.msra.mxu0 %v1601
    %1999 = vmatprep.subr.bf16.mxu0 %v1606
    %2000 = vmatpush1.bf16.msra.mxu0 %v1605
    %2001 = vmatprep.subr.bf16.mxu0 %v1610
    %2002 = vmatpush1.bf16.msra.mxu0 %v1609
    %2003 = vmatprep.subr.bf16.mxu0 %v1614
    %2004 = vmatpush1.bf16.msra.mxu0 %v1613
    %2005 = vmatprep.subr.bf16.mxu0 0
    %2006 = vmatpush1.bf16.msra.mxu0 0
    %2007 = vmatprep.subr.bf16.mxu0 0
    %2008 = vmatpush1.bf16.msra.mxu0 0
    %2009 = vmatprep.subr.bf16.mxu0 0
    %2010 = vmatpush1.bf16.msra.mxu0 0
    %2011 = vmatprep.subr.bf16.mxu0 0
    %2012 = vmatpush1.bf16.msra.mxu0 0
    %2013 = vmatprep.subr.bf16.mxu0 0
    %2014 = vmatpush1.bf16.msra.mxu0 0
    %2015 = vmatprep.subr.bf16.mxu0 0
    %2016 = vmatpush1.bf16.msra.mxu0 0
    %2017 = vmatprep.subr.bf16.mxu0 0
    %2018 = vmatpush1.bf16.msra.mxu0 0
    %2019 = vmatprep.subr.bf16.mxu0 0
    %2020 = vmatpush1.bf16.msra.mxu0 0
    %2021 = vmatprep.mubr.bf16.mxu0 0
    %2022 = vmatmul.mubr.bf16.gmra.mrb[0].mxu0 %v1987
    %v2023 = vpop.f32.mrb[0].mxu0
    %v2024 = vadd.f32 0.0, %v2023
    %v2025 = vpop.f32.mrb[0].mxu0
    %v2026 = vadd.f32 0.0, %v2025
    %v2027 = vpop.f32.mrb[0].mxu0
    %v2028 = vpop.f32.mrb[0].mxu0
    %2029 = vdwg.mxu0
    %2030 = vmatprep.subr.bf16.mxu0 %v1588
    %2031 = vmatpush1.bf16.msra.mxu0 %v1587
    %2032 = vmatprep.subr.bf16.mxu0 %v1592
    %2033 = vmatpush1.bf16.msra.mxu0 %v1591
    %2034 = vmatprep.subr.bf16.mxu0 %v1596
    %2035 = vmatpush1.bf16.msra.mxu0 %v1595
    %2036 = vmatprep.subr.bf16.mxu0 %v1600
    %2037 = vmatpush1.bf16.msra.mxu0 %v1599
    %2038 = vmatprep.subr.bf16.mxu0 %v1604
    %2039 = vmatpush1.bf16.msra.mxu0 %v1603
    %2040 = vmatprep.subr.bf16.mxu0 %v1608
    %2041 = vmatpush1.bf16.msra.mxu0 %v1607
    %2042 = vmatprep.subr.bf16.mxu0 %v1612
    %2043 = vmatpush1.bf16.msra.mxu0 %v1611
    %2044 = vmatprep.subr.bf16.mxu0 %v1616
    %2045 = vmatpush1.bf16.msra.mxu0 %v1615
    %2046 = vmatprep.subr.bf16.mxu0 0
    %2047 = vmatpush1.bf16.msra.mxu0 0
    %2048 = vmatprep.subr.bf16.mxu0 0
    %2049 = vmatpush1.bf16.msra.mxu0 0
    %2050 = vmatprep.subr.bf16.mxu0 0
    %2051 = vmatpush1.bf16.msra.mxu0 0
    %2052 = vmatprep.subr.bf16.mxu0 0
    %2053 = vmatpush1.bf16.msra.mxu0 0
    %2054 = vmatprep.subr.bf16.mxu0 0
    %2055 = vmatpush1.bf16.msra.mxu0 0
    %2056 = vmatprep.subr.bf16.mxu0 0
    %2057 = vmatpush1.bf16.msra.mxu0 0
    %2058 = vmatprep.subr.bf16.mxu0 0
    %2059 = vmatpush1.bf16.msra.mxu0 0
    %2060 = vmatprep.subr.bf16.mxu0 0
    %2061 = vmatpush1.bf16.msra.mxu0 0
    %2062 = vmatprep.mubr.bf16.mxu0 0
    %2063 = vmatmul.mubr.bf16.gmra.mrb[0].mxu0 %v1987
    %v2064 = vpop.f32.mrb[0].mxu0
    %v2065 = vadd.f32 0.0, %v2064
    %v2066 = vpop.f32.mrb[0].mxu0
    %v2067 = vadd.f32 0.0, %v2066
    %v2068 = vpop.f32.mrb[0].mxu0
    %v2069 = vpop.f32.mrb[0].mxu0
    %2070 = vdwg.mxu0
    %v2075 = vrot.slane %v2024, 2
    %v2076 = vrot.slane %v2026, 2
    %v2077 = vrot.slane %v2065, 2
    %v2078 = vrot.slane %v2067, 2
    %v2083 = vadd.f32 %v1534, %v2075
    %v2084 = vadd.f32 %v1536, %v2076
    %v2085 = vadd.f32 %v1577, %v2077
    %v2086 = vadd.f32 %v1579, %v2078
    %v2087 = vxor.u32 %v2083, 2147483648
    %v2088 = vxor.u32 %v2084, 2147483648
    %v2089 = vxor.u32 %v2085, 2147483648
    %v2090 = vmul.f32 %v2087, 1.442695
    %v2091 = vpow.pop %v2090
    %v2092 = vmul.f32 %v2088, 1.442695
    %v2093 = vpow.pop %v2092
    %v2094 = vmul.f32 %v2089, 1.442695
    %v2095 = vpow.pop %v2094
    %v2096 = vadd.f32 %v2091, 1.0
    %v2097 = vadd.f32 %v2093, 1.0
    %v2098 = vadd.f32 %v2095, 1.0
    %v2099 = vrcp.pop %v2096
    %v2100 = vmul.f32 1.0, %v2099
    %v2101 = vrcp.pop %v2097
    %v2102 = vmul.f32 1.0, %v2101
    %v2103 = vrcp.pop %v2098
    %v2104 = vmul.f32 1.0, %v2103
    %v2105 = vtanh.pop %v2086
    %v2107 = vrot.slane %v1981, 6
    %v2109 = vmul.f32 %v2102, %v2107
    %v2110 = vmul.f32 %v2100, %v2105
    %v2111 = vadd.f32 %v2109, %v2110
    %v2112 = vtanh.pop %v2111
    %v2113 = vmul.f32 %v2104, %v2112
    %v2114 = vpack.c.bf16 %v2113, %v2113
    %2115 = vst [vmem:[#allocation4] sm:$0x8] %v2114
    %v2117 = vrot.slane %v2114, 3
    %2119 = vmatprep.subr.bf16.mxu0 %v1586
    %2120 = vmatpush1.bf16.msra.mxu0 %v1585
    %2121 = vmatprep.subr.bf16.mxu0 %v1590
    %2122 = vmatpush1.bf16.msra.mxu0 %v1589
    %2123 = vmatprep.subr.bf16.mxu0 %v1594
    %2124 = vmatpush1.bf16.msra.mxu0 %v1593
    %2125 = vmatprep.subr.bf16.mxu0 %v1598
    %2126 = vmatpush1.bf16.msra.mxu0 %v1597
    %2127 = vmatprep.subr.bf16.mxu0 %v1602
    %2128 = vmatpush1.bf16.msra.mxu0 %v1601
    %2129 = vmatprep.subr.bf16.mxu0 %v1606
    %2130 = vmatpush1.bf16.msra.mxu0 %v1605
    %2131 = vmatprep.subr.bf16.mxu0 %v1610
    %2132 = vmatpush1.bf16.msra.mxu0 %v1609
    %2133 = vmatprep.subr.bf16.mxu0 %v1614
    %2134 = vmatpush1.bf16.msra.mxu0 %v1613
    %2135 = vmatprep.subr.bf16.mxu0 0
    %2136 = vmatpush1.bf16.msra.mxu0 0
    %2137 = vmatprep.subr.bf16.mxu0 0
    %2138 = vmatpush1.bf16.msra.mxu0 0
    %2139 = vmatprep.subr.bf16.mxu0 0
    %2140 = vmatpush1.bf16.msra.mxu0 0
    %2141 = vmatprep.subr.bf16.mxu0 0
    %2142 = vmatpush1.bf16.msra.mxu0 0
    %2143 = vmatprep.subr.bf16.mxu0 0
    %2144 = vmatpush1.bf16.msra.mxu0 0
    %2145 = vmatprep.subr.bf16.mxu0 0
    %2146 = vmatpush1.bf16.msra.mxu0 0
    %2147 = vmatprep.subr.bf16.mxu0 0
    %2148 = vmatpush1.bf16.msra.mxu0 0
    %2149 = vmatprep.subr.bf16.mxu0 0
    %2150 = vmatpush1.bf16.msra.mxu0 0
    %2151 = vmatprep.mubr.bf16.mxu0 0
    %2152 = vmatmul.mubr.bf16.gmra.mrb[0].mxu0 %v2117
    %v2153 = vpop.f32.mrb[0].mxu0
    %v2154 = vadd.f32 0.0, %v2153
    %v2155 = vpop.f32.mrb[0].mxu0
    %v2156 = vadd.f32 0.0, %v2155
    %v2157 = vpop.f32.mrb[0].mxu0
    %v2158 = vpop.f32.mrb[0].mxu0
    %2159 = vdwg.mxu0
    %2160 = vmatprep.subr.bf16.mxu0 %v1588
    %2161 = vmatpush1.bf16.msra.mxu0 %v1587
    %2162 = vmatprep.subr.bf16.mxu0 %v1592
    %2163 = vmatpush1.bf16.msra.mxu0 %v1591
    %2164 = vmatprep.subr.bf16.mxu0 %v1596
    %2165 = vmatpush1.bf16.msra.mxu0 %v1595
    %2166 = vmatprep.subr.bf16.mxu0 %v1600
    %2167 = vmatpush1.bf16.msra.mxu0 %v1599
    %2168 = vmatprep.subr.bf16.mxu0 %v1604
    %2169 = vmatpush1.bf16.msra.mxu0 %v1603
    %2170 = vmatprep.subr.bf16.mxu0 %v1608
    %2171 = vmatpush1.bf16.msra.mxu0 %v1607
    %2172 = vmatprep.subr.bf16.mxu0 %v1612
    %2173 = vmatpush1.bf16.msra.mxu0 %v1611
    %2174 = vmatprep.subr.bf16.mxu0 %v1616
    %2175 = vmatpush1.bf16.msra.mxu0 %v1615
    %2176 = vmatprep.subr.bf16.mxu0 0
    %2177 = vmatpush1.bf16.msra.mxu0 0
    %2178 = vmatprep.subr.bf16.mxu0 0
    %2179 = vmatpush1.bf16.msra.mxu0 0
    %2180 = vmatprep.subr.bf16.mxu0 0
    %2181 = vmatpush1.bf16.msra.mxu0 0
    %2182 = vmatprep.subr.bf16.mxu0 0
    %2183 = vmatpush1.bf16.msra.mxu0 0
    %2184 = vmatprep.subr.bf16.mxu0 0
    %2185 = vmatpush1.bf16.msra.mxu0 0
    %2186 = vmatprep.subr.bf16.mxu0 0
    %2187 = vmatpush1.bf16.msra.mxu0 0
    %2188 = vmatprep.subr.bf16.mxu0 0
    %2189 = vmatpush1.bf16.msra.mxu0 0
    %2190 = vmatprep.subr.bf16.mxu0 0
    %2191 = vmatpush1.bf16.msra.mxu0 0
    %2192 = vmatprep.mubr.bf16.mxu0 0
    %2193 = vmatmul.mubr.bf16.gmra.mrb[0].mxu0 %v2117
    %v2194 = vpop.f32.mrb[0].mxu0
    %v2195 = vadd.f32 0.0, %v2194
    %v2196 = vpop.f32.mrb[0].mxu0
    %v2197 = vadd.f32 0.0, %v2196
    %v2198 = vpop.f32.mrb[0].mxu0
    %v2199 = vpop.f32.mrb[0].mxu0
    %2200 = vdwg.mxu0
    %v2201 = vadd.f32 %v1538, %v2154
    %v2202 = vadd.f32 %v1540, %v2156
    %v2203 = vadd.f32 %v1581, %v2195
    %v2204 = vadd.f32 %v1583, %v2197
    %v2205 = vxor.u32 %v2201, 2147483648
    %v2206 = vxor.u32 %v2202, 2147483648
    %v2207 = vxor.u32 %v2203, 2147483648
    %v2208 = vmul.f32 %v2205, 1.442695
    %v2209 = vpow.pop %v2208
    %v2210 = vmul.f32 %v2206, 1.442695
    %v2211 = vpow.pop %v2210
    %v2212 = vmul.f32 %v2207, 1.442695
    %v2213 = vpow.pop %v2212
    %v2214 = vadd.f32 %v2209, 1.0
    %v2215 = vadd.f32 %v2211, 1.0
    %v2216 = vadd.f32 %v2213, 1.0
    %v2217 = vrcp.pop %v2214
    %v2218 = vmul.f32 1.0, %v2217
    %v2219 = vrcp.pop %v2215
    %v2220 = vmul.f32 1.0, %v2219
    %v2221 = vrcp.pop %v2216
    %v2222 = vmul.f32 1.0, %v2221
    %v2223 = vtanh.pop %v2204
    %v2225 = vrot.slane %v2111, 6
    %v2227 = vmul.f32 %v2220, %v2225
    %v2228 = vmul.f32 %v2218, %v2223
    %v2229 = vadd.f32 %v2227, %v2228
    %v2230 = vtanh.pop %v2229
    %v2231 = vmul.f32 %v2222, %v2230
    %v2232 = vpack.c.bf16 %v2231, %v2231
    %v2234 = vrot.slane %v2232, 4
    %2236 = vst [vmem:[#allocation4] sm:$0x10] %v2234
    %2237 = vmatprep.subr.bf16.mxu0 %v1586
    %2238 = vmatpush1.bf16.msra.mxu0 %v1585
    %2239 = vmatprep.subr.bf16.mxu0 %v1590
    %2240 = vmatpush1.bf16.msra.mxu0 %v1589
    %2241 = vmatprep.subr.bf16.mxu0 %v1594
    %2242 = vmatpush1.bf16.msra.mxu0 %v1593
    %2243 = vmatprep.subr.bf16.mxu0 %v1598
    %2244 = vmatpush1.bf16.msra.mxu0 %v1597
    %2245 = vmatprep.subr.bf16.mxu0 %v1602
    %2246 = vmatpush1.bf16.msra.mxu0 %v1601
    %2247 = vmatprep.subr.bf16.mxu0 %v1606
    %2248 = vmatpush1.bf16.msra.mxu0 %v1605
    %2249 = vmatprep.subr.bf16.mxu0 %v1610
    %2250 = vmatpush1.bf16.msra.mxu0 %v1609
    %2251 = vmatprep.subr.bf16.mxu0 %v1614
    %2252 = vmatpush1.bf16.msra.mxu0 %v1613
    %2253 = vmatprep.subr.bf16.mxu0 0
    %2254 = vmatpush1.bf16.msra.mxu0 0
    %2255 = vmatprep.subr.bf16.mxu0 0
    %2256 = vmatpush1.bf16.msra.mxu0 0
    %2257 = vmatprep.subr.bf16.mxu0 0
    %2258 = vmatpush1.bf16.msra.mxu0 0
    %2259 = vmatprep.subr.bf16.mxu0 0
    %2260 = vmatpush1.bf16.msra.mxu0 0
    %2261 = vmatprep.subr.bf16.mxu0 0
    %2262 = vmatpush1.bf16.msra.mxu0 0
    %2263 = vmatprep.subr.bf16.mxu0 0
    %2264 = vmatpush1.bf16.msra.mxu0 0
    %2265 = vmatprep.subr.bf16.mxu0 0
    %2266 = vmatpush1.bf16.msra.mxu0 0
    %2267 = vmatprep.subr.bf16.mxu0 0
    %2268 = vmatpush1.bf16.msra.mxu0 0
    %2269 = vmatprep.mubr.bf16.mxu0 0
    %2270 = vmatmul.mubr.bf16.gmra.mrb[0].mxu0 %v2232
    %v2271 = vpop.f32.mrb[0].mxu0
    %v2272 = vadd.f32 0.0, %v2271
    %v2273 = vpop.f32.mrb[0].mxu0
    %v2274 = vadd.f32 0.0, %v2273
    %v2275 = vpop.f32.mrb[0].mxu0
    %v2276 = vpop.f32.mrb[0].mxu0
    %2277 = vdwg.mxu0
    %2278 = vmatprep.subr.bf16.mxu0 %v1588
    %2279 = vmatpush1.bf16.msra.mxu0 %v1587
    %2280 = vmatprep.subr.bf16.mxu0 %v1592
    %2281 = vmatpush1.bf16.msra.mxu0 %v1591
    %2282 = vmatprep.subr.bf16.mxu0 %v1596
    %2283 = vmatpush1.bf16.msra.mxu0 %v1595
    %2284 = vmatprep.subr.bf16.mxu0 %v1600
    %2285 = vmatpush1.bf16.msra.mxu0 %v1599
    %2286 = vmatprep.subr.bf16.mxu0 %v1604
    %2287 = vmatpush1.bf16.msra.mxu0 %v1603
    %2288 = vmatprep.subr.bf16.mxu0 %v1608
    %2289 = vmatpush1.bf16.msra.mxu0 %v1607
    %2290 = vmatprep.subr.bf16.mxu0 %v1612
    %2291 = vmatpush1.bf16.msra.mxu0 %v1611
    %2292 = vmatprep.subr.bf16.mxu0 %v1616
    %2293 = vmatpush1.bf16.msra.mxu0 %v1615
    %2294 = vmatprep.subr.bf16.mxu0 0
    %2295 = vmatpush1.bf16.msra.mxu0 0
    %2296 = vmatprep.subr.bf16.mxu0 0
    %2297 = vmatpush1.bf16.msra.mxu0 0
    %2298 = vmatprep.subr.bf16.mxu0 0
    %2299 = vmatpush1.bf16.msra.mxu0 0
    %2300 = vmatprep.subr.bf16.mxu0 0
    %2301 = vmatpush1.bf16.msra.mxu0 0
    %2302 = vmatprep.subr.bf16.mxu0 0
    %2303 = vmatpush1.bf16.msra.mxu0 0
    %2304 = vmatprep.subr.bf16.mxu0 0
    %2305 = vmatpush1.bf16.msra.mxu0 0
    %2306 = vmatprep.subr.bf16.mxu0 0
    %2307 = vmatpush1.bf16.msra.mxu0 0
    %2308 = vmatprep.subr.bf16.mxu0 0
    %2309 = vmatpush1.bf16.msra.mxu0 0
    %2310 = vmatprep.mubr.bf16.mxu0 0
    %2311 = vmatmul.mubr.bf16.gmra.mrb[0].mxu0 %v2232
    %v2312 = vpop.f32.mrb[0].mxu0
    %v2313 = vadd.f32 0.0, %v2312
    %v2314 = vpop.f32.mrb[0].mxu0
    %v2315 = vadd.f32 0.0, %v2314
    %v2316 = vpop.f32.mrb[0].mxu0
    %v2317 = vpop.f32.mrb[0].mxu0
    %2318 = vdwg.mxu0
    %v2323 = vrot.slane %v2272, 6
    %v2324 = vrot.slane %v2274, 6
    %v2325 = vrot.slane %v2313, 6
    %v2326 = vrot.slane %v2315, 6
    %v2331 = vadd.f32 %v1538, %v2323
    %v2332 = vadd.f32 %v1540, %v2324
    %v2333 = vadd.f32 %v1581, %v2325
    %v2334 = vadd.f32 %v1583, %v2326
    %v2335 = vxor.u32 %v2331, 2147483648
    %v2336 = vxor.u32 %v2332, 2147483648
    %v2337 = vxor.u32 %v2333, 2147483648
    %v2338 = vmul.f32 %v2335, 1.442695
    %v2339 = vpow.pop %v2338
    %v2340 = vmul.f32 %v2336, 1.442695
    %v2341 = vpow.pop %v2340
    %v2342 = vmul.f32 %v2337, 1.442695
    %v2343 = vpow.pop %v2342
    %v2344 = vadd.f32 %v2339, 1.0
    %v2345 = vadd.f32 %v2341, 1.0
    %v2346 = vadd.f32 %v2343, 1.0
    %v2347 = vrcp.pop %v2344
    %v2348 = vmul.f32 1.0, %v2347
    %v2349 = vrcp.pop %v2345
    %v2350 = vmul.f32 1.0, %v2349
    %v2351 = vrcp.pop %v2346
    %v2352 = vmul.f32 1.0, %v2351
    %v2353 = vtanh.pop %v2334
    %v2355 = vrot.slane %v2229, 6
    %v2357 = vmul.f32 %v2350, %v2355
    %v2358 = vmul.f32 %v2348, %v2353
    %v2359 = vadd.f32 %v2357, %v2358
    %v2360 = vtanh.pop %v2359
    %v2361 = vmul.f32 %v2352, %v2360
    %v2362 = vpack.c.bf16 %v2361, %v2361
    %v2364 = vrot.slane %v2362, 4
    %2366 = vst [vmem:[#allocation4] sm:$0x20] %v2364
    %v2367 = vrot.slane %v2362, 1
    %2369 = vmatprep.subr.bf16.mxu0 %v1586
    %2370 = vmatpush1.bf16.msra.mxu0 %v1585
    %2371 = vmatprep.subr.bf16.mxu0 %v1590
    %2372 = vmatpush1.bf16.msra.mxu0 %v1589
    %2373 = vmatprep.subr.bf16.mxu0 %v1594
    %2374 = vmatpush1.bf16.msra.mxu0 %v1593
    %2375 = vmatprep.subr.bf16.mxu0 %v1598
    %2376 = vmatpush1.bf16.msra.mxu0 %v1597
    %2377 = vmatprep.subr.bf16.mxu0 %v1602
    %2378 = vmatpush1.bf16.msra.mxu0 %v1601
    %2379 = vmatprep.subr.bf16.mxu0 %v1606
    %2380 = vmatpush1.bf16.msra.mxu0 %v1605
    %2381 = vmatprep.subr.bf16.mxu0 %v1610
    %2382 = vmatpush1.bf16.msra.mxu0 %v1609
    %2383 = vmatprep.subr.bf16.mxu0 %v1614
    %2384 = vmatpush1.bf16.msra.mxu0 %v1613
    %2385 = vmatprep.subr.bf16.mxu0 0
    %2386 = vmatpush1.bf16.msra.mxu0 0
    %2387 = vmatprep.subr.bf16.mxu0 0
    %2388 = vmatpush1.bf16.msra.mxu0 0
    %2389 = vmatprep.subr.bf16.mxu0 0
    %2390 = vmatpush1.bf16.msra.mxu0 0
    %2391 = vmatprep.subr.bf16.mxu0 0
    %2392 = vmatpush1.bf16.msra.mxu0 0
    %2393 = vmatprep.subr.bf16.mxu0 0
    %2394 = vmatpush1.bf16.msra.mxu0 0
    %2395 = vmatprep.subr.bf16.mxu0 0
    %2396 = vmatpush1.bf16.msra.mxu0 0
    %2397 = vmatprep.subr.bf16.mxu0 0
    %2398 = vmatpush1.bf16.msra.mxu0 0
    %2399 = vmatprep.subr.bf16.mxu0 0
    %2400 = vmatpush1.bf16.msra.mxu0 0
    %2401 = vmatprep.mubr.bf16.mxu0 0
    %2402 = vmatmul.mubr.bf16.gmra.mrb[0].mxu0 %v2367
    %v2403 = vpop.f32.mrb[0].mxu0
    %v2404 = vadd.f32 0.0, %v2403
    %v2405 = vpop.f32.mrb[0].mxu0
    %v2406 = vadd.f32 0.0, %v2405
    %v2407 = vpop.f32.mrb[0].mxu0
    %v2408 = vpop.f32.mrb[0].mxu0
    %2409 = vdwg.mxu0
    %2410 = vmatprep.subr.bf16.mxu0 %v1588
    %2411 = vmatpush1.bf16.msra.mxu0 %v1587
    %2412 = vmatprep.subr.bf16.mxu0 %v1592
    %2413 = vmatpush1.bf16.msra.mxu0 %v1591
    %2414 = vmatprep.subr.bf16.mxu0 %v1596
    %2415 = vmatpush1.bf16.msra.mxu0 %v1595
    %2416 = vmatprep.subr.bf16.mxu0 %v1600
    %2417 = vmatpush1.bf16.msra.mxu0 %v1599
    %2418 = vmatprep.subr.bf16.mxu0 %v1604
    %2419 = vmatpush1.bf16.msra.mxu0 %v1603
    %2420 = vmatprep.subr.bf16.mxu0 %v1608
    %2421 = vmatpush1.bf16.msra.mxu0 %v1607
    %2422 = vmatprep.subr.bf16.mxu0 %v1612
    %2423 = vmatpush1.bf16.msra.mxu0 %v1611
    %2424 = vmatprep.subr.bf16.mxu0 %v1616
    %2425 = vmatpush1.bf16.msra.mxu0 %v1615
    %2426 = vmatprep.subr.bf16.mxu0 0
    %2427 = vmatpush1.bf16.msra.mxu0 0
    %2428 = vmatprep.subr.bf16.mxu0 0
    %2429 = vmatpush1.bf16.msra.mxu0 0
    %2430 = vmatprep.subr.bf16.mxu0 0
    %2431 = vmatpush1.bf16.msra.mxu0 0
    %2432 = vmatprep.subr.bf16.mxu0 0
    %2433 = vmatpush1.bf16.msra.mxu0 0
    %2434 = vmatprep.subr.bf16.mxu0 0
    %2435 = vmatpush1.bf16.msra.mxu0 0
    %2436 = vmatprep.subr.bf16.mxu0 0
    %2437 = vmatpush1.bf16.msra.mxu0 0
    %2438 = vmatprep.subr.bf16.mxu0 0
    %2439 = vmatpush1.bf16.msra.mxu0 0
    %2440 = vmatprep.subr.bf16.mxu0 0
    %2441 = vmatpush1.bf16.msra.mxu0 0
    %2442 = vmatprep.mubr.bf16.mxu0 0
    %2443 = vmatmul.mubr.bf16.gmra.mrb[0].mxu0 %v2367
    %v2444 = vpop.f32.mrb[0].mxu0
    %v2445 = vadd.f32 0.0, %v2444
    %v2446 = vpop.f32.mrb[0].mxu0
    %v2447 = vadd.f32 0.0, %v2446
    %v2448 = vpop.f32.mrb[0].mxu0
    %v2449 = vpop.f32.mrb[0].mxu0
    %2450 = vdwg.mxu0
    %v2455 = vrot.slane %v2404, 4
    %v2456 = vrot.slane %v2406, 4
    %v2457 = vrot.slane %v2445, 4
    %v2458 = vrot.slane %v2447, 4
    %v2463 = vadd.f32 %v1538, %v2455
    %v2464 = vadd.f32 %v1540, %v2456
    %v2465 = vadd.f32 %v1581, %v2457
    %v2466 = vadd.f32 %v1583, %v2458
    %v2467 = vxor.u32 %v2463, 2147483648
    %v2468 = vxor.u32 %v2464, 2147483648
    %v2469 = vxor.u32 %v2465, 2147483648
    %v2470 = vmul.f32 %v2467, 1.442695
    %v2471 = vpow.pop %v2470
    %v2472 = vmul.f32 %v2468, 1.442695
    %v2473 = vpow.pop %v2472
    %v2474 = vmul.f32 %v2469, 1.442695
    %v2475 = vpow.pop %v2474
    %v2476 = vadd.f32 %v2471, 1.0
    %v2477 = vadd.f32 %v2473, 1.0
    %v2478 = vadd.f32 %v2475, 1.0
    %v2479 = vrcp.pop %v2476
    %v2480 = vmul.f32 1.0, %v2479
    %v2481 = vrcp.pop %v2477
    %v2482 = vmul.f32 1.0, %v2481
    %v2483 = vrcp.pop %v2478
    %v2484 = vmul.f32 1.0, %v2483
    %v2485 = vtanh.pop %v2466
    %v2487 = vrot.slane %v2359, 6
    %v2489 = vmul.f32 %v2482, %v2487
    %v2490 = vmul.f32 %v2480, %v2485
    %v2491 = vadd.f32 %v2489, %v2490
    %v2492 = vtanh.pop %v2491
    %v2493 = vmul.f32 %v2484, %v2492
    %v2494 = vpack.c.bf16 %v2493, %v2493
    %v2496 = vrot.slane %v2494, 4
    %2498 = vst [vmem:[#allocation4] sm:$0x40] %v2496
    %v2499 = vrot.slane %v2494, 2
    %2501 = vmatprep.subr.bf16.mxu0 %v1586
    %2502 = vmatpush1.bf16.msra.mxu0 %v1585
    %2503 = vmatprep.subr.bf16.mxu0 %v1590
    %2504 = vmatpush1.bf16.msra.mxu0 %v1589
    %2505 = vmatprep.subr.bf16.mxu0 %v1594
    %2506 = vmatpush1.bf16.msra.mxu0 %v1593
    %2507 = vmatprep.subr.bf16.mxu0 %v1598
    %2508 = vmatpush1.bf16.msra.mxu0 %v1597
    %2509 = vmatprep.subr.bf16.mxu0 %v1602
    %2510 = vmatpush1.bf16.msra.mxu0 %v1601
    %2511 = vmatprep.subr.bf16.mxu0 %v1606
    %2512 = vmatpush1.bf16.msra.mxu0 %v1605
    %2513 = vmatprep.subr.bf16.mxu0 %v1610
    %2514 = vmatpush1.bf16.msra.mxu0 %v1609
    %2515 = vmatprep.subr.bf16.mxu0 %v1614
    %2516 = vmatpush1.bf16.msra.mxu0 %v1613
    %2517 = vmatprep.subr.bf16.mxu0 0
    %2518 = vmatpush1.bf16.msra.mxu0 0
    %2519 = vmatprep.subr.bf16.mxu0 0
    %2520 = vmatpush1.bf16.msra.mxu0 0
    %2521 = vmatprep.subr.bf16.mxu0 0
    %2522 = vmatpush1.bf16.msra.mxu0 0
    %2523 = vmatprep.subr.bf16.mxu0 0
    %2524 = vmatpush1.bf16.msra.mxu0 0
    %2525 = vmatprep.subr.bf16.mxu0 0
    %2526 = vmatpush1.bf16.msra.mxu0 0
    %2527 = vmatprep.subr.bf16.mxu0 0
    %2528 = vmatpush1.bf16.msra.mxu0 0
    %2529 = vmatprep.subr.bf16.mxu0 0
    %2530 = vmatpush1.bf16.msra.mxu0 0
    %2531 = vmatprep.subr.bf16.mxu0 0
    %2532 = vmatpush1.bf16.msra.mxu0 0
    %2533 = vmatprep.mubr.bf16.mxu0 0
    %2534 = vmatmul.mubr.bf16.gmra.mrb[0].mxu0 %v2499
    %v2535 = vpop.f32.mrb[0].mxu0
    %v2536 = vadd.f32 0.0, %v2535
    %v2537 = vpop.f32.mrb[0].mxu0
    %v2538 = vadd.f32 0.0, %v2537
    %v2539 = vpop.f32.mrb[0].mxu0
    %v2540 = vpop.f32.mrb[0].mxu0
    %2541 = vdwg.mxu0
    %2542 = vmatprep.subr.bf16.mxu0 %v1588
    %2543 = vmatpush1.bf16.msra.mxu0 %v1587
    %2544 = vmatprep.subr.bf16.mxu0 %v1592
    %2545 = vmatpush1.bf16.msra.mxu0 %v1591
    %2546 = vmatprep.subr.bf16.mxu0 %v1596
    %2547 = vmatpush1.bf16.msra.mxu0 %v1595
    %2548 = vmatprep.subr.bf16.mxu0 %v1600
    %2549 = vmatpush1.bf16.msra.mxu0 %v1599
    %2550 = vmatprep.subr.bf16.mxu0 %v1604
    %2551 = vmatpush1.bf16.msra.mxu0 %v1603
    %2552 = vmatprep.subr.bf16.mxu0 %v1608
    %2553 = vmatpush1.bf16.msra.mxu0 %v1607
    %2554 = vmatprep.subr.bf16.mxu0 %v1612
    %2555 = vmatpush1.bf16.msra.mxu0 %v1611
    %2556 = vmatprep.subr.bf16.mxu0 %v1616
    %2557 = vmatpush1.bf16.msra.mxu0 %v1615
    %2558 = vmatprep.subr.bf16.mxu0 0
    %2559 = vmatpush1.bf16.msra.mxu0 0
    %2560 = vmatprep.subr.bf16.mxu0 0
    %2561 = vmatpush1.bf16.msra.mxu0 0
    %2562 = vmatprep.subr.bf16.mxu0 0
    %2563 = vmatpush1.bf16.msra.mxu0 0
    %2564 = vmatprep.subr.bf16.mxu0 0
    %2565 = vmatpush1.bf16.msra.mxu0 0
    %2566 = vmatprep.subr.bf16.mxu0 0
    %2567 = vmatpush1.bf16.msra.mxu0 0
    %2568 = vmatprep.subr.bf16.mxu0 0
    %2569 = vmatpush1.bf16.msra.mxu0 0
    %2570 = vmatprep.subr.bf16.mxu0 0
    %2571 = vmatpush1.bf16.msra.mxu0 0
    %2572 = vmatprep.subr.bf16.mxu0 0
    %2573 = vmatpush1.bf16.msra.mxu0 0
    %2574 = vmatprep.mubr.bf16.mxu0 0
    %2575 = vmatmul.mubr.bf16.gmra.mrb[0].mxu0 %v2499
    %v2576 = vpop.f32.mrb[0].mxu0
    %v2577 = vadd.f32 0.0, %v2576
    %v2578 = vpop.f32.mrb[0].mxu0
    %v2579 = vadd.f32 0.0, %v2578
    %v2580 = vpop.f32.mrb[0].mxu0
    %v2581 = vpop.f32.mrb[0].mxu0
    %2582 = vdwg.mxu0
    %v2587 = vrot.slane %v2536, 2
    %v2588 = vrot.slane %v2538, 2
    %v2589 = vrot.slane %v2577, 2
    %v2590 = vrot.slane %v2579, 2
    %v2595 = vadd.f32 %v1538, %v2587
    %v2596 = vadd.f32 %v1540, %v2588
    %v2597 = vadd.f32 %v1581, %v2589
    %v2598 = vadd.f32 %v1583, %v2590
    %v2599 = vxor.u32 %v2595, 2147483648
    %v2600 = vxor.u32 %v2596, 2147483648
    %v2601 = vxor.u32 %v2597, 2147483648
    %v2602 = vmul.f32 %v2599, 1.442695
    %v2603 = vpow.pop %v2602
    %v2604 = vmul.f32 %v2600, 1.442695
    %v2605 = vpow.pop %v2604
    %v2606 = vmul.f32 %v2601, 1.442695
    %v2607 = vpow.pop %v2606
    %v2608 = vadd.f32 %v2603, 1.0
    %v2609 = vadd.f32 %v2605, 1.0
    %v2610 = vadd.f32 %v2607, 1.0
    %v2611 = vrcp.pop %v2608
    %v2612 = vmul.f32 1.0, %v2611
    %v2613 = vrcp.pop %v2609
    %v2614 = vmul.f32 1.0, %v2613
    %v2615 = vrcp.pop %v2610
    %v2616 = vmul.f32 1.0, %v2615
    %v2617 = vtanh.pop %v2598
    %v2619 = vrot.slane %v2491, 6
    %v2621 = vmul.f32 %v2614, %v2619
    %v2622 = vmul.f32 %v2612, %v2617
    %v2623 = vadd.f32 %v2621, %v2622
    %v2624 = vtanh.pop %v2623
    %v2625 = vmul.f32 %v2616, %v2624
    %v2626 = vpack.c.bf16 %v2625, %v2625
    %v2628 = vrot.slane %v2626, 4
    %2630 = vst [vmem:[#allocation4] sm:$0x80] %v2628
    %v2631 = vld [vmem:[%s12] sm:$0xf]
    %v2632 = vld [vmem:[%s12 + $0x4] sm:$0xf]
    %v2633 = vld [vmem:[#allocation4] sm:$0xff]
    %v2636 = vunpack.c.l.b16 %v2631
    %v2637 = vunpack.c.l.b16 %v2632
    %v2638 = vpack.c.b16 %v2637, %v2636
    %v2640 = vsel %vm144, %v2638, 0
    %2642 = vmatprep.subr.bf16.mxu0 0
    %2643 = vmatpush1.bf16.msra.mxu0 %v2633
    %2644 = vmatprep.subr.bf16.mxu0 0
    %2645 = vmatpush1.bf16.msra.mxu0 0
    %2646 = vmatprep.subr.bf16.mxu0 0
    %2647 = vmatpush1.bf16.msra.mxu0 0
    %2648 = vmatprep.subr.bf16.mxu0 0
    %2649 = vmatpush1.bf16.msra.mxu0 0
    %2650 = vmatprep.subr.bf16.mxu0 0
    %2651 = vmatpush1.bf16.msra.mxu0 0
    %2652 = vmatprep.subr.bf16.mxu0 0
    %2653 = vmatpush1.bf16.msra.mxu0 0
    %2654 = vmatprep.subr.bf16.mxu0 0
    %2655 = vmatpush1.bf16.msra.mxu0 0
    %2656 = vmatprep.subr.bf16.mxu0 0
    %2657 = vmatpush1.bf16.msra.mxu0 0
    %2658 = vmatprep.subr.bf16.mxu0 0
    %2659 = vmatpush1.bf16.msra.mxu0 0
    %2660 = vmatprep.subr.bf16.mxu0 0
    %2661 = vmatpush1.bf16.msra.mxu0 0
    %2662 = vmatprep.subr.bf16.mxu0 0
    %2663 = vmatpush1.bf16.msra.mxu0 0
    %2664 = vmatprep.subr.bf16.mxu0 0
    %2665 = vmatpush1.bf16.msra.mxu0 0
    %2666 = vmatprep.subr.bf16.mxu0 0
    %2667 = vmatpush1.bf16.msra.mxu0 0
    %2668 = vmatprep.subr.bf16.mxu0 0
    %2669 = vmatpush1.bf16.msra.mxu0 0
    %2670 = vmatprep.subr.bf16.mxu0 0
    %2671 = vmatpush1.bf16.msra.mxu0 0
    %2672 = vmatprep.subr.bf16.mxu0 0
    %2673 = vmatpush1.bf16.msra.mxu0 0
    %2674 = vmatprep.mubr.bf16.mxu0 0
    %2675 = vmatmul.mubr.bf16.gmra.mrb[0].mxu0 %v2640
    %v2676 = vpop.f32.mrb[0].mxu0
    %v2677 = vadd.f32 0.0, %v2676
    %v2678 = vpop.f32.mrb[0].mxu0
    %v2679 = vpop.f32.mrb[0].mxu0
    %v2680 = vadd.f32 0.0, %v2679
    %v2681 = vpop.f32.mrb[0].mxu0
    %2682 = vdwg.mxu0
    %v2683 = vpack.c.bf16 %v2680, %v2677
    %v2684 = vld [vmem:[#allocation2 + $0x40] sm:$0xff]
    %v2685 = vld [vmem:[#allocation2 + $0x48] sm:$0xff]
    %v2686 = vld [vmem:[#allocation2 + $0x50] sm:$0xff]
    %v2687 = vld [vmem:[#allocation2 + $0xb0] sm:$0xff]
    %v2688 = vld [vmem:[#allocation2 + $0xb8] sm:$0xff]
    %v2689 = vld [vmem:[#allocation2 + $0xc0] sm:$0xff]
    %v2690 = vld [vmem:[#allocation2 + $0x120] sm:$0xff]
    %v2691 = vld [vmem:[#allocation2 + $0x128] sm:$0xff]
    %v2692 = vld [vmem:[#allocation2 + $0x130] sm:$0xff]
    %v2693 = vld [vmem:[#allocation2 + $0x190] sm:$0xff]
    %v2694 = vld [vmem:[#allocation2 + $0x198] sm:$0xff]
    %v2695 = vld [vmem:[#allocation2 + $0x1a0] sm:$0xff]
    %v2696 = vld [vmem:[#allocation2 + $0x200] sm:$0xff]
    %v2697 = vld [vmem:[#allocation2 + $0x208] sm:$0xff]
    %v2698 = vld [vmem:[#allocation2 + $0x210] sm:$0xff]
    %v2699 = vld [vmem:[#allocation2 + $0x270] sm:$0xff]
    %v2700 = vld [vmem:[#allocation2 + $0x278] sm:$0xff]
    %v2701 = vld [vmem:[#allocation2 + $0x280] sm:$0xff]
    %v2702 = vld [vmem:[#allocation2 + $0x2e0] sm:$0xff]
    %v2703 = vld [vmem:[#allocation2 + $0x2e8] sm:$0xff]
    %v2704 = vld [vmem:[#allocation2 + $0x2f0] sm:$0xff]
    %v2705 = vld [vmem:[#allocation2 + $0x350] sm:$0xff]
    %v2706 = vld [vmem:[#allocation2 + $0x358] sm:$0xff]
    %v2707 = vld [vmem:[#allocation2 + $0x360] sm:$0xff]
    %v2708 = vld [vmem:[%s6] sm:$0x7]
    %v2710 = vlaneseq
    %v2711 = vshrl.u32 %v2710, 7
    %v2712 = vsub.s32 0, %v2711
    %v2713 = vrot.slane %v2708, %v2712
    %v2714 = vlaneseq
    %v2715 = vshrl.u32 %v2714, 7
    %v2716 = vsub.s32 1, %v2715
    %v2717 = vrot.slane %v2708, %v2716
    %v2718 = vlaneseq
    %v2719 = vshrl.u32 %v2718, 7
    %v2720 = vsub.s32 2, %v2719
    %v2721 = vrot.slane %v2708, %v2720
    %2725 = vmatprep.subr.bf16.mxu0 %v2685
    %2726 = vmatpush1.bf16.msra.mxu0 %v2684
    %2727 = vmatprep.subr.bf16.mxu0 %v2688
    %2728 = vmatpush1.bf16.msra.mxu0 %v2687
    %2729 = vmatprep.subr.bf16.mxu0 %v2691
    %2730 = vmatpush1.bf16.msra.mxu0 %v2690
    %2731 = vmatprep.subr.bf16.mxu0 %v2694
    %2732 = vmatpush1.bf16.msra.mxu0 %v2693
    %2733 = vmatprep.subr.bf16.mxu0 %v2697
    %2734 = vmatpush1.bf16.msra.mxu0 %v2696
    %2735 = vmatprep.subr.bf16.mxu0 %v2700
    %2736 = vmatpush1.bf16.msra.mxu0 %v2699
    %2737 = vmatprep.subr.bf16.mxu0 %v2703
    %2738 = vmatpush1.bf16.msra.mxu0 %v2702
    %2739 = vmatprep.subr.bf16.mxu0 %v2706
    %2740 = vmatpush1.bf16.msra.mxu0 %v2705
    %2741 = vmatprep.subr.bf16.mxu0 0
    %2742 = vmatpush1.bf16.msra.mxu0 0
    %2743 = vmatprep.subr.bf16.mxu0 0
    %2744 = vmatpush1.bf16.msra.mxu0 0
    %2745 = vmatprep.subr.bf16.mxu0 0
    %2746 = vmatpush1.bf16.msra.mxu0 0
    %2747 = vmatprep.subr.bf16.mxu0 0
    %2748 = vmatpush1.bf16.msra.mxu0 0
    %2749 = vmatprep.subr.bf16.mxu0 0
    %2750 = vmatpush1.bf16.msra.mxu0 0
    %2751 = vmatprep.subr.bf16.mxu0 0
    %2752 = vmatpush1.bf16.msra.mxu0 0
    %2753 = vmatprep.subr.bf16.mxu0 0
    %2754 = vmatpush1.bf16.msra.mxu0 0
    %2755 = vmatprep.subr.bf16.mxu0 0
    %2756 = vmatpush1.bf16.msra.mxu0 0
    %2757 = vmatprep.mubr.bf16.mxu0 0
    %2758 = vmatmul.mubr.bf16.gmra.mrb[0].mxu0 %v2683
    %v2759 = vpop.f32.mrb[0].mxu0
    %v2760 = vadd.f32 %v2713, %v2759
    %v2761 = vpop.f32.mrb[0].mxu0
    %v2762 = vadd.f32 %v2717, %v2761
    %v2763 = vpop.f32.mrb[0].mxu0
    %v2764 = vadd.f32 %v2713, %v2763
    %v2765 = vpop.f32.mrb[0].mxu0
    %v2766 = vadd.f32 %v2717, %v2765
    %2767 = vdwg.mxu0
    %2768 = vmatprep.subr.bf16.mxu0 0
    %2769 = vmatpush1.bf16.msra.mxu0 %v2686
    %2770 = vmatprep.subr.bf16.mxu0 0
    %2771 = vmatpush1.bf16.msra.mxu0 %v2689
    %2772 = vmatprep.subr.bf16.mxu0 0
    %2773 = vmatpush1.bf16.msra.mxu0 %v2692
    %2774 = vmatprep.subr.bf16.mxu0 0
    %2775 = vmatpush1.bf16.msra.mxu0 %v2695
    %2776 = vmatprep.subr.bf16.mxu0 0
    %2777 = vmatpush1.bf16.msra.mxu0 %v2698
    %2778 = vmatprep.subr.bf16.mxu0 0
    %2779 = vmatpush1.bf16.msra.mxu0 %v2701
    %2780 = vmatprep.subr.bf16.mxu0 0
    %2781 = vmatpush1.bf16.msra.mxu0 %v2704
    %2782 = vmatprep.subr.bf16.mxu0 0
    %2783 = vmatpush1.bf16.msra.mxu0 %v2707
    %2784 = vmatprep.subr.bf16.mxu0 0
    %2785 = vmatpush1.bf16.msra.mxu0 0
    %2786 = vmatprep.subr.bf16.mxu0 0
    %2787 = vmatpush1.bf16.msra.mxu0 0
    %2788 = vmatprep.subr.bf16.mxu0 0
    %2789 = vmatpush1.bf16.msra.mxu0 0
    %2790 = vmatprep.subr.bf16.mxu0 0
    %2791 = vmatpush1.bf16.msra.mxu0 0
    %2792 = vmatprep.subr.bf16.mxu0 0
    %2793 = vmatpush1.bf16.msra.mxu0 0
    %2794 = vmatprep.subr.bf16.mxu0 0
    %2795 = vmatpush1.bf16.msra.mxu0 0
    %2796 = vmatprep.subr.bf16.mxu0 0
    %2797 = vmatpush1.bf16.msra.mxu0 0
    %2798 = vmatprep.subr.bf16.mxu0 0
    %2799 = vmatpush1.bf16.msra.mxu0 0
    %2800 = vmatprep.mubr.bf16.mxu0 0
    %2801 = vmatmul.mubr.bf16.gmra.mrb[0].mxu0 %v2683
    %v2802 = vpop.f32.mrb[0].mxu0
    %v2803 = vadd.f32 %v2721, %v2802
    %v2804 = vpop.f32.mrb[0].mxu0
    %v2805 = vpop.f32.mrb[0].mxu0
    %v2806 = vadd.f32 %v2721, %v2805
    %v2807 = vpop.f32.mrb[0].mxu0
    %2808 = vdwg.mxu0
    %v2809 = vmul.f32 %v2760, %v2762
    %v2810 = vmul.f32 %v2760, %v2766
    %v2811 = vmul.f32 %v2764, %v2762
    %v2812 = vmul.f32 %v2764, %v2766
    %v2813 = vpack.c.bf16 %v2810, %v2809
    %v2814 = vpack.c.bf16 %v2812, %v2811
    %v2815 = vld [vmem:[%s10] sm:$0xf]
    %v2816 = vld [vmem:[%s10 + $0x4] sm:$0xf]
    %v2817 = vld [vmem:[%s10 + $0x8] sm:$0xf]
    %v2818 = vld [vmem:[%s10 + $0xc] sm:$0xf]
    %v2819 = vld [vmem:[%s10 + $0x10] sm:$0xf]
    %v2820 = vld [vmem:[%s10 + $0x14] sm:$0xf]
    %v2821 = vld [vmem:[%s10 + $0x18] sm:$0xf]
    %v2822 = vld [vmem:[%s10 + $0x1c] sm:$0xf]
    %v2823 = vld [vmem:[%s10 + $0x20] sm:$0xf]
    %v2824 = vld [vmem:[%s10 + $0x24] sm:$0xf]
    %v2825 = vld [vmem:[%s10 + $0x28] sm:$0xf]
    %v2826 = vld [vmem:[%s10 + $0x2c] sm:$0xf]
    %v2827 = vld [vmem:[%s10 + $0x30] sm:$0xf]
    %v2828 = vld [vmem:[%s10 + $0x34] sm:$0xf]
    %v2829 = vld [vmem:[%s10 + $0x38] sm:$0xf]
    %v2830 = vld [vmem:[%s10 + $0x3c] sm:$0xf]
    %v2847 = vunpack.c.l.b16 %v2815
    %v2848 = vunpack.c.l.b16 %v2816
    %v2849 = vunpack.c.l.b16 %v2817
    %v2850 = vunpack.c.l.b16 %v2818
    %v2851 = vunpack.c.l.b16 %v2819
    %v2852 = vunpack.c.l.b16 %v2820
    %v2853 = vunpack.c.l.b16 %v2821
    %v2854 = vunpack.c.l.b16 %v2822
    %v2855 = vunpack.c.l.b16 %v2823
    %v2856 = vunpack.c.l.b16 %v2824
    %v2857 = vunpack.c.l.b16 %v2825
    %v2858 = vunpack.c.l.b16 %v2826
    %v2859 = vunpack.c.l.b16 %v2827
    %v2860 = vunpack.c.l.b16 %v2828
    %v2861 = vunpack.c.l.b16 %v2829
    %v2862 = vunpack.c.l.b16 %v2830
    %v2863 = vpack.c.b16 %v2848, %v2847
    %v2864 = vpack.c.b16 %v2850, %v2849
    %v2865 = vpack.c.b16 %v2852, %v2851
    %v2866 = vpack.c.b16 %v2854, %v2853
    %v2867 = vpack.c.b16 %v2856, %v2855
    %v2868 = vpack.c.b16 %v2858, %v2857
    %v2869 = vpack.c.b16 %v2860, %v2859
    %v2870 = vpack.c.b16 %v2862, %v2861
    %2879 = vmatprep.subr.bf16.mxu0 0
    %2880 = vmatpush1.bf16.msra.mxu0 %v2863
    %2881 = vmatprep.subr.bf16.mxu0 0
    %2882 = vmatpush1.bf16.msra.mxu0 %v2864
    %2883 = vmatprep.subr.bf16.mxu0 0
    %2884 = vmatpush1.bf16.msra.mxu0 %v2865
    %2885 = vmatprep.subr.bf16.mxu0 0
    %2886 = vmatpush1.bf16.msra.mxu0 %v2866
    %2887 = vmatprep.subr.bf16.mxu0 0
    %2888 = vmatpush1.bf16.msra.mxu0 %v2867
    %2889 = vmatprep.subr.bf16.mxu0 0
    %2890 = vmatpush1.bf16.msra.mxu0 %v2868
    %2891 = vmatprep.subr.bf16.mxu0 0
    %2892 = vmatpush1.bf16.msra.mxu0 %v2869
    %2893 = vmatprep.subr.bf16.mxu0 0
    %2894 = vmatpush1.bf16.msra.mxu0 %v2870
    %2895 = vmatprep.subr.bf16.mxu0 0
    %2896 = vmatpush1.bf16.msra.mxu0 0
    %2897 = vmatprep.subr.bf16.mxu0 0
    %2898 = vmatpush1.bf16.msra.mxu0 0
    %2899 = vmatprep.subr.bf16.mxu0 0
    %2900 = vmatpush1.bf16.msra.mxu0 0
    %2901 = vmatprep.subr.bf16.mxu0 0
    %2902 = vmatpush1.bf16.msra.mxu0 0
    %2903 = vmatprep.subr.bf16.mxu0 0
    %2904 = vmatpush1.bf16.msra.mxu0 0
    %2905 = vmatprep.subr.bf16.mxu0 0
    %2906 = vmatpush1.bf16.msra.mxu0 0
    %2907 = vmatprep.subr.bf16.mxu0 0
    %2908 = vmatpush1.bf16.msra.mxu0 0
    %2909 = vmatprep.subr.bf16.mxu0 0
    %2910 = vmatpush1.bf16.msra.mxu0 0
    %2911 = vmatprep.mubr.bf16.mxu0 0
    %2912 = vmatmul.mubr.bf16.gmra.mrb[0].mxu0 %v2813
    %v2913 = vpop.f32.mrb[0].mxu0
    %v2914 = vadd.f32 0.0, %v2913
    %v2915 = vpop.f32.mrb[0].mxu0
    %v2916 = vpop.f32.mrb[0].mxu0
    %v2917 = vadd.f32 0.0, %v2916
    %v2918 = vpop.f32.mrb[0].mxu0
    %2919 = vmatprep.mubr.bf16.mxu0 0
    %2920 = vmatmul.mubr.bf16.gmra.mrb[0].mxu0 %v2814
    %v2921 = vpop.f32.mrb[0].mxu0
    %v2922 = vadd.f32 0.0, %v2921
    %v2923 = vpop.f32.mrb[0].mxu0
    %v2924 = vpop.f32.mrb[0].mxu0
    %v2925 = vadd.f32 0.0, %v2924
    %v2926 = vpop.f32.mrb[0].mxu0
    %2927 = vdwg.mxu0
    %v2928 = vsub.f32 %v2914, %v2917
    %v2929 = vxor.u32 %v2928, 2147483648
    %v2930 = vmul.f32 %v2929, 1.442695
    %v2931 = vpow.pop %v2930
    %v2932 = vadd.f32 %v2931, 1.0
    %v2933 = vrcp.pop %v2932
    %v2934 = vmul.f32 1.0, %v2933
    %v2935 = vsub.f32 1.0, %v2934
    %v2936 = vsub.f32 %v2922, %v2925
    %v2937 = vxor.u32 %v2936, 2147483648
    %v2938 = vmul.f32 %v2937, 1.442695
    %v2939 = vpow.pop %v2938
    %v2940 = vadd.f32 %v2939, 1.0
    %v2941 = vrcp.pop %v2940
    %v2942 = vmul.f32 1.0, %v2941
    %v2943 = vsub.f32 1.0, %v2942
    %v2944 = vpack.c.bf16 %v2935, %v2934
    %v2945 = vpack.c.bf16 %v2943, %v2942
    %v2946 = vld [vmem:[%s11] sm:$0x3]
    %vm2947 = vcmask 31744
    %v2949 = vsel %vm2947, %v2944, 0
    %v2952 = vsel %vm2947, %v2945, 0
    %vm2954 = vcmask 1041408
    %v2956 = vsel %vm2954, %v2946, 0
    %2958 = vmatprep.subr.bf16.mxu0 0
    %2959 = vmatpush1.bf16.msra.mxu0 %v2956
    %2960 = vmatprep.subr.bf16.mxu0 0
    %2961 = vmatpush1.bf16.msra.mxu0 0
    %2962 = vmatprep.subr.bf16.mxu0 0
    %2963 = vmatpush1.bf16.msra.mxu0 0
    %2964 = vmatprep.subr.bf16.mxu0 0
    %2965 = vmatpush1.bf16.msra.mxu0 0
    %2966 = vmatprep.subr.bf16.mxu0 0
    %2967 = vmatpush1.bf16.msra.mxu0 0
    %2968 = vmatprep.subr.bf16.mxu0 0
    %2969 = vmatpush1.bf16.msra.mxu0 0
    %2970 = vmatprep.subr.bf16.mxu0 0
    %2971 = vmatpush1.bf16.msra.mxu0 0
    %2972 = vmatprep.subr.bf16.mxu0 0
    %2973 = vmatpush1.bf16.msra.mxu0 0
    %2974 = vmatprep.subr.bf16.mxu0 0
    %2975 = vmatpush1.bf16.msra.mxu0 0
    %2976 = vmatprep.subr.bf16.mxu0 0
    %2977 = vmatpush1.bf16.msra.mxu0 0
    %2978 = vmatprep.subr.bf16.mxu0 0
    %2979 = vmatpush1.bf16.msra.mxu0 0
    %2980 = vmatprep.subr.bf16.mxu0 0
    %2981 = vmatpush1.bf16.msra.mxu0 0
    %2982 = vmatprep.subr.bf16.mxu0 0
    %2983 = vmatpush1.bf16.msra.mxu0 0
    %2984 = vmatprep.subr.bf16.mxu0 0
    %2985 = vmatpush1.bf16.msra.mxu0 0
    %2986 = vmatprep.subr.bf16.mxu0 0
    %2987 = vmatpush1.bf16.msra.mxu0 0
    %2988 = vmatprep.subr.bf16.mxu0 0
    %2989 = vmatpush1.bf16.msra.mxu0 0
    %2990 = vmatprep.mubr.bf16.mxu0 0
    %2991 = vmatmul.mubr.bf16.gmra.mrb[0].mxu0 %v2949
    %v2992 = vpop.f32.mrb[0].mxu0
    %v2993 = vadd.f32 0.0, %v2992
    %v2994 = vpop.f32.mrb[0].mxu0
    %v2995 = vpop.f32.mrb[0].mxu0
    %v2996 = vadd.f32 0.0, %v2995
    %v2997 = vpop.f32.mrb[0].mxu0
    %2998 = vmatprep.mubr.bf16.mxu0 0
    %2999 = vmatmul.mubr.bf16.gmra.mrb[0].mxu0 %v2952
    %v3000 = vpop.f32.mrb[0].mxu0
    %v3001 = vadd.f32 0.0, %v3000
    %v3002 = vpop.f32.mrb[0].mxu0
    %v3003 = vpop.f32.mrb[0].mxu0
    %v3004 = vadd.f32 0.0, %v3003
    %v3005 = vpop.f32.mrb[0].mxu0
    %3006 = vdwg.mxu0
    %v3007 = vmul.f32 %v2993, %v2803
    %v3008 = vmul.f32 %v2996, %v2806
    %v3009 = vadd.f32 %v3007, %v3008
    %v3010 = vmul.f32 %v3001, %v2803
    %v3011 = vmul.f32 %v3004, %v2806
    %v3012 = vadd.f32 %v3010, %v3011
    %v3013 = vpack.c.bf16 %v3012, %v3009
    %v3014 = vld [vmem:[#allocation2 + $0x58] sm:$0xff]
    %v3015 = vld [vmem:[#allocation2 + $0xc8] sm:$0xff]
    %v3016 = vld [vmem:[#allocation2 + $0x138] sm:$0xff]
    %v3017 = vld [vmem:[#allocation2 + $0x1a8] sm:$0xff]
    %v3018 = vld [vmem:[#allocation2 + $0x218] sm:$0xff]
    %v3019 = vld [vmem:[#allocation2 + $0x288] sm:$0xff]
    %v3020 = vld [vmem:[#allocation2 + $0x2f8] sm:$0xff]
    %v3021 = vld [vmem:[#allocation2 + $0x368] sm:$0xff]
    %v3022 = vld [vmem:[%s7] sm:$0x1]
    %v3024 = vlaneseq
    %v3025 = vshrl.u32 %v3024, 7
    %v3026 = vsub.s32 0, %v3025
    %v3027 = vrot.slane %v3022, %v3026
    %3029 = vmatprep.subr.bf16.mxu0 0
    %3030 = vmatpush1.bf16.msra.mxu0 %v3014
    %3031 = vmatprep.subr.bf16.mxu0 0
    %3032 = vmatpush1.bf16.msra.mxu0 %v3015
    %3033 = vmatprep.subr.bf16.mxu0 0
    %3034 = vmatpush1.bf16.msra.mxu0 %v3016
    %3035 = vmatprep.subr.bf16.mxu0 0
    %3036 = vmatpush1.bf16.msra.mxu0 %v3017
    %3037 = vmatprep.subr.bf16.mxu0 0
    %3038 = vmatpush1.bf16.msra.mxu0 %v3018
    %3039 = vmatprep.subr.bf16.mxu0 0
    %3040 = vmatpush1.bf16.msra.mxu0 %v3019
    %3041 = vmatprep.subr.bf16.mxu0 0
    %3042 = vmatpush1.bf16.msra.mxu0 %v3020
    %3043 = vmatprep.subr.bf16.mxu0 0
    %3044 = vmatpush1.bf16.msra.mxu0 %v3021
    %3045 = vmatprep.subr.bf16.mxu0 0
    %3046 = vmatpush1.bf16.msra.mxu0 0
    %3047 = vmatprep.subr.bf16.mxu0 0
    %3048 = vmatpush1.bf16.msra.mxu0 0
    %3049 = vmatprep.subr.bf16.mxu0 0
    %3050 = vmatpush1.bf16.msra.mxu0 0
    %3051 = vmatprep.subr.bf16.mxu0 0
    %3052 = vmatpush1.bf16.msra.mxu0 0
    %3053 = vmatprep.subr.bf16.mxu0 0
    %3054 = vmatpush1.bf16.msra.mxu0 0
    %3055 = vmatprep.subr.bf16.mxu0 0
    %3056 = vmatpush1.bf16.msra.mxu0 0
    %3057 = vmatprep.subr.bf16.mxu0 0
    %3058 = vmatpush1.bf16.msra.mxu0 0
    %3059 = vmatprep.subr.bf16.mxu0 0
    %3060 = vmatpush1.bf16.msra.mxu0 0
    %3061 = vmatprep.mubr.bf16.mxu0 0
    %3062 = vmatmul.mubr.bf16.gmra.mrb[0].mxu0 %v3013
    %v3063 = vpop.f32.mrb[0].mxu0
    %v3064 = vadd.f32 %v3027, %v3063
    %v3065 = vpop.f32.mrb[0].mxu0
    %v3066 = vpop.f32.mrb[0].mxu0
    %v3067 = vadd.f32 %v3027, %v3066
    %v3068 = vpop.f32.mrb[0].mxu0
    %3069 = vdwg.mxu0
    %v3070 = vadd.f32 %v2677, %v3064
    %v3071 = vadd.f32 %v2680, %v3067
    %v3072 = vld [vmem:[%s13] sm:$0x1]
    %v3073 = vpack.c.bf16 %v3071, %v3070
    %v3075 = vsel %vm144, %v3072, 0
    %3077 = vmatprep.subr.bf16.mxu0 0
    %3078 = vmatpush1.bf16.msra.mxu0 %v3073
    %3079 = vmatprep.subr.bf16.mxu0 0
    %3080 = vmatpush1.bf16.msra.mxu0 0
    %3081 = vmatprep.subr.bf16.mxu0 0
    %3082 = vmatpush1.bf16.msra.mxu0 0
    %3083 = vmatprep.subr.bf16.mxu0 0
    %3084 = vmatpush1.bf16.msra.mxu0 0
    %3085 = vmatprep.subr.bf16.mxu0 0
    %3086 = vmatpush1.bf16.msra.mxu0 0
    %3087 = vmatprep.subr.bf16.mxu0 0
    %3088 = vmatpush1.bf16.msra.mxu0 0
    %3089 = vmatprep.subr.bf16.mxu0 0
    %3090 = vmatpush1.bf16.msra.mxu0 0
    %3091 = vmatprep.subr.bf16.mxu0 0
    %3092 = vmatpush1.bf16.msra.mxu0 0
    %3093 = vmatprep.subr.bf16.mxu0 0
    %3094 = vmatpush1.bf16.msra.mxu0 0
    %3095 = vmatprep.subr.bf16.mxu0 0
    %3096 = vmatpush1.bf16.msra.mxu0 0
    %3097 = vmatprep.subr.bf16.mxu0 0
    %3098 = vmatpush1.bf16.msra.mxu0 0
    %3099 = vmatprep.subr.bf16.mxu0 0
    %3100 = vmatpush1.bf16.msra.mxu0 0
    %3101 = vmatprep.subr.bf16.mxu0 0
    %3102 = vmatpush1.bf16.msra.mxu0 0
    %3103 = vmatprep.subr.bf16.mxu0 0
    %3104 = vmatpush1.bf16.msra.mxu0 0
    %3105 = vmatprep.subr.bf16.mxu0 0
    %3106 = vmatpush1.bf16.msra.mxu0 0
    %3107 = vmatprep.subr.bf16.mxu0 0
    %3108 = vmatpush1.bf16.msra.mxu0 0
    %3109 = vmatprep.mubr.bf16.mxu0 0
    %3110 = vmatmul.mubr.bf16.gmra.mrb[0].mxu0 %v3075
    %v3111 = vpop.f32.mrb[0].mxu0
    %v3112 = vadd.f32 0.0, %v3111
    %v3113 = vpop.f32.mrb[0].mxu0
    %v3114 = vpop.f32.mrb[0].mxu0
    %v3115 = vpop.f32.mrb[0].mxu0
    %3116 = vdwg.mxu0
    %v3117 = vpack.c.bf16 %v3112, %v3112
    %v3118 = vld [vmem:[#allocation2 + $0x60] sm:$0xff]
    %v3119 = vld [vmem:[#allocation2 + $0xd0] sm:$0xff]
    %v3120 = vld [vmem:[#allocation2 + $0x140] sm:$0xff]
    %v3121 = vld [vmem:[#allocation2 + $0x1b0] sm:$0xff]
    %v3122 = vld [vmem:[#allocation2 + $0x220] sm:$0xff]
    %v3123 = vld [vmem:[#allocation2 + $0x290] sm:$0xff]
    %v3124 = vld [vmem:[#allocation2 + $0x300] sm:$0xff]
    %v3125 = vld [vmem:[#allocation2 + $0x370] sm:$0xff]
    %v3126 = vld [vmem:[%s8] sm:$0x1]
    %v3128 = vlaneseq
    %v3129 = vshrl.u32 %v3128, 7
    %v3130 = vsub.s32 0, %v3129
    %v3131 = vrot.slane %v3126, %v3130
    %3133 = vmatprep.subr.bf16.mxu0 0
    %3134 = vmatpush1.bf16.msra.mxu0 %v3118
    %3135 = vmatprep.subr.bf16.mxu0 0
    %3136 = vmatpush1.bf16.msra.mxu0 %v3119
    %3137 = vmatprep.subr.bf16.mxu0 0
    %3138 = vmatpush1.bf16.msra.mxu0 %v3120
    %3139 = vmatprep.subr.bf16.mxu0 0
    %3140 = vmatpush1.bf16.msra.mxu0 %v3121
    %3141 = vmatprep.subr.bf16.mxu0 0
    %3142 = vmatpush1.bf16.msra.mxu0 %v3122
    %3143 = vmatprep.subr.bf16.mxu0 0
    %3144 = vmatpush1.bf16.msra.mxu0 %v3123
    %3145 = vmatprep.subr.bf16.mxu0 0
    %3146 = vmatpush1.bf16.msra.mxu0 %v3124
    %3147 = vmatprep.subr.bf16.mxu0 0
    %3148 = vmatpush1.bf16.msra.mxu0 %v3125
    %3149 = vmatprep.subr.bf16.mxu0 0
    %3150 = vmatpush1.bf16.msra.mxu0 0
    %3151 = vmatprep.subr.bf16.mxu0 0
    %3152 = vmatpush1.bf16.msra.mxu0 0
    %3153 = vmatprep.subr.bf16.mxu0 0
    %3154 = vmatpush1.bf16.msra.mxu0 0
    %3155 = vmatprep.subr.bf16.mxu0 0
    %3156 = vmatpush1.bf16.msra.mxu0 0
    %3157 = vmatprep.subr.bf16.mxu0 0
    %3158 = vmatpush1.bf16.msra.mxu0 0
    %3159 = vmatprep.subr.bf16.mxu0 0
    %3160 = vmatpush1.bf16.msra.mxu0 0
    %3161 = vmatprep.subr.bf16.mxu0 0
    %3162 = vmatpush1.bf16.msra.mxu0 0
    %3163 = vmatprep.subr.bf16.mxu0 0
    %3164 = vmatpush1.bf16.msra.mxu0 0
    %3165 = vmatprep.mubr.bf16.mxu0 0
    %3166 = vmatmul.mubr.bf16.gmra.mrb[0].mxu0 %v3117
    %v3167 = vpop.f32.mrb[0].mxu0
    %v3168 = vadd.f32 %v3131, %v3167
    %v3169 = vpop.f32.mrb[0].mxu0
    %v3170 = vpop.f32.mrb[0].mxu0
    %v3171 = vpop.f32.mrb[0].mxu0
    %3172 = vdwg.mxu0
    %v3173 = vmax.f32 %v3168, 0.0
    %v3174 = vpack.c.bf16 %v3173, %v3173
    %v3175 = vld [vmem:[#allocation2 + $0x68] sm:$0xff]
    %v3176 = vld [vmem:[#allocation2 + $0xd8] sm:$0xff]
    %v3177 = vld [vmem:[#allocation2 + $0x148] sm:$0xff]
    %v3178 = vld [vmem:[#allocation2 + $0x1b8] sm:$0xff]
    %v3179 = vld [vmem:[#allocation2 + $0x228] sm:$0xff]
    %v3180 = vld [vmem:[#allocation2 + $0x298] sm:$0xff]
    %v3181 = vld [vmem:[#allocation2 + $0x308] sm:$0xff]
    %v3182 = vld [vmem:[#allocation2 + $0x378] sm:$0xff]
    %v3183 = vld [vmem:[%s9] sm:$0x1]
    %v3185 = vlaneseq
    %v3186 = vshrl.u32 %v3185, 7
    %v3187 = vsub.s32 0, %v3186
    %v3188 = vrot.slane %v3183, %v3187
    %3190 = vmatprep.subr.bf16.mxu0 0
    %3191 = vmatpush1.bf16.msra.mxu0 %v3175
    %3192 = vmatprep.subr.bf16.mxu0 0
    %3193 = vmatpush1.bf16.msra.mxu0 %v3176
    %3194 = vmatprep.subr.bf16.mxu0 0
    %3195 = vmatpush1.bf16.msra.mxu0 %v3177
    %3196 = vmatprep.subr.bf16.mxu0 0
    %3197 = vmatpush1.bf16.msra.mxu0 %v3178
    %3198 = vmatprep.subr.bf16.mxu0 0
    %3199 = vmatpush1.bf16.msra.mxu0 %v3179
    %3200 = vmatprep.subr.bf16.mxu0 0
    %3201 = vmatpush1.bf16.msra.mxu0 %v3180
    %3202 = vmatprep.subr.bf16.mxu0 0
    %3203 = vmatpush1.bf16.msra.mxu0 %v3181
    %3204 = vmatprep.subr.bf16.mxu0 0
    %3205 = vmatpush1.bf16.msra.mxu0 %v3182
    %3206 = vmatprep.subr.bf16.mxu0 0
    %3207 = vmatpush1.bf16.msra.mxu0 0
    %3208 = vmatprep.subr.bf16.mxu0 0
    %3209 = vmatpush1.bf16.msra.mxu0 0
    %3210 = vmatprep.subr.bf16.mxu0 0
    %3211 = vmatpush1.bf16.msra.mxu0 0
    %3212 = vmatprep.subr.bf16.mxu0 0
    %3213 = vmatpush1.bf16.msra.mxu0 0
    %3214 = vmatprep.subr.bf16.mxu0 0
    %3215 = vmatpush1.bf16.msra.mxu0 0
    %3216 = vmatprep.subr.bf16.mxu0 0
    %3217 = vmatpush1.bf16.msra.mxu0 0
    %3218 = vmatprep.subr.bf16.mxu0 0
    %3219 = vmatpush1.bf16.msra.mxu0 0
    %3220 = vmatprep.subr.bf16.mxu0 0
    %3221 = vmatpush1.bf16.msra.mxu0 0
    %3222 = vmatprep.mubr.bf16.mxu0 0
    %3223 = vmatmul.mubr.bf16.gmra.mrb[0].mxu0 %v3174
    %v3224 = vpop.f32.mrb[0].mxu0
    %v3225 = vadd.f32 %v3188, %v3224
    %v3226 = vpop.f32.mrb[0].mxu0
    %v3227 = vpop.f32.mrb[0].mxu0
    %v3228 = vpop.f32.mrb[0].mxu0
    %3229 = vdwg.mxu0
    %v3230 = vxor.u32 %v3225, 2147483648
    %v3231 = vmul.f32 %v3230, 1.442695
    %v3232 = vpow.pop %v3231
    %v3233 = vadd.f32 %v3232, 1.0
    %v3234 = vrcp.pop %v3233
    %v3235 = vmul.f32 1.0, %v3234
    %v3236 = vlaneseq
    %v3237 = vand.u32 %v3236, 127
    %vm3238 = vcmp.eq.s32.totalorder %v3237, 50
    %v3239 = vsel %vm3238, %v3235, %v3225
    %3240 = vst [vmem:[%s14] sm:$0x3] %v3239
    // Predicated region
    $region58: #{forward.1} parent=1 // pred_check
      _
    $region59: #{forward.1} parent=1 // pred_check_branch
      %3242 = sbr.rel (0) target = $region61
    $region60: #{forward.1} parent=1 // pred_region
      _
    $region61: #{forward.1} parent=1 // pred_fallthru
      _
    // Predicated region
    $region62: #{forward.1} parent=1 // pred_check
      _
    $region63: #{forward.1} parent=1 // pred_check_branch
      %3244 = sbr.rel (0) target = $region65
    $region64: #{forward.1} parent=1 // pred_region
      _
    $region65: #{forward.1} parent=1 // pred_fallthru
      _
    %3245 = vsyncpa [#allocation7], 1
  %3246 = vsyncmov [#allocation5]
  %s3247 = vpop.sfrf %3246
  %p3248 = scmp.eq.s32.totalorder %s3247, 0
  %p3249 = pneg %p3248
  %3251 = shalt.err (%p3249)

</llo_original>
